<compile_context>
chip_gen: v6e
topology: v6e:2x2x1
jax: 0.10.0
libtpu: 0.0.40
codegen_flags: <defaults>
</compile_context>

<pallas_src>
import math
import functools

import jax
import jax.numpy as jnp
import numpy as np
from jax.experimental import pallas as pl
from jax.experimental.pallas import tpu as pltpu


# ----------------------------- Pallas kernel ------------------------------ #
def gnn_fused_kernel(
    # data
    x_ref, sd_col_ref, sd_row_ref, ea_ref,
    # folded weights (leading num_layers dim unless noted)
    w_node_ref, b_node_ref, w_cka_hs_ref, w_aw_ref, b_aw_ref,
    w_cw_ref, b_cw_ref, w_gx_ref, w_gh_ref, b_g_ref, w_d_ref, b_d_ref,
    # output (aliases x)
    out_ref,
    *, d_model, num_heads, num_layers, neg_slope=0.2):
  f32 = jnp.float32
  D = d_model
  H = num_heads
  L = num_layers
  N = x_ref.shape[0]
  E = ea_ref.shape[0]

  dot = functools.partial(jnp.dot, preferred_element_type=f32)

  def leaky(t):
    return jnp.where(t >= 0, t, neg_slope * t)

  # ---- gather / scatter one-hots built in-kernel from the edge indices ----
  # sd_col / sd_row are two (free) reshapes of edge_index: [src... | dst...]
  sd_col = sd_col_ref[...]                                    # [2E, 1] int32
  sd_row = sd_row_ref[...]                                    # [1, 2E] int32
  lane_n = jax.lax.broadcasted_iota(jnp.int32, (2 * E, N), 1)
  G2 = (sd_col == lane_n).astype(f32)                         # [2E, N] rows 0..E-1 src, E.. dst
  Gd = G2[E:, :]                                              # [E, N]  gather by dst
  sub_n = jax.lax.broadcasted_iota(jnp.int32, (N, E), 0)
  Sd = (sub_n == sd_row[:, E:]).astype(f32)                   # [N, E]  scatter-add to dst (= Gd.T)

  # ---- edge_attr projection: layer-invariant, head-summed, layer-batched ----
  ea = ea_ref[...]                                            # [E, D]
  ks_ea_all = dot(ea, w_cka_hs_ref[...])                      # [E, L*H]

  x = x_ref[...]                                              # [N, D]
  for l in range(L):
    # fused per-node projection [headsum(q) | headsum(ck_x) | v], gathered to
    # edges for src and dst in ONE matmul.
    proj = dot(x, w_node_ref[l]) + b_node_ref[l]              # [N, 2H+D]
    r = dot(G2, proj)                                         # [2E, 2H+D]
    sq = r[E:, :H]                                            # [E, H]  sum_d q_head   (dst rows)
    sk = r[:E, H:2 * H] + ks_ea_all[:, l * H:(l + 1) * H]     # [E, H]  sum_d ck([ea, x_src])_head
    v = r[:E, 2 * H:]                                         # [E, D]  vw(x_src)

    # einsum('bhd,bhq->bh') = product of per-head sums; 1/sqrt(D) and the
    # head->lane broadcast MT are folded into w_aw (leaky is pos. homogeneous).
    aw = leaky(sq * sk)                                       # [E, H]
    a_full = jnp.exp(dot(aw, w_aw_ref[l]) + b_aw_ref[l])      # [E, D] head values on lanes

    # normalisation over edges sharing a dst node, reciprocal at node level
    sc = dot(Sd, a_full)                                      # [N, D]  segment-sum
    rn = pl.reciprocal(jnp.where(sc == 0.0, 1.0, sc), approx=True)
    attn = a_full * dot(Gd, rn)                               # [E, D]; dropout = identity

    # message: cw(attention * vw(x_j)); aggregate (aggr='add')
    msg = dot(attn * v, w_cw_ref[l]) + b_cw_ref[l]            # [E, D]
    h = dot(Sd, msg)                                          # [N, D]

    # sgnn gate: lx folded into w_gx; concat avoided via two accumulating
    # dots; softmax(dim=1) over 2 logits == sigmoid of the logit difference
    la1 = leaky(dot(x, w_gx_ref[l]) + dot(h, w_gh_ref[l]) + b_g_ref[l])   # [N, D]
    z = dot(la1, w_d_ref[l]) + b_d_ref[l]                     # [N, 1]
    g = pl.reciprocal(1.0 + jnp.exp(-z), approx=False)        # sigmoid
    x = x + g * (h - x)                                       # x*(1-g) + h*g

  out_ref[...] = x


# ------------------------------ JAX wrapper ------------------------------- #
def init_linear(key, out_dim, in_dim):
  k1, k2 = jax.random.split(key)
  bound = 1.0 / math.sqrt(in_dim)
  W = jax.random.uniform(k1, (out_dim, in_dim), jnp.float32, -bound, bound)
  b = jax.random.uniform(k2, (out_dim,), jnp.float32, -bound, bound)
  return W, b


def init_gnn_params(key, d_model, num_heads, num_layers):
  params = []
  for _ in range(num_layers):
    keys = jax.random.split(key, 9)
    key = keys[0]
    p = {}
    p['Wck'], p['bck'] = init_linear(keys[1], d_model, 2 * d_model)
    p['Wq'], p['bq'] = init_linear(keys[2], d_model, d_model)
    p['Wv'], p['bv'] = init_linear(keys[3], d_model, d_model)
    p['Waw'], p['baw'] = init_linear(keys[4], num_heads, num_heads)
    p['Wcw'], p['bcw'] = init_linear(keys[5], d_model, d_model)
    p['Wlx'], p['blx'] = init_linear(keys[6], d_model, d_model)
    p['Wla1'], p['bla1'] = init_linear(keys[7], d_model, 2 * d_model)
    p['Wla2'], p['bla2'] = init_linear(keys[8], 2, d_model)
    params.append(p)
  return params


def prepare_params(params, d_model, num_heads):
  """One-time weight folding (no per-call XLA transposes / broadcasts)."""
  D, H = d_model, num_heads
  dh = D // H
  inv_s = 1.0 / math.sqrt(D)
  # head-sum [D, H] and head-broadcast [H, D] one-hots (prepare-time only)
  M = jnp.asarray((np.arange(D)[:, None] // dh ==
                   np.arange(H)[None, :]).astype(np.float32))
  MT = M.T

  cols = {k: [] for k in ('w_node', 'b_node', 'w_cka_hs', 'w_aw', 'b_aw',
                          'w_cw', 'b_cw', 'w_gx', 'w_gh', 'b_g', 'w_d', 'b_d')}
  for p in params:
    Wck_a = p['Wck'][:, :D]          # multiplies edge_attr
    Wck_x = p['Wck'][:, D:]          # multiplies x[src]
    # fused per-node projection [headsum(q) | headsum(ck_x) | v]  -> [D, 2H+D]
    cols['w_node'].append(
        jnp.concatenate([p['Wq'].T @ M, Wck_x.T @ M, p['Wv'].T], axis=1))
    cols['b_node'].append(
        jnp.concatenate([p['bq'] @ M, p['bck'] @ M, p['bv']])[None, :])
    cols['w_cka_hs'].append(Wck_a.T @ M)                              # [D, H]
    # 1/sqrt(D) scale and MT head-broadcast folded into the attention weight
    cols['w_aw'].append((p['Waw'].T * inv_s) @ MT)                    # [H, D]
    cols['b_aw'].append((p['baw'] @ MT)[None, :])                     # [1, D]
    cols['w_cw'].append(p['Wcw'].T)                                   # [D, D]
    cols['b_cw'].append(p['bcw'][None, :])                            # [1, D]
    # fold lx Linear into la[0]; split into x-side / h-side (no in-kernel concat)
    Wla1_l = p['Wla1'][:, :D]
    Wla1_h = p['Wla1'][:, D:]
    cols['w_gx'].append((Wla1_l @ p['Wlx']).T)                        # [D, D]
    cols['w_gh'].append(Wla1_h.T)                                     # [D, D]
    cols['b_g'].append((p['bla1'] + Wla1_l @ p['blx'])[None, :])      # [1, D]
    # 2-way softmax -> sigmoid of logit difference
    cols['w_d'].append((p['Wla2'][1] - p['Wla2'][0])[:, None])        # [D, 1]
    cols['b_d'].append((p['bla2'][1] - p['bla2'][0]).reshape(1, 1))   # [1, 1]

  out = {k: jnp.stack(v, axis=0) for k, v in cols.items() if k != 'w_cka_hs'}
  # batched across layers: [D, L*H]
  out['w_cka_hs'] = jnp.concatenate(cols['w_cka_hs'], axis=1)
  return out


@functools.partial(jax.jit,
                   static_argnames=('d_model', 'num_heads', 'num_layers'),
                   donate_argnums=(0,))
def gnn_forward(x, edge_index, edge_attr, prepped, *, d_model, num_heads,
                num_layers):
  N, D = x.shape
  E = edge_index.shape[1]
  # free (bitcast) reshapes of edge_index; one-hots are built in-kernel
  sd_col = edge_index.reshape(2 * E, 1)     # [src... | dst...] as a column
  sd_row = edge_index.reshape(1, 2 * E)     # same data as a row

  args = (
      x, sd_col, sd_row, edge_attr,
      prepped['w_node'], prepped['b_node'], prepped['w_cka_hs'],
      prepped['w_aw'], prepped['b_aw'],
      prepped['w_cw'], prepped['b_cw'],
      prepped['w_gx'], prepped['w_gh'], prepped['b_g'],
      prepped['w_d'], prepped['b_d'],
  )
  vmem = pl.BlockSpec(memory_space=pltpu.MemorySpace.VMEM)
  return pl.pallas_call(
      functools.partial(gnn_fused_kernel, d_model=d_model,
                        num_heads=num_heads, num_layers=num_layers),
      out_shape=jax.ShapeDtypeStruct((N, D), jnp.float32),
      in_specs=[vmem] * len(args),
      out_specs=vmem,
      input_output_aliases={0: 0},          # out aliases x
  )(*args)


# --------------------------- pure-JAX reference ---------------------------- #
def _ref_layer(x, edge_index, ea, p, D, H):
  src, dst = edge_index[0], edge_index[1]
  n = x.shape[0]
  q = x[dst] @ p['Wq'].T + p['bq']
  k = jnp.concatenate([ea, x[src]], axis=1) @ p['Wck'].T + p['bck']
  dh = D // H
  wq = q.reshape(-1, H, dh)
  wk = k.reshape(-1, H, dh)
  # literal torch.einsum('bhd,bhq->bh', wq, wk): independent d/q subscripts
  aw = jnp.einsum('bhd,bhq->bh', wq, wk) / math.sqrt(D)
  aw = jnp.where(aw >= 0, aw, 0.2 * aw) @ p['Waw'].T + p['baw']
  a = jnp.exp(aw)
  sc = jax.ops.segment_sum(a, dst, num_segments=n)
  ad = sc[dst]
  ad = jnp.where(ad == 0, 1.0, ad)
  attn = (a / ad)[:, :, None]
  v = (x[src] @ p['Wv'].T + p['bv']).reshape(-1, H, dh)
  msg = (attn * v).reshape(-1, D) @ p['Wcw'].T + p['bcw']
  h = jax.ops.segment_sum(msg, dst, num_segments=n)
  lx = x @ p['Wlx'].T + p['blx']
  la1 = jnp.concatenate([lx, h], axis=1) @ p['Wla1'].T + p['bla1']
  la1 = jnp.where(la1 >= 0, la1, 0.2 * la1)
  la = jax.nn.softmax(la1 @ p['Wla2'].T + p['bla2'], axis=1)
  return x * la[:, 0:1] + h * la[:, 1:2]


def gnn_forward_ref(x, edge_index, edge_attr, params, d_model, num_heads):
  for p in params:
    x = _ref_layer(x, edge_index, edge_attr, p, d_model, num_heads)
  return x


# --------------------------------- main ------------------------------------ #
if __name__ == "__main__":
  D_MODEL = 32
  NUM_HEADS = 4
  NUM_LAYERS = 3
  N_NODES = 16
  N_EDGES = 48

  key = jax.random.PRNGKey(0)
  kx, ke, ks, kd, kp = jax.random.split(key, 5)

  x = jax.random.normal(kx, (N_NODES, D_MODEL), jnp.float32)
  edge_attr = jax.random.normal(ke, (N_EDGES, D_MODEL), jnp.float32)
  src = jax.random.randint(ks, (N_EDGES,), 0, N_NODES, jnp.int32)
  dst = jax.random.randint(kd, (N_EDGES,), 0, N_NODES, jnp.int32)
  edge_index = jnp.stack([src, dst], axis=0)      # [2, E] (row0=src, row1=dst)

  params = init_gnn_params(kp, D_MODEL, NUM_HEADS, NUM_LAYERS)
  prepped = prepare_params(params, D_MODEL, NUM_HEADS)

  # reference first: x is donated into the kernel call below
  ref = gnn_forward_ref(x, edge_index, edge_attr, params, D_MODEL, NUM_HEADS)
  ref = np.asarray(jax.block_until_ready(ref))

  out = gnn_forward(x, edge_index, edge_attr, prepped,
                    d_model=D_MODEL, num_heads=NUM_HEADS,
                    num_layers=NUM_LAYERS)
  out = np.asarray(jax.block_until_ready(out))

  np.testing.assert_allclose(out, ref, rtol=2e-3, atol=2e-3)
  print("KERNEL_OK")
</pallas_src>

<mosaic_0001>
module attributes {stable_mosaic.version = 11 : i64} {
  func.func @gnn_fused_kernel(%arg0: memref<16x32xf32, #tpu.memory_space<vmem>>, %arg1: memref<96x1xi32, #tpu.memory_space<vmem>>, %arg2: memref<1x96xi32, #tpu.memory_space<vmem>>, %arg3: memref<48x32xf32, #tpu.memory_space<vmem>>, %arg4: memref<3x32x40xf32, #tpu.memory_space<vmem>>, %arg5: memref<3x1x40xf32, #tpu.memory_space<vmem>>, %arg6: memref<32x12xf32, #tpu.memory_space<vmem>>, %arg7: memref<3x4x32xf32, #tpu.memory_space<vmem>>, %arg8: memref<3x1x32xf32, #tpu.memory_space<vmem>>, %arg9: memref<3x32x32xf32, #tpu.memory_space<vmem>>, %arg10: memref<3x1x32xf32, #tpu.memory_space<vmem>>, %arg11: memref<3x32x32xf32, #tpu.memory_space<vmem>>, %arg12: memref<3x32x32xf32, #tpu.memory_space<vmem>>, %arg13: memref<3x1x32xf32, #tpu.memory_space<vmem>>, %arg14: memref<3x32x1xf32, #tpu.memory_space<vmem>>, %arg15: memref<3x1x1xf32, #tpu.memory_space<vmem>>, %arg16: memref<16x32xf32, #tpu.memory_space<vmem>>) attributes {dimension_semantics = [], scalar_prefetch = 0 : i64, scratch_operands = 0 : i64, tpu.core_type = #tpu.core_type<tc>} {
    %c0 = arith.constant 0 : index
    %c0_0 = arith.constant 0 : index
    %0 = vector.load %arg1[%c0, %c0_0] : memref<96x1xi32, #tpu.memory_space<vmem>>, vector<96x1xi32>
    %c0_1 = arith.constant 0 : index
    %c0_2 = arith.constant 0 : index
    %1 = vector.load %arg2[%c0_1, %c0_2] : memref<1x96xi32, #tpu.memory_space<vmem>>, vector<1x96xi32>
    %2 = tpu.iota {dimensions = array<i32: 1>} : vector<96x16xi32>
    %3 = vector.broadcast %0 : vector<96x1xi32> to vector<96x16xi32>
    %4 = arith.cmpi eq, %3, %2 : vector<96x16xi32>
    %5 = arith.extui %4 : vector<96x16xi1> to vector<96x16xi32>
    %6 = arith.sitofp %5 : vector<96x16xi32> to vector<96x16xf32>
    %7 = vector.extract_strided_slice %6 {offsets = [48, 0], sizes = [48, 16], strides = [1, 1]} : vector<96x16xf32> to vector<48x16xf32>
    %8 = tpu.iota {dimensions = array<i32: 0>} : vector<16x48xi32>
    %9 = vector.extract_strided_slice %1 {offsets = [0, 48], sizes = [1, 48], strides = [1, 1]} : vector<1x96xi32> to vector<1x48xi32>
    %10 = vector.broadcast %9 : vector<1x48xi32> to vector<16x48xi32>
    %11 = arith.cmpi eq, %8, %10 : vector<16x48xi32>
    %12 = arith.extui %11 : vector<16x48xi1> to vector<16x48xi32>
    %13 = arith.sitofp %12 : vector<16x48xi32> to vector<16x48xf32>
    %c0_3 = arith.constant 0 : index
    %c0_4 = arith.constant 0 : index
    %14 = vector.load %arg3[%c0_3, %c0_4] : memref<48x32xf32, #tpu.memory_space<vmem>>, vector<48x32xf32>
    %c0_5 = arith.constant 0 : index
    %c0_6 = arith.constant 0 : index
    %15 = vector.load %arg6[%c0_5, %c0_6] : memref<32x12xf32, #tpu.memory_space<vmem>>, vector<32x12xf32>
    %cst = arith.constant dense<0.000000e+00> : vector<48x12xf32>
    %16 = tpu.matmul %14, %15, %cst {dimension_numbers = #tpu.dot_dimension_numbers<[1], [0], [0], [1], [0, 0, 1, 1], [], []>} : vector<48x32xf32>, vector<32x12xf32>, vector<48x12xf32> -> vector<48x12xf32>
    %c0_7 = arith.constant 0 : index
    %c0_8 = arith.constant 0 : index
    %17 = vector.load %arg0[%c0_7, %c0_8] : memref<16x32xf32, #tpu.memory_space<vmem>>, vector<16x32xf32>
    %c0_9 = arith.constant 0 : index
    %c0_10 = arith.constant 0 : index
    %c0_11 = arith.constant 0 : index
    %18 = vector.load %arg4[%c0_9, %c0_10, %c0_11] : memref<3x32x40xf32, #tpu.memory_space<vmem>>, vector<1x32x40xf32>
    %19 = vector.shape_cast %18 : vector<1x32x40xf32> to vector<32x40xf32>
    %cst_12 = arith.constant dense<0.000000e+00> : vector<16x40xf32>
    %20 = tpu.matmul %17, %19, %cst_12 {dimension_numbers = #tpu.dot_dimension_numbers<[1], [0], [0], [1], [0, 0, 1, 1], [], []>} : vector<16x32xf32>, vector<32x40xf32>, vector<16x40xf32> -> vector<16x40xf32>
    %c0_13 = arith.constant 0 : index
    %c0_14 = arith.constant 0 : index
    %c0_15 = arith.constant 0 : index
    %21 = vector.load %arg5[%c0_13, %c0_14, %c0_15] : memref<3x1x40xf32, #tpu.memory_space<vmem>>, vector<1x1x40xf32>
    %22 = vector.shape_cast %21 : vector<1x1x40xf32> to vector<1x40xf32>
    %23 = vector.broadcast %22 : vector<1x40xf32> to vector<16x40xf32>
    %24 = arith.addf %20, %23 : vector<16x40xf32>
    %cst_16 = arith.constant dense<0.000000e+00> : vector<96x40xf32>
    %25 = tpu.matmul %6, %24, %cst_16 {dimension_numbers = #tpu.dot_dimension_numbers<[1], [0], [0], [1], [0, 0, 1, 1], [], []>} : vector<96x16xf32>, vector<16x40xf32>, vector<96x40xf32> -> vector<96x40xf32>
    %26 = vector.extract_strided_slice %25 {offsets = [48, 0], sizes = [48, 4], strides = [1, 1]} : vector<96x40xf32> to vector<48x4xf32>
    %27 = vector.extract_strided_slice %25 {offsets = [0, 4], sizes = [48, 4], strides = [1, 1]} : vector<96x40xf32> to vector<48x4xf32>
    %28 = vector.extract_strided_slice %16 {offsets = [0, 0], sizes = [48, 4], strides = [1, 1]} : vector<48x12xf32> to vector<48x4xf32>
    %29 = arith.addf %27, %28 : vector<48x4xf32>
    %30 = vector.extract_strided_slice %25 {offsets = [0, 8], sizes = [48, 32], strides = [1, 1]} : vector<96x40xf32> to vector<48x32xf32>
    %31 = arith.mulf %26, %29 : vector<48x4xf32>
    %cst_17 = arith.constant 0.000000e+00 : f32
    %32 = vector.broadcast %cst_17 : f32 to vector<48x4xf32>
    %33 = arith.cmpf oge, %31, %32 : vector<48x4xf32>
    %cst_18 = arith.constant 2.000000e-01 : f32
    %34 = vector.broadcast %cst_18 : f32 to vector<48x4xf32>
    %35 = arith.mulf %34, %31 : vector<48x4xf32>
    %36 = arith.select %33, %31, %35 : vector<48x4xi1>, vector<48x4xf32>
    %c0_19 = arith.constant 0 : index
    %c0_20 = arith.constant 0 : index
    %c0_21 = arith.constant 0 : index
    %37 = vector.load %arg7[%c0_19, %c0_20, %c0_21] : memref<3x4x32xf32, #tpu.memory_space<vmem>>, vector<1x4x32xf32>
    %38 = vector.shape_cast %37 : vector<1x4x32xf32> to vector<4x32xf32>
    %cst_22 = arith.constant dense<0.000000e+00> : vector<48x32xf32>
    %39 = tpu.matmul %36, %38, %cst_22 {dimension_numbers = #tpu.dot_dimension_numbers<[1], [0], [0], [1], [0, 0, 1, 1], [], []>} : vector<48x4xf32>, vector<4x32xf32>, vector<48x32xf32> -> vector<48x32xf32>
    %c0_23 = arith.constant 0 : index
    %c0_24 = arith.constant 0 : index
    %c0_25 = arith.constant 0 : index
    %40 = vector.load %arg8[%c0_23, %c0_24, %c0_25] : memref<3x1x32xf32, #tpu.memory_space<vmem>>, vector<1x1x32xf32>
    %41 = vector.shape_cast %40 : vector<1x1x32xf32> to vector<1x32xf32>
    %42 = vector.broadcast %41 : vector<1x32xf32> to vector<48x32xf32>
    %43 = arith.addf %39, %42 : vector<48x32xf32>
    %44 = math.exp %43 : vector<48x32xf32>
    %cst_26 = arith.constant dense<0.000000e+00> : vector<16x32xf32>
    %45 = tpu.matmul %13, %44, %cst_26 {dimension_numbers = #tpu.dot_dimension_numbers<[1], [0], [0], [1], [0, 0, 1, 1], [], []>} : vector<16x48xf32>, vector<48x32xf32>, vector<16x32xf32> -> vector<16x32xf32>
    %cst_27 = arith.constant 0.000000e+00 : f32
    %46 = vector.broadcast %cst_27 : f32 to vector<16x32xf32>
    %47 = arith.cmpf oeq, %45, %46 : vector<16x32xf32>
    %cst_28 = arith.constant 1.000000e+00 : f32
    %48 = vector.broadcast %cst_28 : f32 to vector<16x32xf32>
    %49 = arith.select %47, %48, %45 : vector<16x32xi1>, vector<16x32xf32>
    %50 = tpu.reciprocal %49 {approx = true} : vector<16x32xf32> -> vector<16x32xf32>
    %cst_29 = arith.constant dense<0.000000e+00> : vector<48x32xf32>
    %51 = tpu.matmul %7, %50, %cst_29 {dimension_numbers = #tpu.dot_dimension_numbers<[1], [0], [0], [1], [0, 0, 1, 1], [], []>} : vector<48x16xf32>, vector<16x32xf32>, vector<48x32xf32> -> vector<48x32xf32>
    %52 = arith.mulf %44, %51 : vector<48x32xf32>
    %53 = arith.mulf %52, %30 : vector<48x32xf32>
    %c0_30 = arith.constant 0 : index
    %c0_31 = arith.constant 0 : index
    %c0_32 = arith.constant 0 : index
    %54 = vector.load %arg9[%c0_30, %c0_31, %c0_32] : memref<3x32x32xf32, #tpu.memory_space<vmem>>, vector<1x32x32xf32>
    %55 = vector.shape_cast %54 : vector<1x32x32xf32> to vector<32x32xf32>
    %cst_33 = arith.constant dense<0.000000e+00> : vector<48x32xf32>
    %56 = tpu.matmul %53, %55, %cst_33 {dimension_numbers = #tpu.dot_dimension_numbers<[1], [0], [0], [1], [0, 0, 1, 1], [], []>} : vector<48x32xf32>, vector<32x32xf32>, vector<48x32xf32> -> vector<48x32xf32>
    %c0_34 = arith.constant 0 : index
    %c0_35 = arith.constant 0 : index
    %c0_36 = arith.constant 0 : index
    %57 = vector.load %arg10[%c0_34, %c0_35, %c0_36] : memref<3x1x32xf32, #tpu.memory_space<vmem>>, vector<1x1x32xf32>
    %58 = vector.shape_cast %57 : vector<1x1x32xf32> to vector<1x32xf32>
    %59 = vector.broadcast %58 : vector<1x32xf32> to vector<48x32xf32>
    %60 = arith.addf %56, %59 : vector<48x32xf32>
    %cst_37 = arith.constant dense<0.000000e+00> : vector<16x32xf32>
    %61 = tpu.matmul %13, %60, %cst_37 {dimension_numbers = #tpu.dot_dimension_numbers<[1], [0], [0], [1], [0, 0, 1, 1], [], []>} : vector<16x48xf32>, vector<48x32xf32>, vector<16x32xf32> -> vector<16x32xf32>
    %c0_38 = arith.constant 0 : index
    %c0_39 = arith.constant 0 : index
    %c0_40 = arith.constant 0 : index
    %62 = vector.load %arg11[%c0_38, %c0_39, %c0_40] : memref<3x32x32xf32, #tpu.memory_space<vmem>>, vector<1x32x32xf32>
    %63 = vector.shape_cast %62 : vector<1x32x32xf32> to vector<32x32xf32>
    %cst_41 = arith.constant dense<0.000000e+00> : vector<16x32xf32>
    %64 = tpu.matmul %17, %63, %cst_41 {dimension_numbers = #tpu.dot_dimension_numbers<[1], [0], [0], [1], [0, 0, 1, 1], [], []>} : vector<16x32xf32>, vector<32x32xf32>, vector<16x32xf32> -> vector<16x32xf32>
    %c0_42 = arith.constant 0 : index
    %c0_43 = arith.constant 0 : index
    %c0_44 = arith.constant 0 : index
    %65 = vector.load %arg12[%c0_42, %c0_43, %c0_44] : memref<3x32x32xf32, #tpu.memory_space<vmem>>, vector<1x32x32xf32>
    %66 = vector.shape_cast %65 : vector<1x32x32xf32> to vector<32x32xf32>
    %cst_45 = arith.constant dense<0.000000e+00> : vector<16x32xf32>
    %67 = tpu.matmul %61, %66, %cst_45 {dimension_numbers = #tpu.dot_dimension_numbers<[1], [0], [0], [1], [0, 0, 1, 1], [], []>} : vector<16x32xf32>, vector<32x32xf32>, vector<16x32xf32> -> vector<16x32xf32>
    %68 = arith.addf %64, %67 : vector<16x32xf32>
    %c0_46 = arith.constant 0 : index
    %c0_47 = arith.constant 0 : index
    %c0_48 = arith.constant 0 : index
    %69 = vector.load %arg13[%c0_46, %c0_47, %c0_48] : memref<3x1x32xf32, #tpu.memory_space<vmem>>, vector<1x1x32xf32>
    %70 = vector.shape_cast %69 : vector<1x1x32xf32> to vector<1x32xf32>
    %71 = vector.broadcast %70 : vector<1x32xf32> to vector<16x32xf32>
    %72 = arith.addf %68, %71 : vector<16x32xf32>
    %cst_49 = arith.constant 0.000000e+00 : f32
    %73 = vector.broadcast %cst_49 : f32 to vector<16x32xf32>
    %74 = arith.cmpf oge, %72, %73 : vector<16x32xf32>
    %cst_50 = arith.constant 2.000000e-01 : f32
    %75 = vector.broadcast %cst_50 : f32 to vector<16x32xf32>
    %76 = arith.mulf %75, %72 : vector<16x32xf32>
    %77 = arith.select %74, %72, %76 : vector<16x32xi1>, vector<16x32xf32>
    %c0_51 = arith.constant 0 : index
    %c0_52 = arith.constant 0 : index
    %c0_53 = arith.constant 0 : index
    %78 = vector.load %arg14[%c0_51, %c0_52, %c0_53] : memref<3x32x1xf32, #tpu.memory_space<vmem>>, vector<1x32x1xf32>
    %79 = vector.shape_cast %78 : vector<1x32x1xf32> to vector<32x1xf32>
    %cst_54 = arith.constant dense<0.000000e+00> : vector<16x1xf32>
    %80 = tpu.matmul %77, %79, %cst_54 {dimension_numbers = #tpu.dot_dimension_numbers<[1], [0], [0], [1], [0, 0, 1, 1], [], []>} : vector<16x32xf32>, vector<32x1xf32>, vector<16x1xf32> -> vector<16x1xf32>
    %c0_55 = arith.constant 0 : index
    %c0_56 = arith.constant 0 : index
    %c0_57 = arith.constant 0 : index
    %81 = vector.load %arg15[%c0_55, %c0_56, %c0_57] : memref<3x1x1xf32, #tpu.memory_space<vmem>>, vector<1x1x1xf32>
    %82 = vector.shape_cast %81 : vector<1x1x1xf32> to vector<1x1xf32>
    %83 = vector.broadcast %82 : vector<1x1xf32> to vector<16x1xf32>
    %84 = arith.addf %80, %83 : vector<16x1xf32>
    %cst_58 = arith.constant 0.000000e+00 : f32
    %85 = vector.broadcast %cst_58 : f32 to vector<16x1xf32>
    %86 = arith.subf %85, %84 : vector<16x1xf32>
    %87 = math.exp %86 : vector<16x1xf32>
    %cst_59 = arith.constant 1.000000e+00 : f32
    %88 = vector.broadcast %cst_59 : f32 to vector<16x1xf32>
    %89 = arith.addf %88, %87 : vector<16x1xf32>
    %90 = tpu.reciprocal %89 : vector<16x1xf32> -> vector<16x1xf32>
    %91 = arith.subf %61, %17 : vector<16x32xf32>
    %92 = vector.broadcast %90 : vector<16x1xf32> to vector<16x32xf32>
    %93 = arith.mulf %92, %91 : vector<16x32xf32>
    %94 = arith.addf %17, %93 : vector<16x32xf32>
    %c1 = arith.constant 1 : index
    %c0_60 = arith.constant 0 : index
    %c0_61 = arith.constant 0 : index
    %95 = vector.load %arg4[%c1, %c0_60, %c0_61] : memref<3x32x40xf32, #tpu.memory_space<vmem>>, vector<1x32x40xf32>
    %96 = vector.shape_cast %95 : vector<1x32x40xf32> to vector<32x40xf32>
    %cst_62 = arith.constant dense<0.000000e+00> : vector<16x40xf32>
    %97 = tpu.matmul %94, %96, %cst_62 {dimension_numbers = #tpu.dot_dimension_numbers<[1], [0], [0], [1], [0, 0, 1, 1], [], []>} : vector<16x32xf32>, vector<32x40xf32>, vector<16x40xf32> -> vector<16x40xf32>
    %c1_63 = arith.constant 1 : index
    %c0_64 = arith.constant 0 : index
    %c0_65 = arith.constant 0 : index
    %98 = vector.load %arg5[%c1_63, %c0_64, %c0_65] : memref<3x1x40xf32, #tpu.memory_space<vmem>>, vector<1x1x40xf32>
    %99 = vector.shape_cast %98 : vector<1x1x40xf32> to vector<1x40xf32>
    %100 = vector.broadcast %99 : vector<1x40xf32> to vector<16x40xf32>
    %101 = arith.addf %97, %100 : vector<16x40xf32>
    %cst_66 = arith.constant dense<0.000000e+00> : vector<96x40xf32>
    %102 = tpu.matmul %6, %101, %cst_66 {dimension_numbers = #tpu.dot_dimension_numbers<[1], [0], [0], [1], [0, 0, 1, 1], [], []>} : vector<96x16xf32>, vector<16x40xf32>, vector<96x40xf32> -> vector<96x40xf32>
    %103 = vector.extract_strided_slice %102 {offsets = [48, 0], sizes = [48, 4], strides = [1, 1]} : vector<96x40xf32> to vector<48x4xf32>
    %104 = vector.extract_strided_slice %102 {offsets = [0, 4], sizes = [48, 4], strides = [1, 1]} : vector<96x40xf32> to vector<48x4xf32>
    %105 = vector.extract_strided_slice %16 {offsets = [0, 4], sizes = [48, 4], strides = [1, 1]} : vector<48x12xf32> to vector<48x4xf32>
    %106 = arith.addf %104, %105 : vector<48x4xf32>
    %107 = vector.extract_strided_slice %102 {offsets = [0, 8], sizes = [48, 32], strides = [1, 1]} : vector<96x40xf32> to vector<48x32xf32>
    %108 = arith.mulf %103, %106 : vector<48x4xf32>
    %cst_67 = arith.constant 0.000000e+00 : f32
    %109 = vector.broadcast %cst_67 : f32 to vector<48x4xf32>
    %110 = arith.cmpf oge, %108, %109 : vector<48x4xf32>
    %cst_68 = arith.constant 2.000000e-01 : f32
    %111 = vector.broadcast %cst_68 : f32 to vector<48x4xf32>
    %112 = arith.mulf %111, %108 : vector<48x4xf32>
    %113 = arith.select %110, %108, %112 : vector<48x4xi1>, vector<48x4xf32>
    %c1_69 = arith.constant 1 : index
    %c0_70 = arith.constant 0 : index
    %c0_71 = arith.constant 0 : index
    %114 = vector.load %arg7[%c1_69, %c0_70, %c0_71] : memref<3x4x32xf32, #tpu.memory_space<vmem>>, vector<1x4x32xf32>
    %115 = vector.shape_cast %114 : vector<1x4x32xf32> to vector<4x32xf32>
    %cst_72 = arith.constant dense<0.000000e+00> : vector<48x32xf32>
    %116 = tpu.matmul %113, %115, %cst_72 {dimension_numbers = #tpu.dot_dimension_numbers<[1], [0], [0], [1], [0, 0, 1, 1], [], []>} : vector<48x4xf32>, vector<4x32xf32>, vector<48x32xf32> -> vector<48x32xf32>
    %c1_73 = arith.constant 1 : index
    %c0_74 = arith.constant 0 : index
    %c0_75 = arith.constant 0 : index
    %117 = vector.load %arg8[%c1_73, %c0_74, %c0_75] : memref<3x1x32xf32, #tpu.memory_space<vmem>>, vector<1x1x32xf32>
    %118 = vector.shape_cast %117 : vector<1x1x32xf32> to vector<1x32xf32>
    %119 = vector.broadcast %118 : vector<1x32xf32> to vector<48x32xf32>
    %120 = arith.addf %116, %119 : vector<48x32xf32>
    %121 = math.exp %120 : vector<48x32xf32>
    %cst_76 = arith.constant dense<0.000000e+00> : vector<16x32xf32>
    %122 = tpu.matmul %13, %121, %cst_76 {dimension_numbers = #tpu.dot_dimension_numbers<[1], [0], [0], [1], [0, 0, 1, 1], [], []>} : vector<16x48xf32>, vector<48x32xf32>, vector<16x32xf32> -> vector<16x32xf32>
    %cst_77 = arith.constant 0.000000e+00 : f32
    %123 = vector.broadcast %cst_77 : f32 to vector<16x32xf32>
    %124 = arith.cmpf oeq, %122, %123 : vector<16x32xf32>
    %cst_78 = arith.constant 1.000000e+00 : f32
    %125 = vector.broadcast %cst_78 : f32 to vector<16x32xf32>
    %126 = arith.select %124, %125, %122 : vector<16x32xi1>, vector<16x32xf32>
    %127 = tpu.reciprocal %126 {approx = true} : vector<16x32xf32> -> vector<16x32xf32>
    %cst_79 = arith.constant dense<0.000000e+00> : vector<48x32xf32>
    %128 = tpu.matmul %7, %127, %cst_79 {dimension_numbers = #tpu.dot_dimension_numbers<[1], [0], [0], [1], [0, 0, 1, 1], [], []>} : vector<48x16xf32>, vector<16x32xf32>, vector<48x32xf32> -> vector<48x32xf32>
    %129 = arith.mulf %121, %128 : vector<48x32xf32>
    %130 = arith.mulf %129, %107 : vector<48x32xf32>
    %c1_80 = arith.constant 1 : index
    %c0_81 = arith.constant 0 : index
    %c0_82 = arith.constant 0 : index
    %131 = vector.load %arg9[%c1_80, %c0_81, %c0_82] : memref<3x32x32xf32, #tpu.memory_space<vmem>>, vector<1x32x32xf32>
    %132 = vector.shape_cast %131 : vector<1x32x32xf32> to vector<32x32xf32>
    %cst_83 = arith.constant dense<0.000000e+00> : vector<48x32xf32>
    %133 = tpu.matmul %130, %132, %cst_83 {dimension_numbers = #tpu.dot_dimension_numbers<[1], [0], [0], [1], [0, 0, 1, 1], [], []>} : vector<48x32xf32>, vector<32x32xf32>, vector<48x32xf32> -> vector<48x32xf32>
    %c1_84 = arith.constant 1 : index
    %c0_85 = arith.constant 0 : index
    %c0_86 = arith.constant 0 : index
    %134 = vector.load %arg10[%c1_84, %c0_85, %c0_86] : memref<3x1x32xf32, #tpu.memory_space<vmem>>, vector<1x1x32xf32>
    %135 = vector.shape_cast %134 : vector<1x1x32xf32> to vector<1x32xf32>
    %136 = vector.broadcast %135 : vector<1x32xf32> to vector<48x32xf32>
    %137 = arith.addf %133, %136 : vector<48x32xf32>
    %cst_87 = arith.constant dense<0.000000e+00> : vector<16x32xf32>
    %138 = tpu.matmul %13, %137, %cst_87 {dimension_numbers = #tpu.dot_dimension_numbers<[1], [0], [0], [1], [0, 0, 1, 1], [], []>} : vector<16x48xf32>, vector<48x32xf32>, vector<16x32xf32> -> vector<16x32xf32>
    %c1_88 = arith.constant 1 : index
    %c0_89 = arith.constant 0 : index
    %c0_90 = arith.constant 0 : index
    %139 = vector.load %arg11[%c1_88, %c0_89, %c0_90] : memref<3x32x32xf32, #tpu.memory_space<vmem>>, vector<1x32x32xf32>
    %140 = vector.shape_cast %139 : vector<1x32x32xf32> to vector<32x32xf32>
    %cst_91 = arith.constant dense<0.000000e+00> : vector<16x32xf32>
    %141 = tpu.matmul %94, %140, %cst_91 {dimension_numbers = #tpu.dot_dimension_numbers<[1], [0], [0], [1], [0, 0, 1, 1], [], []>} : vector<16x32xf32>, vector<32x32xf32>, vector<16x32xf32> -> vector<16x32xf32>
    %c1_92 = arith.constant 1 : index
    %c0_93 = arith.constant 0 : index
    %c0_94 = arith.constant 0 : index
    %142 = vector.load %arg12[%c1_92, %c0_93, %c0_94] : memref<3x32x32xf32, #tpu.memory_space<vmem>>, vector<1x32x32xf32>
    %143 = vector.shape_cast %142 : vector<1x32x32xf32> to vector<32x32xf32>
    %cst_95 = arith.constant dense<0.000000e+00> : vector<16x32xf32>
    %144 = tpu.matmul %138, %143, %cst_95 {dimension_numbers = #tpu.dot_dimension_numbers<[1], [0], [0], [1], [0, 0, 1, 1], [], []>} : vector<16x32xf32>, vector<32x32xf32>, vector<16x32xf32> -> vector<16x32xf32>
    %145 = arith.addf %141, %144 : vector<16x32xf32>
    %c1_96 = arith.constant 1 : index
    %c0_97 = arith.constant 0 : index
    %c0_98 = arith.constant 0 : index
    %146 = vector.load %arg13[%c1_96, %c0_97, %c0_98] : memref<3x1x32xf32, #tpu.memory_space<vmem>>, vector<1x1x32xf32>
    %147 = vector.shape_cast %146 : vector<1x1x32xf32> to vector<1x32xf32>
    %148 = vector.broadcast %147 : vector<1x32xf32> to vector<16x32xf32>
    %149 = arith.addf %145, %148 : vector<16x32xf32>
    %cst_99 = arith.constant 0.000000e+00 : f32
    %150 = vector.broadcast %cst_99 : f32 to vector<16x32xf32>
    %151 = arith.cmpf oge, %149, %150 : vector<16x32xf32>
    %cst_100 = arith.constant 2.000000e-01 : f32
    %152 = vector.broadcast %cst_100 : f32 to vector<16x32xf32>
    %153 = arith.mulf %152, %149 : vector<16x32xf32>
    %154 = arith.select %151, %149, %153 : vector<16x32xi1>, vector<16x32xf32>
    %c1_101 = arith.constant 1 : index
    %c0_102 = arith.constant 0 : index
    %c0_103 = arith.constant 0 : index
    %155 = vector.load %arg14[%c1_101, %c0_102, %c0_103] : memref<3x32x1xf32, #tpu.memory_space<vmem>>, vector<1x32x1xf32>
    %156 = vector.shape_cast %155 : vector<1x32x1xf32> to vector<32x1xf32>
    %cst_104 = arith.constant dense<0.000000e+00> : vector<16x1xf32>
    %157 = tpu.matmul %154, %156, %cst_104 {dimension_numbers = #tpu.dot_dimension_numbers<[1], [0], [0], [1], [0, 0, 1, 1], [], []>} : vector<16x32xf32>, vector<32x1xf32>, vector<16x1xf32> -> vector<16x1xf32>
    %c1_105 = arith.constant 1 : index
    %c0_106 = arith.constant 0 : index
    %c0_107 = arith.constant 0 : index
    %158 = vector.load %arg15[%c1_105, %c0_106, %c0_107] : memref<3x1x1xf32, #tpu.memory_space<vmem>>, vector<1x1x1xf32>
    %159 = vector.shape_cast %158 : vector<1x1x1xf32> to vector<1x1xf32>
    %160 = vector.broadcast %159 : vector<1x1xf32> to vector<16x1xf32>
    %161 = arith.addf %157, %160 : vector<16x1xf32>
    %cst_108 = arith.constant 0.000000e+00 : f32
    %162 = vector.broadcast %cst_108 : f32 to vector<16x1xf32>
    %163 = arith.subf %162, %161 : vector<16x1xf32>
    %164 = math.exp %163 : vector<16x1xf32>
    %cst_109 = arith.constant 1.000000e+00 : f32
    %165 = vector.broadcast %cst_109 : f32 to vector<16x1xf32>
    %166 = arith.addf %165, %164 : vector<16x1xf32>
    %167 = tpu.reciprocal %166 : vector<16x1xf32> -> vector<16x1xf32>
    %168 = arith.subf %138, %94 : vector<16x32xf32>
    %169 = vector.broadcast %167 : vector<16x1xf32> to vector<16x32xf32>
    %170 = arith.mulf %169, %168 : vector<16x32xf32>
    %171 = arith.addf %94, %170 : vector<16x32xf32>
    %c2 = arith.constant 2 : index
    %c0_110 = arith.constant 0 : index
    %c0_111 = arith.constant 0 : index
    %172 = vector.load %arg4[%c2, %c0_110, %c0_111] : memref<3x32x40xf32, #tpu.memory_space<vmem>>, vector<1x32x40xf32>
    %173 = vector.shape_cast %172 : vector<1x32x40xf32> to vector<32x40xf32>
    %cst_112 = arith.constant dense<0.000000e+00> : vector<16x40xf32>
    %174 = tpu.matmul %171, %173, %cst_112 {dimension_numbers = #tpu.dot_dimension_numbers<[1], [0], [0], [1], [0, 0, 1, 1], [], []>} : vector<16x32xf32>, vector<32x40xf32>, vector<16x40xf32> -> vector<16x40xf32>
    %c2_113 = arith.constant 2 : index
    %c0_114 = arith.constant 0 : index
    %c0_115 = arith.constant 0 : index
    %175 = vector.load %arg5[%c2_113, %c0_114, %c0_115] : memref<3x1x40xf32, #tpu.memory_space<vmem>>, vector<1x1x40xf32>
    %176 = vector.shape_cast %175 : vector<1x1x40xf32> to vector<1x40xf32>
    %177 = vector.broadcast %176 : vector<1x40xf32> to vector<16x40xf32>
    %178 = arith.addf %174, %177 : vector<16x40xf32>
    %cst_116 = arith.constant dense<0.000000e+00> : vector<96x40xf32>
    %179 = tpu.matmul %6, %178, %cst_116 {dimension_numbers = #tpu.dot_dimension_numbers<[1], [0], [0], [1], [0, 0, 1, 1], [], []>} : vector<96x16xf32>, vector<16x40xf32>, vector<96x40xf32> -> vector<96x40xf32>
    %180 = vector.extract_strided_slice %179 {offsets = [48, 0], sizes = [48, 4], strides = [1, 1]} : vector<96x40xf32> to vector<48x4xf32>
    %181 = vector.extract_strided_slice %179 {offsets = [0, 4], sizes = [48, 4], strides = [1, 1]} : vector<96x40xf32> to vector<48x4xf32>
    %182 = vector.extract_strided_slice %16 {offsets = [0, 8], sizes = [48, 4], strides = [1, 1]} : vector<48x12xf32> to vector<48x4xf32>
    %183 = arith.addf %181, %182 : vector<48x4xf32>
    %184 = vector.extract_strided_slice %179 {offsets = [0, 8], sizes = [48, 32], strides = [1, 1]} : vector<96x40xf32> to vector<48x32xf32>
    %185 = arith.mulf %180, %183 : vector<48x4xf32>
    %cst_117 = arith.constant 0.000000e+00 : f32
    %186 = vector.broadcast %cst_117 : f32 to vector<48x4xf32>
    %187 = arith.cmpf oge, %185, %186 : vector<48x4xf32>
    %cst_118 = arith.constant 2.000000e-01 : f32
    %188 = vector.broadcast %cst_118 : f32 to vector<48x4xf32>
    %189 = arith.mulf %188, %185 : vector<48x4xf32>
    %190 = arith.select %187, %185, %189 : vector<48x4xi1>, vector<48x4xf32>
    %c2_119 = arith.constant 2 : index
    %c0_120 = arith.constant 0 : index
    %c0_121 = arith.constant 0 : index
    %191 = vector.load %arg7[%c2_119, %c0_120, %c0_121] : memref<3x4x32xf32, #tpu.memory_space<vmem>>, vector<1x4x32xf32>
    %192 = vector.shape_cast %191 : vector<1x4x32xf32> to vector<4x32xf32>
    %cst_122 = arith.constant dense<0.000000e+00> : vector<48x32xf32>
    %193 = tpu.matmul %190, %192, %cst_122 {dimension_numbers = #tpu.dot_dimension_numbers<[1], [0], [0], [1], [0, 0, 1, 1], [], []>} : vector<48x4xf32>, vector<4x32xf32>, vector<48x32xf32> -> vector<48x32xf32>
    %c2_123 = arith.constant 2 : index
    %c0_124 = arith.constant 0 : index
    %c0_125 = arith.constant 0 : index
    %194 = vector.load %arg8[%c2_123, %c0_124, %c0_125] : memref<3x1x32xf32, #tpu.memory_space<vmem>>, vector<1x1x32xf32>
    %195 = vector.shape_cast %194 : vector<1x1x32xf32> to vector<1x32xf32>
    %196 = vector.broadcast %195 : vector<1x32xf32> to vector<48x32xf32>
    %197 = arith.addf %193, %196 : vector<48x32xf32>
    %198 = math.exp %197 : vector<48x32xf32>
    %cst_126 = arith.constant dense<0.000000e+00> : vector<16x32xf32>
    %199 = tpu.matmul %13, %198, %cst_126 {dimension_numbers = #tpu.dot_dimension_numbers<[1], [0], [0], [1], [0, 0, 1, 1], [], []>} : vector<16x48xf32>, vector<48x32xf32>, vector<16x32xf32> -> vector<16x32xf32>
    %cst_127 = arith.constant 0.000000e+00 : f32
    %200 = vector.broadcast %cst_127 : f32 to vector<16x32xf32>
    %201 = arith.cmpf oeq, %199, %200 : vector<16x32xf32>
    %cst_128 = arith.constant 1.000000e+00 : f32
    %202 = vector.broadcast %cst_128 : f32 to vector<16x32xf32>
    %203 = arith.select %201, %202, %199 : vector<16x32xi1>, vector<16x32xf32>
    %204 = tpu.reciprocal %203 {approx = true} : vector<16x32xf32> -> vector<16x32xf32>
    %cst_129 = arith.constant dense<0.000000e+00> : vector<48x32xf32>
    %205 = tpu.matmul %7, %204, %cst_129 {dimension_numbers = #tpu.dot_dimension_numbers<[1], [0], [0], [1], [0, 0, 1, 1], [], []>} : vector<48x16xf32>, vector<16x32xf32>, vector<48x32xf32> -> vector<48x32xf32>
    %206 = arith.mulf %198, %205 : vector<48x32xf32>
    %207 = arith.mulf %206, %184 : vector<48x32xf32>
    %c2_130 = arith.constant 2 : index
    %c0_131 = arith.constant 0 : index
    %c0_132 = arith.constant 0 : index
    %208 = vector.load %arg9[%c2_130, %c0_131, %c0_132] : memref<3x32x32xf32, #tpu.memory_space<vmem>>, vector<1x32x32xf32>
    %209 = vector.shape_cast %208 : vector<1x32x32xf32> to vector<32x32xf32>
    %cst_133 = arith.constant dense<0.000000e+00> : vector<48x32xf32>
    %210 = tpu.matmul %207, %209, %cst_133 {dimension_numbers = #tpu.dot_dimension_numbers<[1], [0], [0], [1], [0, 0, 1, 1], [], []>} : vector<48x32xf32>, vector<32x32xf32>, vector<48x32xf32> -> vector<48x32xf32>
    %c2_134 = arith.constant 2 : index
    %c0_135 = arith.constant 0 : index
    %c0_136 = arith.constant 0 : index
    %211 = vector.load %arg10[%c2_134, %c0_135, %c0_136] : memref<3x1x32xf32, #tpu.memory_space<vmem>>, vector<1x1x32xf32>
    %212 = vector.shape_cast %211 : vector<1x1x32xf32> to vector<1x32xf32>
    %213 = vector.broadcast %212 : vector<1x32xf32> to vector<48x32xf32>
    %214 = arith.addf %210, %213 : vector<48x32xf32>
    %cst_137 = arith.constant dense<0.000000e+00> : vector<16x32xf32>
    %215 = tpu.matmul %13, %214, %cst_137 {dimension_numbers = #tpu.dot_dimension_numbers<[1], [0], [0], [1], [0, 0, 1, 1], [], []>} : vector<16x48xf32>, vector<48x32xf32>, vector<16x32xf32> -> vector<16x32xf32>
    %c2_138 = arith.constant 2 : index
    %c0_139 = arith.constant 0 : index
    %c0_140 = arith.constant 0 : index
    %216 = vector.load %arg11[%c2_138, %c0_139, %c0_140] : memref<3x32x32xf32, #tpu.memory_space<vmem>>, vector<1x32x32xf32>
    %217 = vector.shape_cast %216 : vector<1x32x32xf32> to vector<32x32xf32>
    %cst_141 = arith.constant dense<0.000000e+00> : vector<16x32xf32>
    %218 = tpu.matmul %171, %217, %cst_141 {dimension_numbers = #tpu.dot_dimension_numbers<[1], [0], [0], [1], [0, 0, 1, 1], [], []>} : vector<16x32xf32>, vector<32x32xf32>, vector<16x32xf32> -> vector<16x32xf32>
    %c2_142 = arith.constant 2 : index
    %c0_143 = arith.constant 0 : index
    %c0_144 = arith.constant 0 : index
    %219 = vector.load %arg12[%c2_142, %c0_143, %c0_144] : memref<3x32x32xf32, #tpu.memory_space<vmem>>, vector<1x32x32xf32>
    %220 = vector.shape_cast %219 : vector<1x32x32xf32> to vector<32x32xf32>
    %cst_145 = arith.constant dense<0.000000e+00> : vector<16x32xf32>
    %221 = tpu.matmul %215, %220, %cst_145 {dimension_numbers = #tpu.dot_dimension_numbers<[1], [0], [0], [1], [0, 0, 1, 1], [], []>} : vector<16x32xf32>, vector<32x32xf32>, vector<16x32xf32> -> vector<16x32xf32>
    %222 = arith.addf %218, %221 : vector<16x32xf32>
    %c2_146 = arith.constant 2 : index
    %c0_147 = arith.constant 0 : index
    %c0_148 = arith.constant 0 : index
    %223 = vector.load %arg13[%c2_146, %c0_147, %c0_148] : memref<3x1x32xf32, #tpu.memory_space<vmem>>, vector<1x1x32xf32>
    %224 = vector.shape_cast %223 : vector<1x1x32xf32> to vector<1x32xf32>
    %225 = vector.broadcast %224 : vector<1x32xf32> to vector<16x32xf32>
    %226 = arith.addf %222, %225 : vector<16x32xf32>
    %cst_149 = arith.constant 0.000000e+00 : f32
    %227 = vector.broadcast %cst_149 : f32 to vector<16x32xf32>
    %228 = arith.cmpf oge, %226, %227 : vector<16x32xf32>
    %cst_150 = arith.constant 2.000000e-01 : f32
    %229 = vector.broadcast %cst_150 : f32 to vector<16x32xf32>
    %230 = arith.mulf %229, %226 : vector<16x32xf32>
    %231 = arith.select %228, %226, %230 : vector<16x32xi1>, vector<16x32xf32>
    %c2_151 = arith.constant 2 : index
    %c0_152 = arith.constant 0 : index
    %c0_153 = arith.constant 0 : index
    %232 = vector.load %arg14[%c2_151, %c0_152, %c0_153] : memref<3x32x1xf32, #tpu.memory_space<vmem>>, vector<1x32x1xf32>
    %233 = vector.shape_cast %232 : vector<1x32x1xf32> to vector<32x1xf32>
    %cst_154 = arith.constant dense<0.000000e+00> : vector<16x1xf32>
    %234 = tpu.matmul %231, %233, %cst_154 {dimension_numbers = #tpu.dot_dimension_numbers<[1], [0], [0], [1], [0, 0, 1, 1], [], []>} : vector<16x32xf32>, vector<32x1xf32>, vector<16x1xf32> -> vector<16x1xf32>
    %c2_155 = arith.constant 2 : index
    %c0_156 = arith.constant 0 : index
    %c0_157 = arith.constant 0 : index
    %235 = vector.load %arg15[%c2_155, %c0_156, %c0_157] : memref<3x1x1xf32, #tpu.memory_space<vmem>>, vector<1x1x1xf32>
    %236 = vector.shape_cast %235 : vector<1x1x1xf32> to vector<1x1xf32>
    %237 = vector.broadcast %236 : vector<1x1xf32> to vector<16x1xf32>
    %238 = arith.addf %234, %237 : vector<16x1xf32>
    %cst_158 = arith.constant 0.000000e+00 : f32
    %239 = vector.broadcast %cst_158 : f32 to vector<16x1xf32>
    %240 = arith.subf %239, %238 : vector<16x1xf32>
    %241 = math.exp %240 : vector<16x1xf32>
    %cst_159 = arith.constant 1.000000e+00 : f32
    %242 = vector.broadcast %cst_159 : f32 to vector<16x1xf32>
    %243 = arith.addf %242, %241 : vector<16x1xf32>
    %244 = tpu.reciprocal %243 : vector<16x1xf32> -> vector<16x1xf32>
    %245 = arith.subf %215, %171 : vector<16x32xf32>
    %246 = vector.broadcast %244 : vector<16x1xf32> to vector<16x32xf32>
    %247 = arith.mulf %246, %245 : vector<16x32xf32>
    %248 = arith.addf %171, %247 : vector<16x32xf32>
    %c0_160 = arith.constant 0 : index
    %c0_161 = arith.constant 0 : index
    %249 = vector.load %arg16[%c0_160, %c0_161] : memref<16x32xf32, #tpu.memory_space<vmem>>, vector<16x32xf32>
    tpu.vector_store %arg16[%c0_160, %c0_161], %248 {strides = array<i32>} : memref<16x32xf32, #tpu.memory_space<vmem>>, vector<16x32xf32>,
    return
  }
}

</mosaic_0001>

<llo_original>
// kernel: gnn_forward.1
$region0: #{gnn_forward.1}
  #allocation0 [shape = 'u32[]', space=smem, size = 0x4, offset = 0x4, fixed_abs, tag = 'smem constant byte address 0x4 - core index']
  #allocation1 [shape = 'u32[144,128]{1,0:T(1,128)}', space=vmem, size = 0x12000, scoped, tag = 'internal scratch']
  %s0 = inlined_call_operand.hbm [shape: f32[16,32], index: 0, kind: input, shape index: {}, may-alias: {0,16}]
  %s1 = inlined_call_operand.vmem [shape: s32[96,1], index: 1, kind: input, shape index: {}]
  %s2 = inlined_call_operand.vmem [shape: s32[1,96], index: 2, kind: input, shape index: {}]
  %s3 = inlined_call_operand.vmem [shape: f32[48,32], index: 3, kind: input, shape index: {}]
  %s4 = inlined_call_operand.vmem [shape: f32[3,32,40], index: 4, kind: input, shape index: {}]
  %s5 = inlined_call_operand.vmem [shape: f32[3,1,40], index: 5, kind: input, shape index: {}]
  %s6 = inlined_call_operand.vmem [shape: f32[32,12], index: 6, kind: input, shape index: {}]
  %s7 = inlined_call_operand.hbm [shape: f32[3,4,32], index: 7, kind: input, shape index: {}]
  %s8 = inlined_call_operand.vmem [shape: f32[3,1,32], index: 8, kind: input, shape index: {}]
  %s9 = inlined_call_operand.vmem [shape: f32[3,32,32], index: 9, kind: input, shape index: {}]
  %s10 = inlined_call_operand.hbm [shape: f32[3,1,32], index: 10, kind: input, shape index: {}]
  %s11 = inlined_call_operand.vmem [shape: f32[3,32,32], index: 11, kind: input, shape index: {}]
  %s12 = inlined_call_operand.hbm [shape: f32[3,32,32], index: 12, kind: input, shape index: {}]
  %s13 = inlined_call_operand.hbm [shape: f32[3,1,32], index: 13, kind: input, shape index: {}]
  %s14 = inlined_call_operand.vmem [shape: f32[3,32,1], index: 14, kind: input, shape index: {}]
  %s15 = inlined_call_operand.vmem [shape: f32[3,1,1], index: 15, kind: input, shape index: {}]
  %s16 = inlined_call_operand.hbm [shape: f32[16,32], index: 16, kind: output, shape index: {}, may-alias: {0,16}]
  %s17 = sld [smem:[#allocation0]]
  $region94: #{gnn_forward.1} parent=0
    _
  %s19 = ssub.s32 1, %s17
  %s20 = scalar_select 0, %s19, %s17
  $region1: #{gnn_forward.1} parent=0
    #allocation2 [shape = 'u8[8192]{0}', space=vmem, size = 0x2000, scoped, tag = 'input window, operand 0, single buffered']
    #allocation3 [shape = 's32[1]{0}', space=sflag, size = 0x4, scoped, tag = 'scoped memory for gnn_forward.1']
    #allocation4 [shape = 's32[1]{0}', space=sflag, size = 0x4, scoped, tag = 'scoped memory for gnn_forward.1']
    #allocation5 [shape = 'u8[6144]{0}', space=vmem, size = 0x1800, scoped, tag = 'input window, operand 7, single buffered']
    #allocation6 [shape = 's32[1]{0}', space=sflag, size = 0x4, scoped, tag = 'scoped memory for gnn_forward.1']
    #allocation7 [shape = 'u8[1536]{0}', space=vmem, size = 0x800, scoped, tag = 'input window, operand 10, single buffered']
    #allocation8 [shape = 'u8[49152]{0}', space=vmem, size = 0xc000, scoped, tag = 'input window, operand 12, single buffered']
    #allocation9 [shape = 's32[1]{0}', space=sflag, size = 0x4, scoped, tag = 'scoped memory for gnn_forward.1']
    #allocation10 [shape = 'u8[1536]{0}', space=vmem, size = 0x800, scoped, tag = 'input window, operand 13, single buffered']
    #allocation11 [shape = 'u8[8192]{0}', space=vmem, size = 0x2000, scoped, tag = 'output window, operand 0, single buffered']
    %21 = vsyncpa [#allocation3], 0
    %22 = vsyncpa [#allocation6], 0
    %23 = vsyncpa [#allocation9], 0
    %24 = vsyncpa [#allocation4], 0
    // Predicated region
    $region2: #{gnn_forward.1} parent=1 // pred_check
      _
    $region3: #{gnn_forward.1} parent=1 // pred_check_branch
      %26 = sbr.rel (0) target = $region5
    $region4: #{gnn_forward.1} parent=1 // pred_region
      %s28 = ssub.s32 256, 256
      %29 = vsyncadd [#allocation3], %s28
      %s30 = sshll.u32 [#allocation2], 4
      %s31 = int_to_ptr.vmem [resolvable:$true] %s30
      %36 = dma.hbm_to_vmem [thread:$0]  %s0, 256, %s31, [#allocation3], 128, 128, 8
    $region5: #{gnn_forward.1} parent=1 // pred_fallthru
      _
    // Predicated region
    $region6: #{gnn_forward.1} parent=1 // pred_check
      _
    $region7: #{gnn_forward.1} parent=1 // pred_check_branch
      %38 = sbr.rel (0) target = $region9
    $region8: #{gnn_forward.1} parent=1 // pred_region
      _
    $region9: #{gnn_forward.1} parent=1 // pred_fallthru
      _
    // Predicated region
    $region10: #{gnn_forward.1} parent=1 // pred_check
      _
    $region11: #{gnn_forward.1} parent=1 // pred_check_branch
      %40 = sbr.rel (0) target = $region13
    $region12: #{gnn_forward.1} parent=1 // pred_region
      _
    $region13: #{gnn_forward.1} parent=1 // pred_fallthru
      _
    // Predicated region
    $region14: #{gnn_forward.1} parent=1 // pred_check
      _
    $region15: #{gnn_forward.1} parent=1 // pred_check_branch
      %42 = sbr.rel (0) target = $region17
    $region16: #{gnn_forward.1} parent=1 // pred_region
      _
    $region17: #{gnn_forward.1} parent=1 // pred_fallthru
      _
    // Predicated region
    $region18: #{gnn_forward.1} parent=1 // pred_check
      _
    $region19: #{gnn_forward.1} parent=1 // pred_check_branch
      %44 = sbr.rel (0) target = $region21
    $region20: #{gnn_forward.1} parent=1 // pred_region
      _
    $region21: #{gnn_forward.1} parent=1 // pred_fallthru
      _
    // Predicated region
    $region22: #{gnn_forward.1} parent=1 // pred_check
      _
    $region23: #{gnn_forward.1} parent=1 // pred_check_branch
      %46 = sbr.rel (0) target = $region25
    $region24: #{gnn_forward.1} parent=1 // pred_region
      _
    $region25: #{gnn_forward.1} parent=1 // pred_fallthru
      _
    // Predicated region
    $region26: #{gnn_forward.1} parent=1 // pred_check
      _
    $region27: #{gnn_forward.1} parent=1 // pred_check_branch
      %48 = sbr.rel (0) target = $region29
    $region28: #{gnn_forward.1} parent=1 // pred_region
      _
    $region29: #{gnn_forward.1} parent=1 // pred_fallthru
      _
    // Predicated region
    $region30: #{gnn_forward.1} parent=1 // pred_check
      _
    $region31: #{gnn_forward.1} parent=1 // pred_check_branch
      %50 = sbr.rel (0) target = $region33
    $region32: #{gnn_forward.1} parent=1 // pred_region
      %s52 = ssub.s32 192, 192
      %53 = vsyncadd [#allocation6], %s52
      %s54 = sshll.u32 [#allocation5], 4
      %s55 = int_to_ptr.vmem [resolvable:$true] %s54
      %60 = dma.hbm_to_vmem [thread:$0]  %s7, 192, %s55, [#allocation6], 64, 64, 4
    $region33: #{gnn_forward.1} parent=1 // pred_fallthru
      _
    // Predicated region
    $region34: #{gnn_forward.1} parent=1 // pred_check
      _
    $region35: #{gnn_forward.1} parent=1 // pred_check_branch
      %62 = sbr.rel (0) target = $region37
    $region36: #{gnn_forward.1} parent=1 // pred_region
      _
    $region37: #{gnn_forward.1} parent=1 // pred_fallthru
      _
    // Predicated region
    $region38: #{gnn_forward.1} parent=1 // pred_check
      _
    $region39: #{gnn_forward.1} parent=1 // pred_check_branch
      %64 = sbr.rel (0) target = $region41
    $region40: #{gnn_forward.1} parent=1 // pred_region
      _
    $region41: #{gnn_forward.1} parent=1 // pred_fallthru
      _
    // Predicated region
    $region42: #{gnn_forward.1} parent=1 // pred_check
      _
    $region43: #{gnn_forward.1} parent=1 // pred_check_branch
      %66 = sbr.rel (0) target = $region45
    $region44: #{gnn_forward.1} parent=1 // pred_region
      %s68 = ssub.s32 48, 48
      %69 = vsyncadd [#allocation6], %s68
      %s70 = sshll.u32 [#allocation7], 4
      %s71 = int_to_ptr.vmem [resolvable:$true] %s70
      %76 = dma.hbm_to_vmem [thread:$0]  %s10, 48, %s71, [#allocation6], 16, 16, 1
    $region45: #{gnn_forward.1} parent=1 // pred_fallthru
      _
    // Predicated region
    $region46: #{gnn_forward.1} parent=1 // pred_check
      _
    $region47: #{gnn_forward.1} parent=1 // pred_check_branch
      %78 = sbr.rel (0) target = $region49
    $region48: #{gnn_forward.1} parent=1 // pred_region
      _
    $region49: #{gnn_forward.1} parent=1 // pred_fallthru
      _
    // Predicated region
    $region50: #{gnn_forward.1} parent=1 // pred_check
      _
    $region51: #{gnn_forward.1} parent=1 // pred_check_branch
      %80 = sbr.rel (0) target = $region53
    $region52: #{gnn_forward.1} parent=1 // pred_region
      %s82 = ssub.s32 1536, 1536
      %83 = vsyncadd [#allocation9], %s82
      %s84 = sshll.u32 [#allocation8], 4
      %s85 = int_to_ptr.vmem [resolvable:$true] %s84
      %90 = dma.hbm_to_vmem [thread:$0]  %s12, 1536, %s85, [#allocation9], 128, 128, 8
    $region53: #{gnn_forward.1} parent=1 // pred_fallthru
      _
    // Predicated region
    $region54: #{gnn_forward.1} parent=1 // pred_check
      _
    $region55: #{gnn_forward.1} parent=1 // pred_check_branch
      %92 = sbr.rel (0) target = $region57
    $region56: #{gnn_forward.1} parent=1 // pred_region
      %s94 = ssub.s32 48, 48
      %95 = vsyncadd [#allocation9], %s94
      %s96 = sshll.u32 [#allocation10], 4
      %s97 = int_to_ptr.vmem [resolvable:$true] %s96
      %102 = dma.hbm_to_vmem [thread:$0]  %s13, 48, %s97, [#allocation9], 16, 16, 1
    $region57: #{gnn_forward.1} parent=1 // pred_fallthru
      _
    // Predicated region
    $region58: #{gnn_forward.1} parent=1 // pred_check
      _
    $region59: #{gnn_forward.1} parent=1 // pred_check_branch
      %104 = sbr.rel (0) target = $region61
    $region60: #{gnn_forward.1} parent=1 // pred_region
      _
    $region61: #{gnn_forward.1} parent=1 // pred_fallthru
      _
    // Predicated region
    $region62: #{gnn_forward.1} parent=1 // pred_check
      _
    $region63: #{gnn_forward.1} parent=1 // pred_check_branch
      %106 = sbr.rel (0) target = $region65
    $region64: #{gnn_forward.1} parent=1 // pred_region
      _
    $region65: #{gnn_forward.1} parent=1 // pred_fallthru
      _
    // Predicated region
    $region66: #{gnn_forward.1} parent=1 // pred_check
      _
    $region67: #{gnn_forward.1} parent=1 // pred_check_branch
      %108 = sbr.rel (0) target = $region69
    $region68: #{gnn_forward.1} parent=1 // pred_region
      %109 = dma.done [#allocation3], 256
    $region69: #{gnn_forward.1} parent=1 // pred_fallthru
      _
    // Predicated region
    $region70: #{gnn_forward.1} parent=1 // pred_check
      _
    $region71: #{gnn_forward.1} parent=1 // pred_check_branch
      %111 = sbr.rel (0) target = $region73
    $region72: #{gnn_forward.1} parent=1 // pred_region
      %112 = dma.done [#allocation6], 192
    $region73: #{gnn_forward.1} parent=1 // pred_fallthru
      _
    // Predicated region
    $region74: #{gnn_forward.1} parent=1 // pred_check
      _
    $region75: #{gnn_forward.1} parent=1 // pred_check_branch
      %114 = sbr.rel (0) target = $region77
    $region76: #{gnn_forward.1} parent=1 // pred_region
      %115 = dma.done [#allocation6], 48
    $region77: #{gnn_forward.1} parent=1 // pred_fallthru
      _
    // Predicated region
    $region78: #{gnn_forward.1} parent=1 // pred_check
      _
    $region79: #{gnn_forward.1} parent=1 // pred_check_branch
      %117 = sbr.rel (0) target = $region81
    $region80: #{gnn_forward.1} parent=1 // pred_region
      %118 = dma.done [#allocation9], 1536
    $region81: #{gnn_forward.1} parent=1 // pred_fallthru
      _
    // Predicated region
    $region82: #{gnn_forward.1} parent=1 // pred_check
      _
    $region83: #{gnn_forward.1} parent=1 // pred_check_branch
      %120 = sbr.rel (0) target = $region85
    $region84: #{gnn_forward.1} parent=1 // pred_region
      %121 = dma.done [#allocation9], 48
    $region85: #{gnn_forward.1} parent=1 // pred_fallthru
      _
    %v122 = vld [vmem:[%s1] sm:$0xff]
    %v123 = vld [vmem:[%s1 + $0x8] sm:$0xff]
    %v124 = vld [vmem:[%s1 + $0x10] sm:$0xff]
    %v125 = vld [vmem:[%s1 + $0x18] sm:$0xff]
    %v126 = vld [vmem:[%s1 + $0x20] sm:$0xff]
    %v127 = vld [vmem:[%s1 + $0x28] sm:$0xff]
    %v128 = vld [vmem:[%s1 + $0x30] sm:$0xff]
    %v129 = vld [vmem:[%s1 + $0x38] sm:$0xff]
    %v130 = vld [vmem:[%s1 + $0x40] sm:$0xff]
    %v131 = vld [vmem:[%s1 + $0x48] sm:$0xff]
    %v132 = vld [vmem:[%s1 + $0x50] sm:$0xff]
    %v133 = vld [vmem:[%s1 + $0x58] sm:$0xff]
    %v134 = vld [vmem:[%s2] sm:$0x1]
    %v135 = vlaneseq
    %v136 = vand.u32 %v135, 127
    %137 = vset.pattern.permute.xlu0 0
    %138 = vperm.xlu0 %137, %v122
    %v139 = vpop.permute.xlu0 %138
    %140 = vset.pattern.permute.xlu0 0
    %141 = vperm.xlu0 %140, %v123
    %v142 = vpop.permute.xlu0 %141
    %143 = vset.pattern.permute.xlu0 0
    %144 = vperm.xlu0 %143, %v124
    %v145 = vpop.permute.xlu0 %144
    %146 = vset.pattern.permute.xlu0 0
    %147 = vperm.xlu0 %146, %v125
    %v148 = vpop.permute.xlu0 %147
    %149 = vset.pattern.permute.xlu0 0
    %150 = vperm.xlu0 %149, %v126
    %v151 = vpop.permute.xlu0 %150
    %152 = vset.pattern.permute.xlu0 0
    %153 = vperm.xlu0 %152, %v127
    %v154 = vpop.permute.xlu0 %153
    %155 = vset.pattern.permute.xlu0 0
    %156 = vperm.xlu0 %155, %v128
    %v157 = vpop.permute.xlu0 %156
    %158 = vset.pattern.permute.xlu0 0
    %159 = vperm.xlu0 %158, %v129
    %v160 = vpop.permute.xlu0 %159
    %161 = vset.pattern.permute.xlu0 0
    %162 = vperm.xlu0 %161, %v130
    %v163 = vpop.permute.xlu0 %162
    %164 = vset.pattern.permute.xlu0 0
    %165 = vperm.xlu0 %164, %v131
    %v166 = vpop.permute.xlu0 %165
    %167 = vset.pattern.permute.xlu0 0
    %168 = vperm.xlu0 %167, %v132
    %v169 = vpop.permute.xlu0 %168
    %170 = vset.pattern.permute.xlu0 0
    %171 = vperm.xlu0 %170, %v133
    %v172 = vpop.permute.xlu0 %171
    %vm173 = vcmp.eq.s32.totalorder %v139, %v136
    %vm174 = vcmp.eq.s32.totalorder %v142, %v136
    %vm175 = vcmp.eq.s32.totalorder %v145, %v136
    %vm176 = vcmp.eq.s32.totalorder %v148, %v136
    %vm177 = vcmp.eq.s32.totalorder %v151, %v136
    %vm178 = vcmp.eq.s32.totalorder %v154, %v136
    %vm179 = vcmp.eq.s32.totalorder %v157, %v136
    %vm180 = vcmp.eq.s32.totalorder %v160, %v136
    %vm181 = vcmp.eq.s32.totalorder %v163, %v136
    %vm182 = vcmp.eq.s32.totalorder %v166, %v136
    %vm183 = vcmp.eq.s32.totalorder %v169, %v136
    %vm184 = vcmp.eq.s32.totalorder %v172, %v136
    %v185 = vsel %vm173, 1, 0
    %v186 = vsel %vm174, 1, 0
    %v187 = vsel %vm175, 1, 0
    %v188 = vsel %vm176, 1, 0
    %v189 = vsel %vm177, 1, 0
    %v190 = vsel %vm178, 1, 0
    %v191 = vsel %vm179, 1, 0
    %v192 = vsel %vm180, 1, 0
    %v193 = vsel %vm181, 1, 0
    %v194 = vsel %vm182, 1, 0
    %v195 = vsel %vm183, 1, 0
    %v196 = vsel %vm184, 1, 0
    %v197 = vcvt.s32.f32 %v185
    %v198 = vcvt.s32.f32 %v186
    %v199 = vcvt.s32.f32 %v187
    %v200 = vcvt.s32.f32 %v188
    %v201 = vcvt.s32.f32 %v189
    %v202 = vcvt.s32.f32 %v190
    %v203 = vcvt.s32.f32 %v191
    %v204 = vcvt.s32.f32 %v192
    %v205 = vcvt.s32.f32 %v193
    %v206 = vcvt.s32.f32 %v194
    %v207 = vcvt.s32.f32 %v195
    %v208 = vcvt.s32.f32 %v196
    %v209 = vlaneseq
    %v210 = vshrl.u32 %v209, 7
    %v211 = vadd.s32 %v210, 8
    %v212 = vlaneseq
    %v213 = vshrl.u32 %v212, 7
    %v214 = vsub.s32 0, %v213
    %v215 = vrot.slane %v134, %v214
    %vm216 = vcmp.eq.s32.totalorder %v210, %v215
    %vm217 = vcmp.eq.s32.totalorder %v211, %v215
    %v218 = vsel %vm216, 1, 0
    %v219 = vsel %vm217, 1, 0
    %v220 = vcvt.s32.f32 %v218
    %v221 = vcvt.s32.f32 %v219
    %v222 = vld [vmem:[%s3] sm:$0xff]
    %v223 = vld [vmem:[%s3 + $0x8] sm:$0xff]
    %v224 = vld [vmem:[%s3 + $0x10] sm:$0xff]
    %v225 = vld [vmem:[%s3 + $0x18] sm:$0xff]
    %v226 = vld [vmem:[%s3 + $0x20] sm:$0xff]
    %v227 = vld [vmem:[%s3 + $0x28] sm:$0xff]
    %v228 = vld [vmem:[%s6] sm:$0xff]
    %v229 = vld [vmem:[%s6 + $0x8] sm:$0xff]
    %v230 = vld [vmem:[%s6 + $0x10] sm:$0xff]
    %v231 = vld [vmem:[%s6 + $0x18] sm:$0xff]
    %vm232 = vcmask 261120
    %v234 = vsel %vm232, %v222, 0
    %v237 = vsel %vm232, %v223, 0
    %v240 = vsel %vm232, %v224, 0
    %v243 = vsel %vm232, %v225, 0
    %v246 = vsel %vm232, %v226, 0
    %v249 = vsel %vm232, %v227, 0
    %251 = vmatprep.subr.mxu0 0.0
    %252 = vmatpush1.msra.mxu0 0.0
    %253 = vmatprep.subr.mxu0 0.0
    %254 = vmatpush1.msra.mxu0 0.0
    %255 = vmatprep.subr.mxu0 0.0
    %256 = vmatpush1.msra.mxu0 0.0
    %257 = vmatprep.subr.mxu0 0.0
    %258 = vmatpush1.msra.mxu0 0.0
    %259 = vmatprep.subr.mxu0 0.0
    %260 = vmatpush1.msra.mxu0 0.0
    %261 = vmatprep.subr.mxu0 0.0
    %262 = vmatpush1.msra.mxu0 0.0
    %263 = vmatprep.subr.mxu0 0.0
    %264 = vmatpush1.msra.mxu0 0.0
    %265 = vmatprep.subr.mxu0 0.0
    %266 = vmatpush1.msra.mxu0 0.0
    %267 = vmatprep.subr.mxu0 0.0
    %268 = vmatpush1.msra.mxu0 0.0
    %269 = vmatprep.subr.mxu0 0.0
    %270 = vmatpush1.msra.mxu0 0.0
    %271 = vmatprep.subr.mxu0 0.0
    %272 = vmatpush1.msra.mxu0 0.0
    %273 = vmatprep.subr.mxu0 0.0
    %274 = vmatpush1.msra.mxu0 0.0
    %275 = vmatprep.subr.mxu0 0.0
    %276 = vmatpush1.msra.mxu0 %v231
    %277 = vmatprep.subr.mxu0 0.0
    %278 = vmatpush1.msra.mxu0 %v230
    %279 = vmatprep.subr.mxu0 0.0
    %280 = vmatpush1.msra.mxu0 %v229
    %281 = vmatprep.subr.mxu0 0.0
    %282 = vmatpush1.msra.mxu0 %v228
    %283 = vmatprep.subr.mxu0 0.0
    %284 = vmatpush2.msra.mxu0 0.0
    %285 = vmatprep.subr.mxu0 0.0
    %286 = vmatpush2.msra.mxu0 0.0
    %287 = vmatprep.subr.mxu0 0.0
    %288 = vmatpush2.msra.mxu0 0.0
    %289 = vmatprep.subr.mxu0 0.0
    %290 = vmatpush2.msra.mxu0 0.0
    %291 = vmatprep.subr.mxu0 0.0
    %292 = vmatpush2.msra.mxu0 0.0
    %293 = vmatprep.subr.mxu0 0.0
    %294 = vmatpush2.msra.mxu0 0.0
    %295 = vmatprep.subr.mxu0 0.0
    %296 = vmatpush2.msra.mxu0 0.0
    %297 = vmatprep.subr.mxu0 0.0
    %298 = vmatpush2.msra.mxu0 0.0
    %299 = vmatprep.subr.mxu0 0.0
    %300 = vmatpush2.msra.mxu0 0.0
    %301 = vmatprep.subr.mxu0 0.0
    %302 = vmatpush2.msra.mxu0 0.0
    %303 = vmatprep.subr.mxu0 0.0
    %304 = vmatpush2.msra.mxu0 0.0
    %305 = vmatprep.subr.mxu0 0.0
    %306 = vmatpush2.msra.mxu0 0.0
    %307 = vmatprep.subr.mxu0 0.0
    %308 = vmatpush2.msra.mxu0 0.0
    %309 = vmatprep.subr.mxu0 0.0
    %310 = vmatpush2.msra.mxu0 0.0
    %311 = vmatprep.subr.mxu0 0.0
    %312 = vmatpush2.msra.mxu0 0.0
    %313 = vmatprep.subr.mxu0 0.0
    %314 = vmatpush2.msra.mxu0 0.0
    %315 = vmatprep.mubr.f32.mxu0 0.0
    %316 = vmatmul.mubr.f32.gmra.mxu0 %v234
    %v317 = vpop.f32.mrf.mxu0
    %v318 = vadd.f32 0.0, %v317
    %v319 = vpop.f32.mrf.mxu0
    %320 = vmatprep.mubr.f32.mxu0 0.0
    %321 = vmatmul.mubr.f32.gmra.mxu0 %v237
    %v322 = vpop.f32.mrf.mxu0
    %v323 = vadd.f32 0.0, %v322
    %v324 = vpop.f32.mrf.mxu0
    %325 = vmatprep.mubr.f32.mxu0 0.0
    %326 = vmatmul.mubr.f32.gmra.mxu0 %v240
    %v327 = vpop.f32.mrf.mxu0
    %v328 = vadd.f32 0.0, %v327
    %v329 = vpop.f32.mrf.mxu0
    %330 = vmatprep.mubr.f32.mxu0 0.0
    %331 = vmatmul.mubr.f32.gmra.mxu0 %v243
    %v332 = vpop.f32.mrf.mxu0
    %v333 = vadd.f32 0.0, %v332
    %v334 = vpop.f32.mrf.mxu0
    %335 = vmatprep.mubr.f32.mxu0 0.0
    %336 = vmatmul.mubr.f32.gmra.mxu0 %v246
    %v337 = vpop.f32.mrf.mxu0
    %v338 = vadd.f32 0.0, %v337
    %v339 = vpop.f32.mrf.mxu0
    %340 = vmatprep.mubr.f32.mxu0 0.0
    %341 = vmatmul.mubr.f32.gmra.mxu0 %v249
    %v342 = vpop.f32.mrf.mxu0
    %v343 = vadd.f32 0.0, %v342
    %v344 = vpop.f32.mrf.mxu0
    %345 = vdwg.mxu0
    %v346 = vld [vmem:[#allocation2] sm:$0xff]
    %v347 = vld [vmem:[#allocation2 + $0x8] sm:$0xff]
    %v348 = vld [vmem:[%s4] sm:$0xff]
    %v349 = vld [vmem:[%s4 + $0x8] sm:$0xff]
    %v350 = vld [vmem:[%s4 + $0x10] sm:$0xff]
    %v351 = vld [vmem:[%s4 + $0x18] sm:$0xff]
    %v352 = vld [vmem:[%s5] sm:$0x1]
    %v354 = vlaneseq
    %v355 = vshrl.u32 %v354, 7
    %v356 = vsub.s32 0, %v355
    %v357 = vrot.slane %v352, %v356
    %v360 = vsel %vm232, %v346, 0
    %v363 = vsel %vm232, %v347, 0
    %365 = vmatprep.subr.mxu0 0.0
    %366 = vmatpush1.msra.mxu0 0.0
    %367 = vmatprep.subr.mxu0 0.0
    %368 = vmatpush1.msra.mxu0 0.0
    %369 = vmatprep.subr.mxu0 0.0
    %370 = vmatpush1.msra.mxu0 0.0
    %371 = vmatprep.subr.mxu0 0.0
    %372 = vmatpush1.msra.mxu0 0.0
    %373 = vmatprep.subr.mxu0 0.0
    %374 = vmatpush1.msra.mxu0 0.0
    %375 = vmatprep.subr.mxu0 0.0
    %376 = vmatpush1.msra.mxu0 0.0
    %377 = vmatprep.subr.mxu0 0.0
    %378 = vmatpush1.msra.mxu0 0.0
    %379 = vmatprep.subr.mxu0 0.0
    %380 = vmatpush1.msra.mxu0 0.0
    %381 = vmatprep.subr.mxu0 0.0
    %382 = vmatpush1.msra.mxu0 0.0
    %383 = vmatprep.subr.mxu0 0.0
    %384 = vmatpush1.msra.mxu0 0.0
    %385 = vmatprep.subr.mxu0 0.0
    %386 = vmatpush1.msra.mxu0 0.0
    %387 = vmatprep.subr.mxu0 0.0
    %388 = vmatpush1.msra.mxu0 0.0
    %389 = vmatprep.subr.mxu0 0.0
    %390 = vmatpush1.msra.mxu0 %v351
    %391 = vmatprep.subr.mxu0 0.0
    %392 = vmatpush1.msra.mxu0 %v350
    %393 = vmatprep.subr.mxu0 0.0
    %394 = vmatpush1.msra.mxu0 %v349
    %395 = vmatprep.subr.mxu0 0.0
    %396 = vmatpush1.msra.mxu0 %v348
    %397 = vmatprep.subr.mxu0 0.0
    %398 = vmatpush2.msra.mxu0 0.0
    %399 = vmatprep.subr.mxu0 0.0
    %400 = vmatpush2.msra.mxu0 0.0
    %401 = vmatprep.subr.mxu0 0.0
    %402 = vmatpush2.msra.mxu0 0.0
    %403 = vmatprep.subr.mxu0 0.0
    %404 = vmatpush2.msra.mxu0 0.0
    %405 = vmatprep.subr.mxu0 0.0
    %406 = vmatpush2.msra.mxu0 0.0
    %407 = vmatprep.subr.mxu0 0.0
    %408 = vmatpush2.msra.mxu0 0.0
    %409 = vmatprep.subr.mxu0 0.0
    %410 = vmatpush2.msra.mxu0 0.0
    %411 = vmatprep.subr.mxu0 0.0
    %412 = vmatpush2.msra.mxu0 0.0
    %413 = vmatprep.subr.mxu0 0.0
    %414 = vmatpush2.msra.mxu0 0.0
    %415 = vmatprep.subr.mxu0 0.0
    %416 = vmatpush2.msra.mxu0 0.0
    %417 = vmatprep.subr.mxu0 0.0
    %418 = vmatpush2.msra.mxu0 0.0
    %419 = vmatprep.subr.mxu0 0.0
    %420 = vmatpush2.msra.mxu0 0.0
    %421 = vmatprep.subr.mxu0 0.0
    %422 = vmatpush2.msra.mxu0 0.0
    %423 = vmatprep.subr.mxu0 0.0
    %424 = vmatpush2.msra.mxu0 0.0
    %425 = vmatprep.subr.mxu0 0.0
    %426 = vmatpush2.msra.mxu0 0.0
    %427 = vmatprep.subr.mxu0 0.0
    %428 = vmatpush2.msra.mxu0 0.0
    %429 = vmatprep.mubr.f32.mxu0 0.0
    %430 = vmatmul.mubr.f32.gmra.mxu0 %v360
    %v431 = vpop.f32.mrf.mxu0
    %v432 = vadd.f32 %v357, %v431
    %v433 = vpop.f32.mrf.mxu0
    %434 = vmatprep.mubr.f32.mxu0 0.0
    %435 = vmatmul.mubr.f32.gmra.mxu0 %v363
    %v436 = vpop.f32.mrf.mxu0
    %v437 = vadd.f32 %v357, %v436
    %v438 = vpop.f32.mrf.mxu0
    %439 = vdwg.mxu0
    %vm440 = vcmask 130048
    %v442 = vsel %vm440, %v197, 0
    %v445 = vsel %vm440, %v198, 0
    %v448 = vsel %vm440, %v199, 0
    %v451 = vsel %vm440, %v200, 0
    %v454 = vsel %vm440, %v201, 0
    %v457 = vsel %vm440, %v202, 0
    %v460 = vsel %vm440, %v203, 0
    %v463 = vsel %vm440, %v204, 0
    %v466 = vsel %vm440, %v205, 0
    %v469 = vsel %vm440, %v206, 0
    %v472 = vsel %vm440, %v207, 0
    %v475 = vsel %vm440, %v208, 0
    %477 = vmatprep.subr.mxu0 0.0
    %478 = vmatpush1.msra.mxu0 0.0
    %479 = vmatprep.subr.mxu0 0.0
    %480 = vmatpush1.msra.mxu0 0.0
    %481 = vmatprep.subr.mxu0 0.0
    %482 = vmatpush1.msra.mxu0 0.0
    %483 = vmatprep.subr.mxu0 0.0
    %484 = vmatpush1.msra.mxu0 0.0
    %485 = vmatprep.subr.mxu0 0.0
    %486 = vmatpush1.msra.mxu0 0.0
    %487 = vmatprep.subr.mxu0 0.0
    %488 = vmatpush1.msra.mxu0 0.0
    %489 = vmatprep.subr.mxu0 0.0
    %490 = vmatpush1.msra.mxu0 0.0
    %491 = vmatprep.subr.mxu0 0.0
    %492 = vmatpush1.msra.mxu0 0.0
    %493 = vmatprep.subr.mxu0 0.0
    %494 = vmatpush1.msra.mxu0 0.0
    %495 = vmatprep.subr.mxu0 0.0
    %496 = vmatpush1.msra.mxu0 0.0
    %497 = vmatprep.subr.mxu0 0.0
    %498 = vmatpush1.msra.mxu0 0.0
    %499 = vmatprep.subr.mxu0 0.0
    %500 = vmatpush1.msra.mxu0 0.0
    %501 = vmatprep.subr.mxu0 0.0
    %502 = vmatpush1.msra.mxu0 0.0
    %503 = vmatprep.subr.mxu0 0.0
    %504 = vmatpush1.msra.mxu0 0.0
    %505 = vmatprep.subr.mxu0 0.0
    %506 = vmatpush1.msra.mxu0 %v437
    %507 = vmatprep.subr.mxu0 0.0
    %508 = vmatpush1.msra.mxu0 %v432
    %509 = vmatprep.subr.mxu0 0.0
    %510 = vmatpush2.msra.mxu0 0.0
    %511 = vmatprep.subr.mxu0 0.0
    %512 = vmatpush2.msra.mxu0 0.0
    %513 = vmatprep.subr.mxu0 0.0
    %514 = vmatpush2.msra.mxu0 0.0
    %515 = vmatprep.subr.mxu0 0.0
    %516 = vmatpush2.msra.mxu0 0.0
    %517 = vmatprep.subr.mxu0 0.0
    %518 = vmatpush2.msra.mxu0 0.0
    %519 = vmatprep.subr.mxu0 0.0
    %520 = vmatpush2.msra.mxu0 0.0
    %521 = vmatprep.subr.mxu0 0.0
    %522 = vmatpush2.msra.mxu0 0.0
    %523 = vmatprep.subr.mxu0 0.0
    %524 = vmatpush2.msra.mxu0 0.0
    %525 = vmatprep.subr.mxu0 0.0
    %526 = vmatpush2.msra.mxu0 0.0
    %527 = vmatprep.subr.mxu0 0.0
    %528 = vmatpush2.msra.mxu0 0.0
    %529 = vmatprep.subr.mxu0 0.0
    %530 = vmatpush2.msra.mxu0 0.0
    %531 = vmatprep.subr.mxu0 0.0
    %532 = vmatpush2.msra.mxu0 0.0
    %533 = vmatprep.subr.mxu0 0.0
    %534 = vmatpush2.msra.mxu0 0.0
    %535 = vmatprep.subr.mxu0 0.0
    %536 = vmatpush2.msra.mxu0 0.0
    %537 = vmatprep.subr.mxu0 0.0
    %538 = vmatpush2.msra.mxu0 0.0
    %539 = vmatprep.subr.mxu0 0.0
    %540 = vmatpush2.msra.mxu0 0.0
    %541 = vmatprep.mubr.f32.mxu0 0.0
    %542 = vmatmul.mubr.f32.gmra.mxu0 %v442
    %v543 = vpop.f32.mrf.mxu0
    %v544 = vadd.f32 0.0, %v543
    %v545 = vpop.f32.mrf.mxu0
    %546 = vmatprep.mubr.f32.mxu0 0.0
    %547 = vmatmul.mubr.f32.gmra.mxu0 %v445
    %v548 = vpop.f32.mrf.mxu0
    %v549 = vadd.f32 0.0, %v548
    %v550 = vpop.f32.mrf.mxu0
    %551 = vmatprep.mubr.f32.mxu0 0.0
    %552 = vmatmul.mubr.f32.gmra.mxu0 %v448
    %v553 = vpop.f32.mrf.mxu0
    %v554 = vadd.f32 0.0, %v553
    %v555 = vpop.f32.mrf.mxu0
    %556 = vmatprep.mubr.f32.mxu0 0.0
    %557 = vmatmul.mubr.f32.gmra.mxu0 %v451
    %v558 = vpop.f32.mrf.mxu0
    %v559 = vadd.f32 0.0, %v558
    %v560 = vpop.f32.mrf.mxu0
    %561 = vmatprep.mubr.f32.mxu0 0.0
    %562 = vmatmul.mubr.f32.gmra.mxu0 %v454
    %v563 = vpop.f32.mrf.mxu0
    %v564 = vadd.f32 0.0, %v563
    %v565 = vpop.f32.mrf.mxu0
    %566 = vmatprep.mubr.f32.mxu0 0.0
    %567 = vmatmul.mubr.f32.gmra.mxu0 %v457
    %v568 = vpop.f32.mrf.mxu0
    %v569 = vadd.f32 0.0, %v568
    %v570 = vpop.f32.mrf.mxu0
    %571 = vmatprep.mubr.f32.mxu0 0.0
    %572 = vmatmul.mubr.f32.gmra.mxu0 %v460
    %v573 = vpop.f32.mrf.mxu0
    %v574 = vadd.f32 0.0, %v573
    %v575 = vpop.f32.mrf.mxu0
    %576 = vmatprep.mubr.f32.mxu0 0.0
    %577 = vmatmul.mubr.f32.gmra.mxu0 %v463
    %v578 = vpop.f32.mrf.mxu0
    %v579 = vadd.f32 0.0, %v578
    %v580 = vpop.f32.mrf.mxu0
    %581 = vmatprep.mubr.f32.mxu0 0.0
    %582 = vmatmul.mubr.f32.gmra.mxu0 %v466
    %v583 = vpop.f32.mrf.mxu0
    %v584 = vadd.f32 0.0, %v583
    %v585 = vpop.f32.mrf.mxu0
    %586 = vmatprep.mubr.f32.mxu0 0.0
    %587 = vmatmul.mubr.f32.gmra.mxu0 %v469
    %v588 = vpop.f32.mrf.mxu0
    %v589 = vadd.f32 0.0, %v588
    %v590 = vpop.f32.mrf.mxu0
    %591 = vmatprep.mubr.f32.mxu0 0.0
    %592 = vmatmul.mubr.f32.gmra.mxu0 %v472
    %v593 = vpop.f32.mrf.mxu0
    %v594 = vadd.f32 0.0, %v593
    %v595 = vpop.f32.mrf.mxu0
    %596 = vmatprep.mubr.f32.mxu0 0.0
    %597 = vmatmul.mubr.f32.gmra.mxu0 %v475
    %v598 = vpop.f32.mrf.mxu0
    %v599 = vadd.f32 0.0, %v598
    %v600 = vpop.f32.mrf.mxu0
    %601 = vdwg.mxu0
    %608 = vrot.lane.b32.xlu0 %v318, 4
    %v609 = vpop.permute.xlu0 %608
    %610 = vrot.lane.b32.xlu0 %v323, 4
    %v611 = vpop.permute.xlu0 %610
    %612 = vrot.lane.b32.xlu0 %v328, 4
    %v613 = vpop.permute.xlu0 %612
    %614 = vrot.lane.b32.xlu0 %v333, 4
    %v615 = vpop.permute.xlu0 %614
    %616 = vrot.lane.b32.xlu0 %v338, 4
    %v617 = vpop.permute.xlu0 %616
    %618 = vrot.lane.b32.xlu0 %v343, 4
    %v619 = vpop.permute.xlu0 %618
    %v626 = vadd.f32 %v544, %v609
    %v627 = vadd.f32 %v549, %v611
    %v628 = vadd.f32 %v554, %v613
    %v629 = vadd.f32 %v559, %v615
    %v630 = vadd.f32 %v564, %v617
    %v631 = vadd.f32 %v569, %v619
    %638 = vrot.lane.b32.xlu0 %v626, 124
    %v639 = vpop.permute.xlu0 %638
    %640 = vrot.lane.b32.xlu0 %v627, 124
    %v641 = vpop.permute.xlu0 %640
    %642 = vrot.lane.b32.xlu0 %v628, 124
    %v643 = vpop.permute.xlu0 %642
    %644 = vrot.lane.b32.xlu0 %v629, 124
    %v645 = vpop.permute.xlu0 %644
    %646 = vrot.lane.b32.xlu0 %v630, 124
    %v647 = vpop.permute.xlu0 %646
    %648 = vrot.lane.b32.xlu0 %v631, 124
    %v649 = vpop.permute.xlu0 %648
    %v656 = vmul.f32 %v574, %v639
    %v657 = vmul.f32 %v579, %v641
    %v658 = vmul.f32 %v584, %v643
    %v659 = vmul.f32 %v589, %v645
    %v660 = vmul.f32 %v594, %v647
    %v661 = vmul.f32 %v599, %v649
    %vm662 = vcmp.ge.f32.partialorder %v656, 0.0
    %vm663 = vcmp.ge.f32.partialorder %v657, 0.0
    %vm664 = vcmp.ge.f32.partialorder %v658, 0.0
    %vm665 = vcmp.ge.f32.partialorder %v659, 0.0
    %vm666 = vcmp.ge.f32.partialorder %v660, 0.0
    %vm667 = vcmp.ge.f32.partialorder %v661, 0.0
    %v668 = vmul.f32 %v656, 0.2
    %v669 = vmul.f32 %v657, 0.2
    %v670 = vmul.f32 %v658, 0.2
    %v671 = vmul.f32 %v659, 0.2
    %v672 = vmul.f32 %v660, 0.2
    %v673 = vmul.f32 %v661, 0.2
    %v674 = vsel %vm662, %v656, %v668
    %v675 = vsel %vm663, %v657, %v669
    %v676 = vsel %vm664, %v658, %v670
    %v677 = vsel %vm665, %v659, %v671
    %v678 = vsel %vm666, %v660, %v672
    %v679 = vsel %vm667, %v661, %v673
    %v680 = vld [vmem:[#allocation5] sm:$0xf]
    %v681 = vld [vmem:[%s8] sm:$0x1]
    %v683 = vlaneseq
    %v684 = vshrl.u32 %v683, 7
    %v685 = vsub.s32 0, %v684
    %v686 = vrot.slane %v681, %v685
    %vm688 = vcmask 31744
    %v690 = vsel %vm688, %v674, 0
    %v693 = vsel %vm688, %v675, 0
    %v696 = vsel %vm688, %v676, 0
    %v699 = vsel %vm688, %v677, 0
    %v702 = vsel %vm688, %v678, 0
    %v705 = vsel %vm688, %v679, 0
    %vm707 = vcmask 1043456
    %v709 = vsel %vm707, %v680, 0
    %711 = vmatprep.subr.mxu0 0.0
    %712 = vmatpush1.msra.mxu0 0.0
    %713 = vmatprep.subr.mxu0 0.0
    %714 = vmatpush1.msra.mxu0 0.0
    %715 = vmatprep.subr.mxu0 0.0
    %716 = vmatpush1.msra.mxu0 0.0
    %717 = vmatprep.subr.mxu0 0.0
    %718 = vmatpush1.msra.mxu0 0.0
    %719 = vmatprep.subr.mxu0 0.0
    %720 = vmatpush1.msra.mxu0 0.0
    %721 = vmatprep.subr.mxu0 0.0
    %722 = vmatpush1.msra.mxu0 0.0
    %723 = vmatprep.subr.mxu0 0.0
    %724 = vmatpush1.msra.mxu0 0.0
    %725 = vmatprep.subr.mxu0 0.0
    %726 = vmatpush1.msra.mxu0 0.0
    %727 = vmatprep.subr.mxu0 0.0
    %728 = vmatpush1.msra.mxu0 0.0
    %729 = vmatprep.subr.mxu0 0.0
    %730 = vmatpush1.msra.mxu0 0.0
    %731 = vmatprep.subr.mxu0 0.0
    %732 = vmatpush1.msra.mxu0 0.0
    %733 = vmatprep.subr.mxu0 0.0
    %734 = vmatpush1.msra.mxu0 0.0
    %735 = vmatprep.subr.mxu0 0.0
    %736 = vmatpush1.msra.mxu0 0.0
    %737 = vmatprep.subr.mxu0 0.0
    %738 = vmatpush1.msra.mxu0 0.0
    %739 = vmatprep.subr.mxu0 0.0
    %740 = vmatpush1.msra.mxu0 0.0
    %741 = vmatprep.subr.mxu0 0.0
    %742 = vmatpush1.msra.mxu0 %v709
    %743 = vmatprep.subr.mxu0 0.0
    %744 = vmatpush2.msra.mxu0 0.0
    %745 = vmatprep.subr.mxu0 0.0
    %746 = vmatpush2.msra.mxu0 0.0
    %747 = vmatprep.subr.mxu0 0.0
    %748 = vmatpush2.msra.mxu0 0.0
    %749 = vmatprep.subr.mxu0 0.0
    %750 = vmatpush2.msra.mxu0 0.0
    %751 = vmatprep.subr.mxu0 0.0
    %752 = vmatpush2.msra.mxu0 0.0
    %753 = vmatprep.subr.mxu0 0.0
    %754 = vmatpush2.msra.mxu0 0.0
    %755 = vmatprep.subr.mxu0 0.0
    %756 = vmatpush2.msra.mxu0 0.0
    %757 = vmatprep.subr.mxu0 0.0
    %758 = vmatpush2.msra.mxu0 0.0
    %759 = vmatprep.subr.mxu0 0.0
    %760 = vmatpush2.msra.mxu0 0.0
    %761 = vmatprep.subr.mxu0 0.0
    %762 = vmatpush2.msra.mxu0 0.0
    %763 = vmatprep.subr.mxu0 0.0
    %764 = vmatpush2.msra.mxu0 0.0
    %765 = vmatprep.subr.mxu0 0.0
    %766 = vmatpush2.msra.mxu0 0.0
    %767 = vmatprep.subr.mxu0 0.0
    %768 = vmatpush2.msra.mxu0 0.0
    %769 = vmatprep.subr.mxu0 0.0
    %770 = vmatpush2.msra.mxu0 0.0
    %771 = vmatprep.subr.mxu0 0.0
    %772 = vmatpush2.msra.mxu0 0.0
    %773 = vmatprep.subr.mxu0 0.0
    %774 = vmatpush2.msra.mxu0 0.0
    %775 = vmatprep.mubr.f32.mxu0 0.0
    %776 = vmatmul.mubr.f32.gmra.mxu0 %v690
    %v777 = vpop.f32.mrf.mxu0
    %v778 = vadd.f32 %v686, %v777
    %v779 = vpop.f32.mrf.mxu0
    %780 = vmatprep.mubr.f32.mxu0 0.0
    %781 = vmatmul.mubr.f32.gmra.mxu0 %v693
    %v782 = vpop.f32.mrf.mxu0
    %v783 = vadd.f32 %v686, %v782
    %v784 = vpop.f32.mrf.mxu0
    %785 = vmatprep.mubr.f32.mxu0 0.0
    %786 = vmatmul.mubr.f32.gmra.mxu0 %v696
    %v787 = vpop.f32.mrf.mxu0
    %v788 = vadd.f32 %v686, %v787
    %v789 = vpop.f32.mrf.mxu0
    %790 = vmatprep.mubr.f32.mxu0 0.0
    %791 = vmatmul.mubr.f32.gmra.mxu0 %v699
    %v792 = vpop.f32.mrf.mxu0
    %v793 = vadd.f32 %v686, %v792
    %v794 = vpop.f32.mrf.mxu0
    %795 = vmatprep.mubr.f32.mxu0 0.0
    %796 = vmatmul.mubr.f32.gmra.mxu0 %v702
    %v797 = vpop.f32.mrf.mxu0
    %v798 = vadd.f32 %v686, %v797
    %v799 = vpop.f32.mrf.mxu0
    %800 = vmatprep.mubr.f32.mxu0 0.0
    %801 = vmatmul.mubr.f32.gmra.mxu0 %v705
    %v802 = vpop.f32.mrf.mxu0
    %v803 = vadd.f32 %v686, %v802
    %v804 = vpop.f32.mrf.mxu0
    %805 = vdwg.mxu0
    %v806 = vmul.f32 %v778, 1.442695
    %v807 = vpow.pop %v806
    %v808 = vmul.f32 %v783, 1.442695
    %v809 = vpow.pop %v808
    %v810 = vmul.f32 %v788, 1.442695
    %v811 = vpow.pop %v810
    %v812 = vmul.f32 %v793, 1.442695
    %v813 = vpow.pop %v812
    %v814 = vmul.f32 %v798, 1.442695
    %v815 = vpow.pop %v814
    %v816 = vmul.f32 %v803, 1.442695
    %v817 = vpow.pop %v816
    %820 = vrot.lane.b32.xlu0 %v220, 80
    %v821 = vpop.permute.xlu0 %820
    %822 = vrot.lane.b32.xlu0 %v221, 80
    %v823 = vpop.permute.xlu0 %822
    %vm824 = vcmask 392192
    %v825 = vsel %vm824, %v821, 0
    %v827 = vsel %vm824, %v823, 0
    %829 = vmatprep.subr.mxu0 0.0
    %830 = vmatpush1.msra.mxu0 0.0
    %831 = vmatprep.subr.mxu0 0.0
    %832 = vmatpush1.msra.mxu0 0.0
    %833 = vmatprep.subr.mxu0 0.0
    %834 = vmatpush1.msra.mxu0 0.0
    %835 = vmatprep.subr.mxu0 0.0
    %836 = vmatpush1.msra.mxu0 0.0
    %837 = vmatprep.subr.mxu0 0.0
    %838 = vmatpush1.msra.mxu0 0.0
    %839 = vmatprep.subr.mxu0 0.0
    %840 = vmatpush1.msra.mxu0 0.0
    %841 = vmatprep.subr.mxu0 0.0
    %842 = vmatpush1.msra.mxu0 0.0
    %843 = vmatprep.subr.mxu0 0.0
    %844 = vmatpush1.msra.mxu0 0.0
    %845 = vmatprep.subr.mxu0 0.0
    %846 = vmatpush1.msra.mxu0 0.0
    %847 = vmatprep.subr.mxu0 0.0
    %848 = vmatpush1.msra.mxu0 0.0
    %849 = vmatprep.subr.mxu0 0.0
    %850 = vmatpush1.msra.mxu0 %v817
    %851 = vmatprep.subr.mxu0 0.0
    %852 = vmatpush1.msra.mxu0 %v815
    %853 = vmatprep.subr.mxu0 0.0
    %854 = vmatpush1.msra.mxu0 %v813
    %855 = vmatprep.subr.mxu0 0.0
    %856 = vmatpush1.msra.mxu0 %v811
    %857 = vmatprep.subr.mxu0 0.0
    %858 = vmatpush1.msra.mxu0 %v809
    %859 = vmatprep.subr.mxu0 0.0
    %860 = vmatpush1.msra.mxu0 %v807
    %861 = vmatprep.subr.mxu0 0.0
    %862 = vmatpush2.msra.mxu0 0.0
    %863 = vmatprep.subr.mxu0 0.0
    %864 = vmatpush2.msra.mxu0 0.0
    %865 = vmatprep.subr.mxu0 0.0
    %866 = vmatpush2.msra.mxu0 0.0
    %867 = vmatprep.subr.mxu0 0.0
    %868 = vmatpush2.msra.mxu0 0.0
    %869 = vmatprep.subr.mxu0 0.0
    %870 = vmatpush2.msra.mxu0 0.0
    %871 = vmatprep.subr.mxu0 0.0
    %872 = vmatpush2.msra.mxu0 0.0
    %873 = vmatprep.subr.mxu0 0.0
    %874 = vmatpush2.msra.mxu0 0.0
    %875 = vmatprep.subr.mxu0 0.0
    %876 = vmatpush2.msra.mxu0 0.0
    %877 = vmatprep.subr.mxu0 0.0
    %878 = vmatpush2.msra.mxu0 0.0
    %879 = vmatprep.subr.mxu0 0.0
    %880 = vmatpush2.msra.mxu0 0.0
    %881 = vmatprep.subr.mxu0 0.0
    %882 = vmatpush2.msra.mxu0 0.0
    %883 = vmatprep.subr.mxu0 0.0
    %884 = vmatpush2.msra.mxu0 0.0
    %885 = vmatprep.subr.mxu0 0.0
    %886 = vmatpush2.msra.mxu0 0.0
    %887 = vmatprep.subr.mxu0 0.0
    %888 = vmatpush2.msra.mxu0 0.0
    %889 = vmatprep.subr.mxu0 0.0
    %890 = vmatpush2.msra.mxu0 0.0
    %891 = vmatprep.subr.mxu0 0.0
    %892 = vmatpush2.msra.mxu0 0.0
    %893 = vmatprep.mubr.f32.mxu0 0.0
    %894 = vmatmul.mubr.f32.gmra.mxu0 %v825
    %v895 = vpop.f32.mrf.mxu0
    %v896 = vadd.f32 0.0, %v895
    %v897 = vpop.f32.mrf.mxu0
    %898 = vmatprep.mubr.f32.mxu0 0.0
    %899 = vmatmul.mubr.f32.gmra.mxu0 %v827
    %v900 = vpop.f32.mrf.mxu0
    %v901 = vadd.f32 0.0, %v900
    %v902 = vpop.f32.mrf.mxu0
    %903 = vdwg.mxu0
    %vm904 = vcmp.eq.f32.partialorder %v896, 0.0
    %vm905 = vcmp.eq.f32.partialorder %v901, 0.0
    %v906 = vsel %vm904, 1.0, %v896
    %v907 = vsel %vm905, 1.0, %v901
    %v908 = vrcp.pop %v906
    %v909 = vrcp.pop %v907
    %910 = vmatprep.subr.mxu0 0.0
    %911 = vmatpush1.msra.mxu0 0.0
    %912 = vmatprep.subr.mxu0 0.0
    %913 = vmatpush1.msra.mxu0 0.0
    %914 = vmatprep.subr.mxu0 0.0
    %915 = vmatpush1.msra.mxu0 0.0
    %916 = vmatprep.subr.mxu0 0.0
    %917 = vmatpush1.msra.mxu0 0.0
    %918 = vmatprep.subr.mxu0 0.0
    %919 = vmatpush1.msra.mxu0 0.0
    %920 = vmatprep.subr.mxu0 0.0
    %921 = vmatpush1.msra.mxu0 0.0
    %922 = vmatprep.subr.mxu0 0.0
    %923 = vmatpush1.msra.mxu0 0.0
    %924 = vmatprep.subr.mxu0 0.0
    %925 = vmatpush1.msra.mxu0 0.0
    %926 = vmatprep.subr.mxu0 0.0
    %927 = vmatpush1.msra.mxu0 0.0
    %928 = vmatprep.subr.mxu0 0.0
    %929 = vmatpush1.msra.mxu0 0.0
    %930 = vmatprep.subr.mxu0 0.0
    %931 = vmatpush1.msra.mxu0 0.0
    %932 = vmatprep.subr.mxu0 0.0
    %933 = vmatpush1.msra.mxu0 0.0
    %934 = vmatprep.subr.mxu0 0.0
    %935 = vmatpush1.msra.mxu0 0.0
    %936 = vmatprep.subr.mxu0 0.0
    %937 = vmatpush1.msra.mxu0 0.0
    %938 = vmatprep.subr.mxu0 0.0
    %939 = vmatpush1.msra.mxu0 %v909
    %940 = vmatprep.subr.mxu0 0.0
    %941 = vmatpush1.msra.mxu0 %v908
    %942 = vmatprep.subr.mxu0 0.0
    %943 = vmatpush2.msra.mxu0 0.0
    %944 = vmatprep.subr.mxu0 0.0
    %945 = vmatpush2.msra.mxu0 0.0
    %946 = vmatprep.subr.mxu0 0.0
    %947 = vmatpush2.msra.mxu0 0.0
    %948 = vmatprep.subr.mxu0 0.0
    %949 = vmatpush2.msra.mxu0 0.0
    %950 = vmatprep.subr.mxu0 0.0
    %951 = vmatpush2.msra.mxu0 0.0
    %952 = vmatprep.subr.mxu0 0.0
    %953 = vmatpush2.msra.mxu0 0.0
    %954 = vmatprep.subr.mxu0 0.0
    %955 = vmatpush2.msra.mxu0 0.0
    %956 = vmatprep.subr.mxu0 0.0
    %957 = vmatpush2.msra.mxu0 0.0
    %958 = vmatprep.subr.mxu0 0.0
    %959 = vmatpush2.msra.mxu0 0.0
    %960 = vmatprep.subr.mxu0 0.0
    %961 = vmatpush2.msra.mxu0 0.0
    %962 = vmatprep.subr.mxu0 0.0
    %963 = vmatpush2.msra.mxu0 0.0
    %964 = vmatprep.subr.mxu0 0.0
    %965 = vmatpush2.msra.mxu0 0.0
    %966 = vmatprep.subr.mxu0 0.0
    %967 = vmatpush2.msra.mxu0 0.0
    %968 = vmatprep.subr.mxu0 0.0
    %969 = vmatpush2.msra.mxu0 0.0
    %970 = vmatprep.subr.mxu0 0.0
    %971 = vmatpush2.msra.mxu0 0.0
    %972 = vmatprep.subr.mxu0 0.0
    %973 = vmatpush2.msra.mxu0 0.0
    %974 = vmatprep.mubr.f32.mxu0 0.0
    %975 = vmatmul.mubr.f32.gmra.mxu0 %v460
    %v976 = vpop.f32.mrf.mxu0
    %v977 = vadd.f32 0.0, %v976
    %v978 = vpop.f32.mrf.mxu0
    %979 = vmatprep.mubr.f32.mxu0 0.0
    %980 = vmatmul.mubr.f32.gmra.mxu0 %v463
    %v981 = vpop.f32.mrf.mxu0
    %v982 = vadd.f32 0.0, %v981
    %v983 = vpop.f32.mrf.mxu0
    %984 = vmatprep.mubr.f32.mxu0 0.0
    %985 = vmatmul.mubr.f32.gmra.mxu0 %v466
    %v986 = vpop.f32.mrf.mxu0
    %v987 = vadd.f32 0.0, %v986
    %v988 = vpop.f32.mrf.mxu0
    %989 = vmatprep.mubr.f32.mxu0 0.0
    %990 = vmatmul.mubr.f32.gmra.mxu0 %v469
    %v991 = vpop.f32.mrf.mxu0
    %v992 = vadd.f32 0.0, %v991
    %v993 = vpop.f32.mrf.mxu0
    %994 = vmatprep.mubr.f32.mxu0 0.0
    %995 = vmatmul.mubr.f32.gmra.mxu0 %v472
    %v996 = vpop.f32.mrf.mxu0
    %v997 = vadd.f32 0.0, %v996
    %v998 = vpop.f32.mrf.mxu0
    %999 = vmatprep.mubr.f32.mxu0 0.0
    %1000 = vmatmul.mubr.f32.gmra.mxu0 %v475
    %v1001 = vpop.f32.mrf.mxu0
    %v1002 = vadd.f32 0.0, %v1001
    %v1003 = vpop.f32.mrf.mxu0
    %1004 = vdwg.mxu0
    %v1005 = vmul.f32 %v807, %v977
    %v1006 = vmul.f32 %v809, %v982
    %v1007 = vmul.f32 %v811, %v987
    %v1008 = vmul.f32 %v813, %v992
    %v1009 = vmul.f32 %v815, %v997
    %v1010 = vmul.f32 %v817, %v1002
    %1017 = vrot.lane.b32.xlu0 %v544, 120
    %v1018 = vpop.permute.xlu0 %1017
    %1019 = vrot.lane.b32.xlu0 %v549, 120
    %v1020 = vpop.permute.xlu0 %1019
    %1021 = vrot.lane.b32.xlu0 %v554, 120
    %v1022 = vpop.permute.xlu0 %1021
    %1023 = vrot.lane.b32.xlu0 %v559, 120
    %v1024 = vpop.permute.xlu0 %1023
    %1025 = vrot.lane.b32.xlu0 %v564, 120
    %v1026 = vpop.permute.xlu0 %1025
    %1027 = vrot.lane.b32.xlu0 %v569, 120
    %v1028 = vpop.permute.xlu0 %1027
    %v1035 = vmul.f32 %v1005, %v1018
    %v1036 = vmul.f32 %v1006, %v1020
    %v1037 = vmul.f32 %v1007, %v1022
    %v1038 = vmul.f32 %v1008, %v1024
    %v1039 = vmul.f32 %v1009, %v1026
    %v1040 = vmul.f32 %v1010, %v1028
    %v1041 = vld [vmem:[%s9] sm:$0xff]
    %v1042 = vld [vmem:[%s9 + $0x8] sm:$0xff]
    %v1043 = vld [vmem:[%s9 + $0x10] sm:$0xff]
    %v1044 = vld [vmem:[%s9 + $0x18] sm:$0xff]
    %v1045 = vld [vmem:[#allocation7] sm:$0x1]
    %v1047 = vlaneseq
    %v1048 = vshrl.u32 %v1047, 7
    %v1049 = vsub.s32 0, %v1048
    %v1050 = vrot.slane %v1045, %v1049
    %v1053 = vsel %vm232, %v1035, 0
    %v1056 = vsel %vm232, %v1036, 0
    %v1059 = vsel %vm232, %v1037, 0
    %v1062 = vsel %vm232, %v1038, 0
    %v1065 = vsel %vm232, %v1039, 0
    %v1068 = vsel %vm232, %v1040, 0
    %1070 = vmatprep.subr.mxu0 0.0
    %1071 = vmatpush1.msra.mxu0 0.0
    %1072 = vmatprep.subr.mxu0 0.0
    %1073 = vmatpush1.msra.mxu0 0.0
    %1074 = vmatprep.subr.mxu0 0.0
    %1075 = vmatpush1.msra.mxu0 0.0
    %1076 = vmatprep.subr.mxu0 0.0
    %1077 = vmatpush1.msra.mxu0 0.0
    %1078 = vmatprep.subr.mxu0 0.0
    %1079 = vmatpush1.msra.mxu0 0.0
    %1080 = vmatprep.subr.mxu0 0.0
    %1081 = vmatpush1.msra.mxu0 0.0
    %1082 = vmatprep.subr.mxu0 0.0
    %1083 = vmatpush1.msra.mxu0 0.0
    %1084 = vmatprep.subr.mxu0 0.0
    %1085 = vmatpush1.msra.mxu0 0.0
    %1086 = vmatprep.subr.mxu0 0.0
    %1087 = vmatpush1.msra.mxu0 0.0
    %1088 = vmatprep.subr.mxu0 0.0
    %1089 = vmatpush1.msra.mxu0 0.0
    %1090 = vmatprep.subr.mxu0 0.0
    %1091 = vmatpush1.msra.mxu0 0.0
    %1092 = vmatprep.subr.mxu0 0.0
    %1093 = vmatpush1.msra.mxu0 0.0
    %1094 = vmatprep.subr.mxu0 0.0
    %1095 = vmatpush1.msra.mxu0 %v1044
    %1096 = vmatprep.subr.mxu0 0.0
    %1097 = vmatpush1.msra.mxu0 %v1043
    %1098 = vmatprep.subr.mxu0 0.0
    %1099 = vmatpush1.msra.mxu0 %v1042
    %1100 = vmatprep.subr.mxu0 0.0
    %1101 = vmatpush1.msra.mxu0 %v1041
    %1102 = vmatprep.subr.mxu0 0.0
    %1103 = vmatpush2.msra.mxu0 0.0
    %1104 = vmatprep.subr.mxu0 0.0
    %1105 = vmatpush2.msra.mxu0 0.0
    %1106 = vmatprep.subr.mxu0 0.0
    %1107 = vmatpush2.msra.mxu0 0.0
    %1108 = vmatprep.subr.mxu0 0.0
    %1109 = vmatpush2.msra.mxu0 0.0
    %1110 = vmatprep.subr.mxu0 0.0
    %1111 = vmatpush2.msra.mxu0 0.0
    %1112 = vmatprep.subr.mxu0 0.0
    %1113 = vmatpush2.msra.mxu0 0.0
    %1114 = vmatprep.subr.mxu0 0.0
    %1115 = vmatpush2.msra.mxu0 0.0
    %1116 = vmatprep.subr.mxu0 0.0
    %1117 = vmatpush2.msra.mxu0 0.0
    %1118 = vmatprep.subr.mxu0 0.0
    %1119 = vmatpush2.msra.mxu0 0.0
    %1120 = vmatprep.subr.mxu0 0.0
    %1121 = vmatpush2.msra.mxu0 0.0
    %1122 = vmatprep.subr.mxu0 0.0
    %1123 = vmatpush2.msra.mxu0 0.0
    %1124 = vmatprep.subr.mxu0 0.0
    %1125 = vmatpush2.msra.mxu0 0.0
    %1126 = vmatprep.subr.mxu0 0.0
    %1127 = vmatpush2.msra.mxu0 0.0
    %1128 = vmatprep.subr.mxu0 0.0
    %1129 = vmatpush2.msra.mxu0 0.0
    %1130 = vmatprep.subr.mxu0 0.0
    %1131 = vmatpush2.msra.mxu0 0.0
    %1132 = vmatprep.subr.mxu0 0.0
    %1133 = vmatpush2.msra.mxu0 0.0
    %1134 = vmatprep.mubr.f32.mxu0 0.0
    %1135 = vmatmul.mubr.f32.gmra.mxu0 %v1053
    %v1136 = vpop.f32.mrf.mxu0
    %v1137 = vadd.f32 %v1050, %v1136
    %v1138 = vpop.f32.mrf.mxu0
    %1139 = vmatprep.mubr.f32.mxu0 0.0
    %1140 = vmatmul.mubr.f32.gmra.mxu0 %v1056
    %v1141 = vpop.f32.mrf.mxu0
    %v1142 = vadd.f32 %v1050, %v1141
    %v1143 = vpop.f32.mrf.mxu0
    %1144 = vmatprep.mubr.f32.mxu0 0.0
    %1145 = vmatmul.mubr.f32.gmra.mxu0 %v1059
    %v1146 = vpop.f32.mrf.mxu0
    %v1147 = vadd.f32 %v1050, %v1146
    %v1148 = vpop.f32.mrf.mxu0
    %1149 = vmatprep.mubr.f32.mxu0 0.0
    %1150 = vmatmul.mubr.f32.gmra.mxu0 %v1062
    %v1151 = vpop.f32.mrf.mxu0
    %v1152 = vadd.f32 %v1050, %v1151
    %v1153 = vpop.f32.mrf.mxu0
    %1154 = vmatprep.mubr.f32.mxu0 0.0
    %1155 = vmatmul.mubr.f32.gmra.mxu0 %v1065
    %v1156 = vpop.f32.mrf.mxu0
    %v1157 = vadd.f32 %v1050, %v1156
    %v1158 = vpop.f32.mrf.mxu0
    %1159 = vmatprep.mubr.f32.mxu0 0.0
    %1160 = vmatmul.mubr.f32.gmra.mxu0 %v1068
    %v1161 = vpop.f32.mrf.mxu0
    %v1162 = vadd.f32 %v1050, %v1161
    %v1163 = vpop.f32.mrf.mxu0
    %1164 = vdwg.mxu0
    %1165 = vmatprep.subr.mxu0 0.0
    %1166 = vmatpush1.msra.mxu0 0.0
    %1167 = vmatprep.subr.mxu0 0.0
    %1168 = vmatpush1.msra.mxu0 0.0
    %1169 = vmatprep.subr.mxu0 0.0
    %1170 = vmatpush1.msra.mxu0 0.0
    %1171 = vmatprep.subr.mxu0 0.0
    %1172 = vmatpush1.msra.mxu0 0.0
    %1173 = vmatprep.subr.mxu0 0.0
    %1174 = vmatpush1.msra.mxu0 0.0
    %1175 = vmatprep.subr.mxu0 0.0
    %1176 = vmatpush1.msra.mxu0 0.0
    %1177 = vmatprep.subr.mxu0 0.0
    %1178 = vmatpush1.msra.mxu0 0.0
    %1179 = vmatprep.subr.mxu0 0.0
    %1180 = vmatpush1.msra.mxu0 0.0
    %1181 = vmatprep.subr.mxu0 0.0
    %1182 = vmatpush1.msra.mxu0 0.0
    %1183 = vmatprep.subr.mxu0 0.0
    %1184 = vmatpush1.msra.mxu0 0.0
    %1185 = vmatprep.subr.mxu0 0.0
    %1186 = vmatpush1.msra.mxu0 %v1162
    %1187 = vmatprep.subr.mxu0 0.0
    %1188 = vmatpush1.msra.mxu0 %v1157
    %1189 = vmatprep.subr.mxu0 0.0
    %1190 = vmatpush1.msra.mxu0 %v1152
    %1191 = vmatprep.subr.mxu0 0.0
    %1192 = vmatpush1.msra.mxu0 %v1147
    %1193 = vmatprep.subr.mxu0 0.0
    %1194 = vmatpush1.msra.mxu0 %v1142
    %1195 = vmatprep.subr.mxu0 0.0
    %1196 = vmatpush1.msra.mxu0 %v1137
    %1197 = vmatprep.subr.mxu0 0.0
    %1198 = vmatpush2.msra.mxu0 0.0
    %1199 = vmatprep.subr.mxu0 0.0
    %1200 = vmatpush2.msra.mxu0 0.0
    %1201 = vmatprep.subr.mxu0 0.0
    %1202 = vmatpush2.msra.mxu0 0.0
    %1203 = vmatprep.subr.mxu0 0.0
    %1204 = vmatpush2.msra.mxu0 0.0
    %1205 = vmatprep.subr.mxu0 0.0
    %1206 = vmatpush2.msra.mxu0 0.0
    %1207 = vmatprep.subr.mxu0 0.0
    %1208 = vmatpush2.msra.mxu0 0.0
    %1209 = vmatprep.subr.mxu0 0.0
    %1210 = vmatpush2.msra.mxu0 0.0
    %1211 = vmatprep.subr.mxu0 0.0
    %1212 = vmatpush2.msra.mxu0 0.0
    %1213 = vmatprep.subr.mxu0 0.0
    %1214 = vmatpush2.msra.mxu0 0.0
    %1215 = vmatprep.subr.mxu0 0.0
    %1216 = vmatpush2.msra.mxu0 0.0
    %1217 = vmatprep.subr.mxu0 0.0
    %1218 = vmatpush2.msra.mxu0 0.0
    %1219 = vmatprep.subr.mxu0 0.0
    %1220 = vmatpush2.msra.mxu0 0.0
    %1221 = vmatprep.subr.mxu0 0.0
    %1222 = vmatpush2.msra.mxu0 0.0
    %1223 = vmatprep.subr.mxu0 0.0
    %1224 = vmatpush2.msra.mxu0 0.0
    %1225 = vmatprep.subr.mxu0 0.0
    %1226 = vmatpush2.msra.mxu0 0.0
    %1227 = vmatprep.subr.mxu0 0.0
    %1228 = vmatpush2.msra.mxu0 0.0
    %1229 = vmatprep.mubr.f32.mxu0 0.0
    %1230 = vmatmul.mubr.f32.gmra.mxu0 %v825
    %v1231 = vpop.f32.mrf.mxu0
    %v1232 = vadd.f32 0.0, %v1231
    %v1233 = vpop.f32.mrf.mxu0
    %1234 = vmatprep.mubr.f32.mxu0 0.0
    %1235 = vmatmul.mubr.f32.gmra.mxu0 %v827
    %v1236 = vpop.f32.mrf.mxu0
    %v1237 = vadd.f32 0.0, %v1236
    %v1238 = vpop.f32.mrf.mxu0
    %1239 = vdwg.mxu0
    %v1240 = vld [vmem:[%s11] sm:$0xff]
    %v1241 = vld [vmem:[%s11 + $0x8] sm:$0xff]
    %v1242 = vld [vmem:[%s11 + $0x10] sm:$0xff]
    %v1243 = vld [vmem:[%s11 + $0x18] sm:$0xff]
    %v1244 = vld [vmem:[#allocation8] sm:$0xff]
    %v1245 = vld [vmem:[#allocation8 + $0x8] sm:$0xff]
    %v1246 = vld [vmem:[#allocation8 + $0x10] sm:$0xff]
    %v1247 = vld [vmem:[#allocation8 + $0x18] sm:$0xff]
    %v1249 = vsel %vm232, %v1232, 0
    %v1252 = vsel %vm232, %v1237, 0
    %1254 = vmatprep.subr.mxu0 0.0
    %1255 = vmatpush1.msra.mxu0 0.0
    %1256 = vmatprep.subr.mxu0 0.0
    %1257 = vmatpush1.msra.mxu0 0.0
    %1258 = vmatprep.subr.mxu0 0.0
    %1259 = vmatpush1.msra.mxu0 0.0
    %1260 = vmatprep.subr.mxu0 0.0
    %1261 = vmatpush1.msra.mxu0 0.0
    %1262 = vmatprep.subr.mxu0 0.0
    %1263 = vmatpush1.msra.mxu0 0.0
    %1264 = vmatprep.subr.mxu0 0.0
    %1265 = vmatpush1.msra.mxu0 0.0
    %1266 = vmatprep.subr.mxu0 0.0
    %1267 = vmatpush1.msra.mxu0 0.0
    %1268 = vmatprep.subr.mxu0 0.0
    %1269 = vmatpush1.msra.mxu0 0.0
    %1270 = vmatprep.subr.mxu0 0.0
    %1271 = vmatpush1.msra.mxu0 0.0
    %1272 = vmatprep.subr.mxu0 0.0
    %1273 = vmatpush1.msra.mxu0 0.0
    %1274 = vmatprep.subr.mxu0 0.0
    %1275 = vmatpush1.msra.mxu0 0.0
    %1276 = vmatprep.subr.mxu0 0.0
    %1277 = vmatpush1.msra.mxu0 0.0
    %1278 = vmatprep.subr.mxu0 0.0
    %1279 = vmatpush1.msra.mxu0 %v1247
    %1280 = vmatprep.subr.mxu0 0.0
    %1281 = vmatpush1.msra.mxu0 %v1246
    %1282 = vmatprep.subr.mxu0 0.0
    %1283 = vmatpush1.msra.mxu0 %v1245
    %1284 = vmatprep.subr.mxu0 0.0
    %1285 = vmatpush1.msra.mxu0 %v1244
    %1286 = vmatprep.subr.mxu0 0.0
    %1287 = vmatpush2.msra.mxu0 0.0
    %1288 = vmatprep.subr.mxu0 0.0
    %1289 = vmatpush2.msra.mxu0 0.0
    %1290 = vmatprep.subr.mxu0 0.0
    %1291 = vmatpush2.msra.mxu0 0.0
    %1292 = vmatprep.subr.mxu0 0.0
    %1293 = vmatpush2.msra.mxu0 0.0
    %1294 = vmatprep.subr.mxu0 0.0
    %1295 = vmatpush2.msra.mxu0 0.0
    %1296 = vmatprep.subr.mxu0 0.0
    %1297 = vmatpush2.msra.mxu0 0.0
    %1298 = vmatprep.subr.mxu0 0.0
    %1299 = vmatpush2.msra.mxu0 0.0
    %1300 = vmatprep.subr.mxu0 0.0
    %1301 = vmatpush2.msra.mxu0 0.0
    %1302 = vmatprep.subr.mxu0 0.0
    %1303 = vmatpush2.msra.mxu0 0.0
    %1304 = vmatprep.subr.mxu0 0.0
    %1305 = vmatpush2.msra.mxu0 0.0
    %1306 = vmatprep.subr.mxu0 0.0
    %1307 = vmatpush2.msra.mxu0 0.0
    %1308 = vmatprep.subr.mxu0 0.0
    %1309 = vmatpush2.msra.mxu0 0.0
    %1310 = vmatprep.subr.mxu0 0.0
    %1311 = vmatpush2.msra.mxu0 0.0
    %1312 = vmatprep.subr.mxu0 0.0
    %1313 = vmatpush2.msra.mxu0 0.0
    %1314 = vmatprep.subr.mxu0 0.0
    %1315 = vmatpush2.msra.mxu0 0.0
    %1316 = vmatprep.subr.mxu0 0.0
    %1317 = vmatpush2.msra.mxu0 0.0
    %1318 = vmatprep.mubr.f32.mxu0 0.0
    %1319 = vmatmul.mubr.f32.gmra.mxu0 %v1249
    %v1320 = vpop.f32.mrf.mxu0
    %v1321 = vadd.f32 0.0, %v1320
    %v1322 = vpop.f32.mrf.mxu0
    %1323 = vmatprep.mubr.f32.mxu0 0.0
    %1324 = vmatmul.mubr.f32.gmra.mxu0 %v1252
    %v1325 = vpop.f32.mrf.mxu0
    %v1326 = vadd.f32 0.0, %v1325
    %v1327 = vpop.f32.mrf.mxu0
    %1328 = vdwg.mxu0
    %1329 = vmatprep.subr.mxu0 0.0
    %1330 = vmatpush1.msra.mxu0 0.0
    %1331 = vmatprep.subr.mxu0 0.0
    %1332 = vmatpush1.msra.mxu0 0.0
    %1333 = vmatprep.subr.mxu0 0.0
    %1334 = vmatpush1.msra.mxu0 0.0
    %1335 = vmatprep.subr.mxu0 0.0
    %1336 = vmatpush1.msra.mxu0 0.0
    %1337 = vmatprep.subr.mxu0 0.0
    %1338 = vmatpush1.msra.mxu0 0.0
    %1339 = vmatprep.subr.mxu0 0.0
    %1340 = vmatpush1.msra.mxu0 0.0
    %1341 = vmatprep.subr.mxu0 0.0
    %1342 = vmatpush1.msra.mxu0 0.0
    %1343 = vmatprep.subr.mxu0 0.0
    %1344 = vmatpush1.msra.mxu0 0.0
    %1345 = vmatprep.subr.mxu0 0.0
    %1346 = vmatpush1.msra.mxu0 0.0
    %1347 = vmatprep.subr.mxu0 0.0
    %1348 = vmatpush1.msra.mxu0 0.0
    %1349 = vmatprep.subr.mxu0 0.0
    %1350 = vmatpush1.msra.mxu0 0.0
    %1351 = vmatprep.subr.mxu0 0.0
    %1352 = vmatpush1.msra.mxu0 0.0
    %1353 = vmatprep.subr.mxu0 0.0
    %1354 = vmatpush1.msra.mxu0 %v1243
    %1355 = vmatprep.subr.mxu0 0.0
    %1356 = vmatpush1.msra.mxu0 %v1242
    %1357 = vmatprep.subr.mxu0 0.0
    %1358 = vmatpush1.msra.mxu0 %v1241
    %1359 = vmatprep.subr.mxu0 0.0
    %1360 = vmatpush1.msra.mxu0 %v1240
    %1361 = vmatprep.subr.mxu0 0.0
    %1362 = vmatpush2.msra.mxu0 0.0
    %1363 = vmatprep.subr.mxu0 0.0
    %1364 = vmatpush2.msra.mxu0 0.0
    %1365 = vmatprep.subr.mxu0 0.0
    %1366 = vmatpush2.msra.mxu0 0.0
    %1367 = vmatprep.subr.mxu0 0.0
    %1368 = vmatpush2.msra.mxu0 0.0
    %1369 = vmatprep.subr.mxu0 0.0
    %1370 = vmatpush2.msra.mxu0 0.0
    %1371 = vmatprep.subr.mxu0 0.0
    %1372 = vmatpush2.msra.mxu0 0.0
    %1373 = vmatprep.subr.mxu0 0.0
    %1374 = vmatpush2.msra.mxu0 0.0
    %1375 = vmatprep.subr.mxu0 0.0
    %1376 = vmatpush2.msra.mxu0 0.0
    %1377 = vmatprep.subr.mxu0 0.0
    %1378 = vmatpush2.msra.mxu0 0.0
    %1379 = vmatprep.subr.mxu0 0.0
    %1380 = vmatpush2.msra.mxu0 0.0
    %1381 = vmatprep.subr.mxu0 0.0
    %1382 = vmatpush2.msra.mxu0 0.0
    %1383 = vmatprep.subr.mxu0 0.0
    %1384 = vmatpush2.msra.mxu0 0.0
    %1385 = vmatprep.subr.mxu0 0.0
    %1386 = vmatpush2.msra.mxu0 0.0
    %1387 = vmatprep.subr.mxu0 0.0
    %1388 = vmatpush2.msra.mxu0 0.0
    %1389 = vmatprep.subr.mxu0 0.0
    %1390 = vmatpush2.msra.mxu0 0.0
    %1391 = vmatprep.subr.mxu0 0.0
    %1392 = vmatpush2.msra.mxu0 0.0
    %1393 = vmatprep.mubr.f32.mxu0 0.0
    %1394 = vmatmul.mubr.f32.gmra.mxu0 %v360
    %v1395 = vpop.f32.mrf.mxu0
    %v1396 = vadd.f32 %v1321, %v1395
    %v1397 = vpop.f32.mrf.mxu0
    %1398 = vmatprep.mubr.f32.mxu0 0.0
    %1399 = vmatmul.mubr.f32.gmra.mxu0 %v363
    %v1400 = vpop.f32.mrf.mxu0
    %v1401 = vadd.f32 %v1326, %v1400
    %v1402 = vpop.f32.mrf.mxu0
    %1403 = vdwg.mxu0
    %v1404 = vld [vmem:[#allocation10] sm:$0x1]
    %v1406 = vlaneseq
    %v1407 = vshrl.u32 %v1406, 7
    %v1408 = vsub.s32 0, %v1407
    %v1409 = vrot.slane %v1404, %v1408
    %v1411 = vadd.f32 %v1396, %v1409
    %v1412 = vadd.f32 %v1401, %v1409
    %vm1413 = vcmp.ge.f32.partialorder %v1411, 0.0
    %vm1414 = vcmp.ge.f32.partialorder %v1412, 0.0
    %v1415 = vmul.f32 %v1411, 0.2
    %v1416 = vmul.f32 %v1412, 0.2
    %v1417 = vsel %vm1413, %v1411, %v1415
    %v1418 = vsel %vm1414, %v1412, %v1416
    %v1419 = vld [vmem:[%s14] sm:$0xff]
    %v1420 = vld [vmem:[%s14 + $0x8] sm:$0xff]
    %v1421 = vld [vmem:[%s14 + $0x10] sm:$0xff]
    %v1422 = vld [vmem:[%s14 + $0x18] sm:$0xff]
    %v1423 = vld [vmem:[%s15] sm:$0x1]
    %v1425 = vlaneseq
    %v1426 = vshrl.u32 %v1425, 7
    %v1427 = vsub.s32 0, %v1426
    %v1428 = vrot.slane %v1423, %v1427
    %v1431 = vsel %vm232, %v1417, 0
    %v1434 = vsel %vm232, %v1418, 0
    %1436 = vmatprep.subr.mxu0 0.0
    %1437 = vmatpush1.msra.mxu0 0.0
    %1438 = vmatprep.subr.mxu0 0.0
    %1439 = vmatpush1.msra.mxu0 0.0
    %1440 = vmatprep.subr.mxu0 0.0
    %1441 = vmatpush1.msra.mxu0 0.0
    %1442 = vmatprep.subr.mxu0 0.0
    %1443 = vmatpush1.msra.mxu0 0.0
    %1444 = vmatprep.subr.mxu0 0.0
    %1445 = vmatpush1.msra.mxu0 0.0
    %1446 = vmatprep.subr.mxu0 0.0
    %1447 = vmatpush1.msra.mxu0 0.0
    %1448 = vmatprep.subr.mxu0 0.0
    %1449 = vmatpush1.msra.mxu0 0.0
    %1450 = vmatprep.subr.mxu0 0.0
    %1451 = vmatpush1.msra.mxu0 0.0
    %1452 = vmatprep.subr.mxu0 0.0
    %1453 = vmatpush1.msra.mxu0 0.0
    %1454 = vmatprep.subr.mxu0 0.0
    %1455 = vmatpush1.msra.mxu0 0.0
    %1456 = vmatprep.subr.mxu0 0.0
    %1457 = vmatpush1.msra.mxu0 0.0
    %1458 = vmatprep.subr.mxu0 0.0
    %1459 = vmatpush1.msra.mxu0 0.0
    %1460 = vmatprep.subr.mxu0 0.0
    %1461 = vmatpush1.msra.mxu0 %v1422
    %1462 = vmatprep.subr.mxu0 0.0
    %1463 = vmatpush1.msra.mxu0 %v1421
    %1464 = vmatprep.subr.mxu0 0.0
    %1465 = vmatpush1.msra.mxu0 %v1420
    %1466 = vmatprep.subr.mxu0 0.0
    %1467 = vmatpush1.msra.mxu0 %v1419
    %1468 = vmatprep.subr.mxu0 0.0
    %1469 = vmatpush2.msra.mxu0 0.0
    %1470 = vmatprep.subr.mxu0 0.0
    %1471 = vmatpush2.msra.mxu0 0.0
    %1472 = vmatprep.subr.mxu0 0.0
    %1473 = vmatpush2.msra.mxu0 0.0
    %1474 = vmatprep.subr.mxu0 0.0
    %1475 = vmatpush2.msra.mxu0 0.0
    %1476 = vmatprep.subr.mxu0 0.0
    %1477 = vmatpush2.msra.mxu0 0.0
    %1478 = vmatprep.subr.mxu0 0.0
    %1479 = vmatpush2.msra.mxu0 0.0
    %1480 = vmatprep.subr.mxu0 0.0
    %1481 = vmatpush2.msra.mxu0 0.0
    %1482 = vmatprep.subr.mxu0 0.0
    %1483 = vmatpush2.msra.mxu0 0.0
    %1484 = vmatprep.subr.mxu0 0.0
    %1485 = vmatpush2.msra.mxu0 0.0
    %1486 = vmatprep.subr.mxu0 0.0
    %1487 = vmatpush2.msra.mxu0 0.0
    %1488 = vmatprep.subr.mxu0 0.0
    %1489 = vmatpush2.msra.mxu0 0.0
    %1490 = vmatprep.subr.mxu0 0.0
    %1491 = vmatpush2.msra.mxu0 0.0
    %1492 = vmatprep.subr.mxu0 0.0
    %1493 = vmatpush2.msra.mxu0 0.0
    %1494 = vmatprep.subr.mxu0 0.0
    %1495 = vmatpush2.msra.mxu0 0.0
    %1496 = vmatprep.subr.mxu0 0.0
    %1497 = vmatpush2.msra.mxu0 0.0
    %1498 = vmatprep.subr.mxu0 0.0
    %1499 = vmatpush2.msra.mxu0 0.0
    %1500 = vmatprep.mubr.f32.mxu0 0.0
    %1501 = vmatmul.mubr.f32.gmra.mxu0 %v1431
    %v1502 = vpop.f32.mrf.mxu0
    %v1503 = vadd.f32 %v1428, %v1502
    %v1504 = vpop.f32.mrf.mxu0
    %1505 = vmatprep.mubr.f32.mxu0 0.0
    %1506 = vmatmul.mubr.f32.gmra.mxu0 %v1434
    %v1507 = vpop.f32.mrf.mxu0
    %v1508 = vadd.f32 %v1428, %v1507
    %v1509 = vpop.f32.mrf.mxu0
    %1510 = vdwg.mxu0
    %v1511 = vsub.f32 0.0, %v1503
    %v1512 = vsub.f32 0.0, %v1508
    %v1513 = vmul.f32 %v1511, 1.442695
    %v1514 = vpow.pop %v1513
    %v1515 = vmul.f32 %v1512, 1.442695
    %v1516 = vpow.pop %v1515
    %v1517 = vadd.f32 %v1514, 1.0
    %v1518 = vadd.f32 %v1516, 1.0
    %v1519 = vrcp.pop %v1517
    %v1520 = vrcp.pop %v1518
    %v1521 = vsub.f32 %v1232, %v346
    %v1522 = vsub.f32 %v1237, %v347
    %1524 = vset.pattern.permute.xlu0 0
    %1525 = vperm.xlu0 %1524, %v1519
    %v1526 = vpop.permute.xlu0 %1525
    %1529 = vset.pattern.permute.xlu0 0
    %1530 = vperm.xlu0 %1529, %v1520
    %v1531 = vpop.permute.xlu0 %1530
    %v1533 = vmul.f32 %v1526, %v1521
    %v1534 = vmul.f32 %v1531, %v1522
    %v1535 = vadd.f32 %v346, %v1533
    %v1536 = vadd.f32 %v347, %v1534
    %s1537 = scalar_lea.vmem %s4, 32
    %v1538 = vld [vmem:[%s1537] sm:$0xff]
    %v1539 = vld [vmem:[%s1537 + $0x8] sm:$0xff]
    %v1540 = vld [vmem:[%s1537 + $0x10] sm:$0xff]
    %v1541 = vld [vmem:[%s1537 + $0x18] sm:$0xff]
    %s1542 = scalar_lea.vmem %s5, 1
    %v1543 = vld [vmem:[%s1542] sm:$0x1]
    %v1545 = vlaneseq
    %v1546 = vshrl.u32 %v1545, 7
    %v1547 = vsub.s32 0, %v1546
    %v1548 = vrot.slane %v1543, %v1547
    %v1551 = vsel %vm232, %v1535, 0
    %v1554 = vsel %vm232, %v1536, 0
    %1556 = vmatprep.subr.mxu0 0.0
    %1557 = vmatpush1.msra.mxu0 0.0
    %1558 = vmatprep.subr.mxu0 0.0
    %1559 = vmatpush1.msra.mxu0 0.0
    %1560 = vmatprep.subr.mxu0 0.0
    %1561 = vmatpush1.msra.mxu0 0.0
    %1562 = vmatprep.subr.mxu0 0.0
    %1563 = vmatpush1.msra.mxu0 0.0
    %1564 = vmatprep.subr.mxu0 0.0
    %1565 = vmatpush1.msra.mxu0 0.0
    %1566 = vmatprep.subr.mxu0 0.0
    %1567 = vmatpush1.msra.mxu0 0.0
    %1568 = vmatprep.subr.mxu0 0.0
    %1569 = vmatpush1.msra.mxu0 0.0
    %1570 = vmatprep.subr.mxu0 0.0
    %1571 = vmatpush1.msra.mxu0 0.0
    %1572 = vmatprep.subr.mxu0 0.0
    %1573 = vmatpush1.msra.mxu0 0.0
    %1574 = vmatprep.subr.mxu0 0.0
    %1575 = vmatpush1.msra.mxu0 0.0
    %1576 = vmatprep.subr.mxu0 0.0
    %1577 = vmatpush1.msra.mxu0 0.0
    %1578 = vmatprep.subr.mxu0 0.0
    %1579 = vmatpush1.msra.mxu0 0.0
    %1580 = vmatprep.subr.mxu0 0.0
    %1581 = vmatpush1.msra.mxu0 %v1541
    %1582 = vmatprep.subr.mxu0 0.0
    %1583 = vmatpush1.msra.mxu0 %v1540
    %1584 = vmatprep.subr.mxu0 0.0
    %1585 = vmatpush1.msra.mxu0 %v1539
    %1586 = vmatprep.subr.mxu0 0.0
    %1587 = vmatpush1.msra.mxu0 %v1538
    %1588 = vmatprep.subr.mxu0 0.0
    %1589 = vmatpush2.msra.mxu0 0.0
    %1590 = vmatprep.subr.mxu0 0.0
    %1591 = vmatpush2.msra.mxu0 0.0
    %1592 = vmatprep.subr.mxu0 0.0
    %1593 = vmatpush2.msra.mxu0 0.0
    %1594 = vmatprep.subr.mxu0 0.0
    %1595 = vmatpush2.msra.mxu0 0.0
    %1596 = vmatprep.subr.mxu0 0.0
    %1597 = vmatpush2.msra.mxu0 0.0
    %1598 = vmatprep.subr.mxu0 0.0
    %1599 = vmatpush2.msra.mxu0 0.0
    %1600 = vmatprep.subr.mxu0 0.0
    %1601 = vmatpush2.msra.mxu0 0.0
    %1602 = vmatprep.subr.mxu0 0.0
    %1603 = vmatpush2.msra.mxu0 0.0
    %1604 = vmatprep.subr.mxu0 0.0
    %1605 = vmatpush2.msra.mxu0 0.0
    %1606 = vmatprep.subr.mxu0 0.0
    %1607 = vmatpush2.msra.mxu0 0.0
    %1608 = vmatprep.subr.mxu0 0.0
    %1609 = vmatpush2.msra.mxu0 0.0
    %1610 = vmatprep.subr.mxu0 0.0
    %1611 = vmatpush2.msra.mxu0 0.0
    %1612 = vmatprep.subr.mxu0 0.0
    %1613 = vmatpush2.msra.mxu0 0.0
    %1614 = vmatprep.subr.mxu0 0.0
    %1615 = vmatpush2.msra.mxu0 0.0
    %1616 = vmatprep.subr.mxu0 0.0
    %1617 = vmatpush2.msra.mxu0 0.0
    %1618 = vmatprep.subr.mxu0 0.0
    %1619 = vmatpush2.msra.mxu0 0.0
    %1620 = vmatprep.mubr.f32.mxu0 0.0
    %1621 = vmatmul.mubr.f32.gmra.mxu0 %v1551
    %v1622 = vpop.f32.mrf.mxu0
    %v1623 = vadd.f32 %v1548, %v1622
    %v1624 = vpop.f32.mrf.mxu0
    %1625 = vmatprep.mubr.f32.mxu0 0.0
    %1626 = vmatmul.mubr.f32.gmra.mxu0 %v1554
    %v1627 = vpop.f32.mrf.mxu0
    %v1628 = vadd.f32 %v1548, %v1627
    %v1629 = vpop.f32.mrf.mxu0
    %1630 = vdwg.mxu0
    %1631 = vmatprep.subr.mxu0 0.0
    %1632 = vmatpush1.msra.mxu0 0.0
    %1633 = vmatprep.subr.mxu0 0.0
    %1634 = vmatpush1.msra.mxu0 0.0
    %1635 = vmatprep.subr.mxu0 0.0
    %1636 = vmatpush1.msra.mxu0 0.0
    %1637 = vmatprep.subr.mxu0 0.0
    %1638 = vmatpush1.msra.mxu0 0.0
    %1639 = vmatprep.subr.mxu0 0.0
    %1640 = vmatpush1.msra.mxu0 0.0
    %1641 = vmatprep.subr.mxu0 0.0
    %1642 = vmatpush1.msra.mxu0 0.0
    %1643 = vmatprep.subr.mxu0 0.0
    %1644 = vmatpush1.msra.mxu0 0.0
    %1645 = vmatprep.subr.mxu0 0.0
    %1646 = vmatpush1.msra.mxu0 0.0
    %1647 = vmatprep.subr.mxu0 0.0
    %1648 = vmatpush1.msra.mxu0 0.0
    %1649 = vmatprep.subr.mxu0 0.0
    %1650 = vmatpush1.msra.mxu0 0.0
    %1651 = vmatprep.subr.mxu0 0.0
    %1652 = vmatpush1.msra.mxu0 0.0
    %1653 = vmatprep.subr.mxu0 0.0
    %1654 = vmatpush1.msra.mxu0 0.0
    %1655 = vmatprep.subr.mxu0 0.0
    %1656 = vmatpush1.msra.mxu0 0.0
    %1657 = vmatprep.subr.mxu0 0.0
    %1658 = vmatpush1.msra.mxu0 0.0
    %1659 = vmatprep.subr.mxu0 0.0
    %1660 = vmatpush1.msra.mxu0 %v1628
    %1661 = vmatprep.subr.mxu0 0.0
    %1662 = vmatpush1.msra.mxu0 %v1623
    %1663 = vmatprep.subr.mxu0 0.0
    %1664 = vmatpush2.msra.mxu0 0.0
    %1665 = vmatprep.subr.mxu0 0.0
    %1666 = vmatpush2.msra.mxu0 0.0
    %1667 = vmatprep.subr.mxu0 0.0
    %1668 = vmatpush2.msra.mxu0 0.0
    %1669 = vmatprep.subr.mxu0 0.0
    %1670 = vmatpush2.msra.mxu0 0.0
    %1671 = vmatprep.subr.mxu0 0.0
    %1672 = vmatpush2.msra.mxu0 0.0
    %1673 = vmatprep.subr.mxu0 0.0
    %1674 = vmatpush2.msra.mxu0 0.0
    %1675 = vmatprep.subr.mxu0 0.0
    %1676 = vmatpush2.msra.mxu0 0.0
    %1677 = vmatprep.subr.mxu0 0.0
    %1678 = vmatpush2.msra.mxu0 0.0
    %1679 = vmatprep.subr.mxu0 0.0
    %1680 = vmatpush2.msra.mxu0 0.0
    %1681 = vmatprep.subr.mxu0 0.0
    %1682 = vmatpush2.msra.mxu0 0.0
    %1683 = vmatprep.subr.mxu0 0.0
    %1684 = vmatpush2.msra.mxu0 0.0
    %1685 = vmatprep.subr.mxu0 0.0
    %1686 = vmatpush2.msra.mxu0 0.0
    %1687 = vmatprep.subr.mxu0 0.0
    %1688 = vmatpush2.msra.mxu0 0.0
    %1689 = vmatprep.subr.mxu0 0.0
    %1690 = vmatpush2.msra.mxu0 0.0
    %1691 = vmatprep.subr.mxu0 0.0
    %1692 = vmatpush2.msra.mxu0 0.0
    %1693 = vmatprep.subr.mxu0 0.0
    %1694 = vmatpush2.msra.mxu0 0.0
    %1695 = vmatprep.mubr.f32.mxu0 0.0
    %1696 = vmatmul.mubr.f32.gmra.mxu0 %v442
    %v1697 = vpop.f32.mrf.mxu0
    %v1698 = vadd.f32 0.0, %v1697
    %v1699 = vpop.f32.mrf.mxu0
    %1700 = vmatprep.mubr.f32.mxu0 0.0
    %1701 = vmatmul.mubr.f32.gmra.mxu0 %v445
    %v1702 = vpop.f32.mrf.mxu0
    %v1703 = vadd.f32 0.0, %v1702
    %v1704 = vpop.f32.mrf.mxu0
    %1705 = vmatprep.mubr.f32.mxu0 0.0
    %1706 = vmatmul.mubr.f32.gmra.mxu0 %v448
    %v1707 = vpop.f32.mrf.mxu0
    %v1708 = vadd.f32 0.0, %v1707
    %v1709 = vpop.f32.mrf.mxu0
    %1710 = vmatprep.mubr.f32.mxu0 0.0
    %1711 = vmatmul.mubr.f32.gmra.mxu0 %v451
    %v1712 = vpop.f32.mrf.mxu0
    %v1713 = vadd.f32 0.0, %v1712
    %v1714 = vpop.f32.mrf.mxu0
    %1715 = vmatprep.mubr.f32.mxu0 0.0
    %1716 = vmatmul.mubr.f32.gmra.mxu0 %v454
    %v1717 = vpop.f32.mrf.mxu0
    %v1718 = vadd.f32 0.0, %v1717
    %v1719 = vpop.f32.mrf.mxu0
    %1720 = vmatprep.mubr.f32.mxu0 0.0
    %1721 = vmatmul.mubr.f32.gmra.mxu0 %v457
    %v1722 = vpop.f32.mrf.mxu0
    %v1723 = vadd.f32 0.0, %v1722
    %v1724 = vpop.f32.mrf.mxu0
    %1725 = vmatprep.mubr.f32.mxu0 0.0
    %1726 = vmatmul.mubr.f32.gmra.mxu0 %v460
    %v1727 = vpop.f32.mrf.mxu0
    %v1728 = vadd.f32 0.0, %v1727
    %v1729 = vpop.f32.mrf.mxu0
    %1730 = vmatprep.mubr.f32.mxu0 0.0
    %1731 = vmatmul.mubr.f32.gmra.mxu0 %v463
    %v1732 = vpop.f32.mrf.mxu0
    %v1733 = vadd.f32 0.0, %v1732
    %v1734 = vpop.f32.mrf.mxu0
    %1735 = vmatprep.mubr.f32.mxu0 0.0
    %1736 = vmatmul.mubr.f32.gmra.mxu0 %v466
    %v1737 = vpop.f32.mrf.mxu0
    %v1738 = vadd.f32 0.0, %v1737
    %v1739 = vpop.f32.mrf.mxu0
    %1740 = vmatprep.mubr.f32.mxu0 0.0
    %1741 = vmatmul.mubr.f32.gmra.mxu0 %v469
    %v1742 = vpop.f32.mrf.mxu0
    %v1743 = vadd.f32 0.0, %v1742
    %v1744 = vpop.f32.mrf.mxu0
    %1745 = vmatprep.mubr.f32.mxu0 0.0
    %1746 = vmatmul.mubr.f32.gmra.mxu0 %v472
    %v1747 = vpop.f32.mrf.mxu0
    %v1748 = vadd.f32 0.0, %v1747
    %v1749 = vpop.f32.mrf.mxu0
    %1750 = vmatprep.mubr.f32.mxu0 0.0
    %1751 = vmatmul.mubr.f32.gmra.mxu0 %v475
    %v1752 = vpop.f32.mrf.mxu0
    %v1753 = vadd.f32 0.0, %v1752
    %v1754 = vpop.f32.mrf.mxu0
    %1755 = vdwg.mxu0
    %v1756 = vadd.f32 %v1698, %v318
    %v1757 = vadd.f32 %v1703, %v323
    %v1758 = vadd.f32 %v1708, %v328
    %v1759 = vadd.f32 %v1713, %v333
    %v1760 = vadd.f32 %v1718, %v338
    %v1761 = vadd.f32 %v1723, %v343
    %1768 = vrot.lane.b32.xlu0 %v1756, 124
    %v1769 = vpop.permute.xlu0 %1768
    %1770 = vrot.lane.b32.xlu0 %v1757, 124
    %v1771 = vpop.permute.xlu0 %1770
    %1772 = vrot.lane.b32.xlu0 %v1758, 124
    %v1773 = vpop.permute.xlu0 %1772
    %1774 = vrot.lane.b32.xlu0 %v1759, 124
    %v1775 = vpop.permute.xlu0 %1774
    %1776 = vrot.lane.b32.xlu0 %v1760, 124
    %v1777 = vpop.permute.xlu0 %1776
    %1778 = vrot.lane.b32.xlu0 %v1761, 124
    %v1779 = vpop.permute.xlu0 %1778
    %v1786 = vmul.f32 %v1728, %v1769
    %v1787 = vmul.f32 %v1733, %v1771
    %v1788 = vmul.f32 %v1738, %v1773
    %v1789 = vmul.f32 %v1743, %v1775
    %v1790 = vmul.f32 %v1748, %v1777
    %v1791 = vmul.f32 %v1753, %v1779
    %vm1792 = vcmp.ge.f32.partialorder %v1786, 0.0
    %vm1793 = vcmp.ge.f32.partialorder %v1787, 0.0
    %vm1794 = vcmp.ge.f32.partialorder %v1788, 0.0
    %vm1795 = vcmp.ge.f32.partialorder %v1789, 0.0
    %vm1796 = vcmp.ge.f32.partialorder %v1790, 0.0
    %vm1797 = vcmp.ge.f32.partialorder %v1791, 0.0
    %v1798 = vmul.f32 %v1786, 0.2
    %v1799 = vmul.f32 %v1787, 0.2
    %v1800 = vmul.f32 %v1788, 0.2
    %v1801 = vmul.f32 %v1789, 0.2
    %v1802 = vmul.f32 %v1790, 0.2
    %v1803 = vmul.f32 %v1791, 0.2
    %v1804 = vsel %vm1792, %v1786, %v1798
    %v1805 = vsel %vm1793, %v1787, %v1799
    %v1806 = vsel %vm1794, %v1788, %v1800
    %v1807 = vsel %vm1795, %v1789, %v1801
    %v1808 = vsel %vm1796, %v1790, %v1802
    %v1809 = vsel %vm1797, %v1791, %v1803
    %s1810 = scalar_lea.vmem [#allocation5], 4
    %v1811 = vld [vmem:[%s1810] sm:$0xf]
    %s1812 = scalar_lea.vmem %s8, 1
    %v1813 = vld [vmem:[%s1812] sm:$0x1]
    %v1815 = vlaneseq
    %v1816 = vshrl.u32 %v1815, 7
    %v1817 = vsub.s32 0, %v1816
    %v1818 = vrot.slane %v1813, %v1817
    %v1821 = vsel %vm688, %v1804, 0
    %v1824 = vsel %vm688, %v1805, 0
    %v1827 = vsel %vm688, %v1806, 0
    %v1830 = vsel %vm688, %v1807, 0
    %v1833 = vsel %vm688, %v1808, 0
    %v1836 = vsel %vm688, %v1809, 0
    %v1839 = vsel %vm707, %v1811, 0
    %1841 = vmatprep.subr.mxu0 0.0
    %1842 = vmatpush1.msra.mxu0 0.0
    %1843 = vmatprep.subr.mxu0 0.0
    %1844 = vmatpush1.msra.mxu0 0.0
    %1845 = vmatprep.subr.mxu0 0.0
    %1846 = vmatpush1.msra.mxu0 0.0
    %1847 = vmatprep.subr.mxu0 0.0
    %1848 = vmatpush1.msra.mxu0 0.0
    %1849 = vmatprep.subr.mxu0 0.0
    %1850 = vmatpush1.msra.mxu0 0.0
    %1851 = vmatprep.subr.mxu0 0.0
    %1852 = vmatpush1.msra.mxu0 0.0
    %1853 = vmatprep.subr.mxu0 0.0
    %1854 = vmatpush1.msra.mxu0 0.0
    %1855 = vmatprep.subr.mxu0 0.0
    %1856 = vmatpush1.msra.mxu0 0.0
    %1857 = vmatprep.subr.mxu0 0.0
    %1858 = vmatpush1.msra.mxu0 0.0
    %1859 = vmatprep.subr.mxu0 0.0
    %1860 = vmatpush1.msra.mxu0 0.0
    %1861 = vmatprep.subr.mxu0 0.0
    %1862 = vmatpush1.msra.mxu0 0.0
    %1863 = vmatprep.subr.mxu0 0.0
    %1864 = vmatpush1.msra.mxu0 0.0
    %1865 = vmatprep.subr.mxu0 0.0
    %1866 = vmatpush1.msra.mxu0 0.0
    %1867 = vmatprep.subr.mxu0 0.0
    %1868 = vmatpush1.msra.mxu0 0.0
    %1869 = vmatprep.subr.mxu0 0.0
    %1870 = vmatpush1.msra.mxu0 0.0
    %1871 = vmatprep.subr.mxu0 0.0
    %1872 = vmatpush1.msra.mxu0 %v1839
    %1873 = vmatprep.subr.mxu0 0.0
    %1874 = vmatpush2.msra.mxu0 0.0
    %1875 = vmatprep.subr.mxu0 0.0
    %1876 = vmatpush2.msra.mxu0 0.0
    %1877 = vmatprep.subr.mxu0 0.0
    %1878 = vmatpush2.msra.mxu0 0.0
    %1879 = vmatprep.subr.mxu0 0.0
    %1880 = vmatpush2.msra.mxu0 0.0
    %1881 = vmatprep.subr.mxu0 0.0
    %1882 = vmatpush2.msra.mxu0 0.0
    %1883 = vmatprep.subr.mxu0 0.0
    %1884 = vmatpush2.msra.mxu0 0.0
    %1885 = vmatprep.subr.mxu0 0.0
    %1886 = vmatpush2.msra.mxu0 0.0
    %1887 = vmatprep.subr.mxu0 0.0
    %1888 = vmatpush2.msra.mxu0 0.0
    %1889 = vmatprep.subr.mxu0 0.0
    %1890 = vmatpush2.msra.mxu0 0.0
    %1891 = vmatprep.subr.mxu0 0.0
    %1892 = vmatpush2.msra.mxu0 0.0
    %1893 = vmatprep.subr.mxu0 0.0
    %1894 = vmatpush2.msra.mxu0 0.0
    %1895 = vmatprep.subr.mxu0 0.0
    %1896 = vmatpush2.msra.mxu0 0.0
    %1897 = vmatprep.subr.mxu0 0.0
    %1898 = vmatpush2.msra.mxu0 0.0
    %1899 = vmatprep.subr.mxu0 0.0
    %1900 = vmatpush2.msra.mxu0 0.0
    %1901 = vmatprep.subr.mxu0 0.0
    %1902 = vmatpush2.msra.mxu0 0.0
    %1903 = vmatprep.subr.mxu0 0.0
    %1904 = vmatpush2.msra.mxu0 0.0
    %1905 = vmatprep.mubr.f32.mxu0 0.0
    %1906 = vmatmul.mubr.f32.gmra.mxu0 %v1821
    %v1907 = vpop.f32.mrf.mxu0
    %v1908 = vadd.f32 %v1818, %v1907
    %v1909 = vpop.f32.mrf.mxu0
    %1910 = vmatprep.mubr.f32.mxu0 0.0
    %1911 = vmatmul.mubr.f32.gmra.mxu0 %v1824
    %v1912 = vpop.f32.mrf.mxu0
    %v1913 = vadd.f32 %v1818, %v1912
    %v1914 = vpop.f32.mrf.mxu0
    %1915 = vmatprep.mubr.f32.mxu0 0.0
    %1916 = vmatmul.mubr.f32.gmra.mxu0 %v1827
    %v1917 = vpop.f32.mrf.mxu0
    %v1918 = vadd.f32 %v1818, %v1917
    %v1919 = vpop.f32.mrf.mxu0
    %1920 = vmatprep.mubr.f32.mxu0 0.0
    %1921 = vmatmul.mubr.f32.gmra.mxu0 %v1830
    %v1922 = vpop.f32.mrf.mxu0
    %v1923 = vadd.f32 %v1818, %v1922
    %v1924 = vpop.f32.mrf.mxu0
    %1925 = vmatprep.mubr.f32.mxu0 0.0
    %1926 = vmatmul.mubr.f32.gmra.mxu0 %v1833
    %v1927 = vpop.f32.mrf.mxu0
    %v1928 = vadd.f32 %v1818, %v1927
    %v1929 = vpop.f32.mrf.mxu0
    %1930 = vmatprep.mubr.f32.mxu0 0.0
    %1931 = vmatmul.mubr.f32.gmra.mxu0 %v1836
    %v1932 = vpop.f32.mrf.mxu0
    %v1933 = vadd.f32 %v1818, %v1932
    %v1934 = vpop.f32.mrf.mxu0
    %1935 = vdwg.mxu0
    %v1936 = vmul.f32 %v1908, 1.442695
    %v1937 = vpow.pop %v1936
    %v1938 = vmul.f32 %v1913, 1.442695
    %v1939 = vpow.pop %v1938
    %v1940 = vmul.f32 %v1918, 1.442695
    %v1941 = vpow.pop %v1940
    %v1942 = vmul.f32 %v1923, 1.442695
    %v1943 = vpow.pop %v1942
    %v1944 = vmul.f32 %v1928, 1.442695
    %v1945 = vpow.pop %v1944
    %v1946 = vmul.f32 %v1933, 1.442695
    %v1947 = vpow.pop %v1946
    %1948 = vmatprep.subr.mxu0 0.0
    %1949 = vmatpush1.msra.mxu0 0.0
    %1950 = vmatprep.subr.mxu0 0.0
    %1951 = vmatpush1.msra.mxu0 0.0
    %1952 = vmatprep.subr.mxu0 0.0
    %1953 = vmatpush1.msra.mxu0 0.0
    %1954 = vmatprep.subr.mxu0 0.0
    %1955 = vmatpush1.msra.mxu0 0.0
    %1956 = vmatprep.subr.mxu0 0.0
    %1957 = vmatpush1.msra.mxu0 0.0
    %1958 = vmatprep.subr.mxu0 0.0
    %1959 = vmatpush1.msra.mxu0 0.0
    %1960 = vmatprep.subr.mxu0 0.0
    %1961 = vmatpush1.msra.mxu0 0.0
    %1962 = vmatprep.subr.mxu0 0.0
    %1963 = vmatpush1.msra.mxu0 0.0
    %1964 = vmatprep.subr.mxu0 0.0
    %1965 = vmatpush1.msra.mxu0 0.0
    %1966 = vmatprep.subr.mxu0 0.0
    %1967 = vmatpush1.msra.mxu0 0.0
    %1968 = vmatprep.subr.mxu0 0.0
    %1969 = vmatpush1.msra.mxu0 %v1947
    %1970 = vmatprep.subr.mxu0 0.0
    %1971 = vmatpush1.msra.mxu0 %v1945
    %1972 = vmatprep.subr.mxu0 0.0
    %1973 = vmatpush1.msra.mxu0 %v1943
    %1974 = vmatprep.subr.mxu0 0.0
    %1975 = vmatpush1.msra.mxu0 %v1941
    %1976 = vmatprep.subr.mxu0 0.0
    %1977 = vmatpush1.msra.mxu0 %v1939
    %1978 = vmatprep.subr.mxu0 0.0
    %1979 = vmatpush1.msra.mxu0 %v1937
    %1980 = vmatprep.subr.mxu0 0.0
    %1981 = vmatpush2.msra.mxu0 0.0
    %1982 = vmatprep.subr.mxu0 0.0
    %1983 = vmatpush2.msra.mxu0 0.0
    %1984 = vmatprep.subr.mxu0 0.0
    %1985 = vmatpush2.msra.mxu0 0.0
    %1986 = vmatprep.subr.mxu0 0.0
    %1987 = vmatpush2.msra.mxu0 0.0
    %1988 = vmatprep.subr.mxu0 0.0
    %1989 = vmatpush2.msra.mxu0 0.0
    %1990 = vmatprep.subr.mxu0 0.0
    %1991 = vmatpush2.msra.mxu0 0.0
    %1992 = vmatprep.subr.mxu0 0.0
    %1993 = vmatpush2.msra.mxu0 0.0
    %1994 = vmatprep.subr.mxu0 0.0
    %1995 = vmatpush2.msra.mxu0 0.0
    %1996 = vmatprep.subr.mxu0 0.0
    %1997 = vmatpush2.msra.mxu0 0.0
    %1998 = vmatprep.subr.mxu0 0.0
    %1999 = vmatpush2.msra.mxu0 0.0
    %2000 = vmatprep.subr.mxu0 0.0
    %2001 = vmatpush2.msra.mxu0 0.0
    %2002 = vmatprep.subr.mxu0 0.0
    %2003 = vmatpush2.msra.mxu0 0.0
    %2004 = vmatprep.subr.mxu0 0.0
    %2005 = vmatpush2.msra.mxu0 0.0
    %2006 = vmatprep.subr.mxu0 0.0
    %2007 = vmatpush2.msra.mxu0 0.0
    %2008 = vmatprep.subr.mxu0 0.0
    %2009 = vmatpush2.msra.mxu0 0.0
    %2010 = vmatprep.subr.mxu0 0.0
    %2011 = vmatpush2.msra.mxu0 0.0
    %2012 = vmatprep.mubr.f32.mxu0 0.0
    %2013 = vmatmul.mubr.f32.gmra.mxu0 %v825
    %v2014 = vpop.f32.mrf.mxu0
    %v2015 = vadd.f32 0.0, %v2014
    %v2016 = vpop.f32.mrf.mxu0
    %2017 = vmatprep.mubr.f32.mxu0 0.0
    %2018 = vmatmul.mubr.f32.gmra.mxu0 %v827
    %v2019 = vpop.f32.mrf.mxu0
    %v2020 = vadd.f32 0.0, %v2019
    %v2021 = vpop.f32.mrf.mxu0
    %2022 = vdwg.mxu0
    %vm2023 = vcmp.eq.f32.partialorder %v2015, 0.0
    %vm2024 = vcmp.eq.f32.partialorder %v2020, 0.0
    %v2025 = vsel %vm2023, 1.0, %v2015
    %v2026 = vsel %vm2024, 1.0, %v2020
    %v2027 = vrcp.pop %v2025
    %v2028 = vrcp.pop %v2026
    %2029 = vmatprep.subr.mxu0 0.0
    %2030 = vmatpush1.msra.mxu0 0.0
    %2031 = vmatprep.subr.mxu0 0.0
    %2032 = vmatpush1.msra.mxu0 0.0
    %2033 = vmatprep.subr.mxu0 0.0
    %2034 = vmatpush1.msra.mxu0 0.0
    %2035 = vmatprep.subr.mxu0 0.0
    %2036 = vmatpush1.msra.mxu0 0.0
    %2037 = vmatprep.subr.mxu0 0.0
    %2038 = vmatpush1.msra.mxu0 0.0
    %2039 = vmatprep.subr.mxu0 0.0
    %2040 = vmatpush1.msra.mxu0 0.0
    %2041 = vmatprep.subr.mxu0 0.0
    %2042 = vmatpush1.msra.mxu0 0.0
    %2043 = vmatprep.subr.mxu0 0.0
    %2044 = vmatpush1.msra.mxu0 0.0
    %2045 = vmatprep.subr.mxu0 0.0
    %2046 = vmatpush1.msra.mxu0 0.0
    %2047 = vmatprep.subr.mxu0 0.0
    %2048 = vmatpush1.msra.mxu0 0.0
    %2049 = vmatprep.subr.mxu0 0.0
    %2050 = vmatpush1.msra.mxu0 0.0
    %2051 = vmatprep.subr.mxu0 0.0
    %2052 = vmatpush1.msra.mxu0 0.0
    %2053 = vmatprep.subr.mxu0 0.0
    %2054 = vmatpush1.msra.mxu0 0.0
    %2055 = vmatprep.subr.mxu0 0.0
    %2056 = vmatpush1.msra.mxu0 0.0
    %2057 = vmatprep.subr.mxu0 0.0
    %2058 = vmatpush1.msra.mxu0 %v2028
    %2059 = vmatprep.subr.mxu0 0.0
    %2060 = vmatpush1.msra.mxu0 %v2027
    %2061 = vmatprep.subr.mxu0 0.0
    %2062 = vmatpush2.msra.mxu0 0.0
    %2063 = vmatprep.subr.mxu0 0.0
    %2064 = vmatpush2.msra.mxu0 0.0
    %2065 = vmatprep.subr.mxu0 0.0
    %2066 = vmatpush2.msra.mxu0 0.0
    %2067 = vmatprep.subr.mxu0 0.0
    %2068 = vmatpush2.msra.mxu0 0.0
    %2069 = vmatprep.subr.mxu0 0.0
    %2070 = vmatpush2.msra.mxu0 0.0
    %2071 = vmatprep.subr.mxu0 0.0
    %2072 = vmatpush2.msra.mxu0 0.0
    %2073 = vmatprep.subr.mxu0 0.0
    %2074 = vmatpush2.msra.mxu0 0.0
    %2075 = vmatprep.subr.mxu0 0.0
    %2076 = vmatpush2.msra.mxu0 0.0
    %2077 = vmatprep.subr.mxu0 0.0
    %2078 = vmatpush2.msra.mxu0 0.0
    %2079 = vmatprep.subr.mxu0 0.0
    %2080 = vmatpush2.msra.mxu0 0.0
    %2081 = vmatprep.subr.mxu0 0.0
    %2082 = vmatpush2.msra.mxu0 0.0
    %2083 = vmatprep.subr.mxu0 0.0
    %2084 = vmatpush2.msra.mxu0 0.0
    %2085 = vmatprep.subr.mxu0 0.0
    %2086 = vmatpush2.msra.mxu0 0.0
    %2087 = vmatprep.subr.mxu0 0.0
    %2088 = vmatpush2.msra.mxu0 0.0
    %2089 = vmatprep.subr.mxu0 0.0
    %2090 = vmatpush2.msra.mxu0 0.0
    %2091 = vmatprep.subr.mxu0 0.0
    %2092 = vmatpush2.msra.mxu0 0.0
    %2093 = vmatprep.mubr.f32.mxu0 0.0
    %2094 = vmatmul.mubr.f32.gmra.mxu0 %v460
    %v2095 = vpop.f32.mrf.mxu0
    %v2096 = vadd.f32 0.0, %v2095
    %v2097 = vpop.f32.mrf.mxu0
    %2098 = vmatprep.mubr.f32.mxu0 0.0
    %2099 = vmatmul.mubr.f32.gmra.mxu0 %v463
    %v2100 = vpop.f32.mrf.mxu0
    %v2101 = vadd.f32 0.0, %v2100
    %v2102 = vpop.f32.mrf.mxu0
    %2103 = vmatprep.mubr.f32.mxu0 0.0
    %2104 = vmatmul.mubr.f32.gmra.mxu0 %v466
    %v2105 = vpop.f32.mrf.mxu0
    %v2106 = vadd.f32 0.0, %v2105
    %v2107 = vpop.f32.mrf.mxu0
    %2108 = vmatprep.mubr.f32.mxu0 0.0
    %2109 = vmatmul.mubr.f32.gmra.mxu0 %v469
    %v2110 = vpop.f32.mrf.mxu0
    %v2111 = vadd.f32 0.0, %v2110
    %v2112 = vpop.f32.mrf.mxu0
    %2113 = vmatprep.mubr.f32.mxu0 0.0
    %2114 = vmatmul.mubr.f32.gmra.mxu0 %v472
    %v2115 = vpop.f32.mrf.mxu0
    %v2116 = vadd.f32 0.0, %v2115
    %v2117 = vpop.f32.mrf.mxu0
    %2118 = vmatprep.mubr.f32.mxu0 0.0
    %2119 = vmatmul.mubr.f32.gmra.mxu0 %v475
    %v2120 = vpop.f32.mrf.mxu0
    %v2121 = vadd.f32 0.0, %v2120
    %v2122 = vpop.f32.mrf.mxu0
    %2123 = vdwg.mxu0
    %v2124 = vmul.f32 %v1937, %v2096
    %v2125 = vmul.f32 %v1939, %v2101
    %v2126 = vmul.f32 %v1941, %v2106
    %v2127 = vmul.f32 %v1943, %v2111
    %v2128 = vmul.f32 %v1945, %v2116
    %v2129 = vmul.f32 %v1947, %v2121
    %2136 = vrot.lane.b32.xlu0 %v1698, 120
    %v2137 = vpop.permute.xlu0 %2136
    %2138 = vrot.lane.b32.xlu0 %v1703, 120
    %v2139 = vpop.permute.xlu0 %2138
    %2140 = vrot.lane.b32.xlu0 %v1708, 120
    %v2141 = vpop.permute.xlu0 %2140
    %2142 = vrot.lane.b32.xlu0 %v1713, 120
    %v2143 = vpop.permute.xlu0 %2142
    %2144 = vrot.lane.b32.xlu0 %v1718, 120
    %v2145 = vpop.permute.xlu0 %2144
    %2146 = vrot.lane.b32.xlu0 %v1723, 120
    %v2147 = vpop.permute.xlu0 %2146
    %v2154 = vmul.f32 %v2124, %v2137
    %v2155 = vmul.f32 %v2125, %v2139
    %v2156 = vmul.f32 %v2126, %v2141
    %v2157 = vmul.f32 %v2127, %v2143
    %v2158 = vmul.f32 %v2128, %v2145
    %v2159 = vmul.f32 %v2129, %v2147
    %s2160 = scalar_lea.vmem %s9, 32
    %v2161 = vld [vmem:[%s2160] sm:$0xff]
    %v2162 = vld [vmem:[%s2160 + $0x8] sm:$0xff]
    %v2163 = vld [vmem:[%s2160 + $0x10] sm:$0xff]
    %v2164 = vld [vmem:[%s2160 + $0x18] sm:$0xff]
    %s2165 = scalar_lea.vmem [#allocation7], 1
    %v2166 = vld [vmem:[%s2165] sm:$0x1]
    %v2168 = vlaneseq
    %v2169 = vshrl.u32 %v2168, 7
    %v2170 = vsub.s32 0, %v2169
    %v2171 = vrot.slane %v2166, %v2170
    %v2174 = vsel %vm232, %v2154, 0
    %v2177 = vsel %vm232, %v2155, 0
    %v2180 = vsel %vm232, %v2156, 0
    %v2183 = vsel %vm232, %v2157, 0
    %v2186 = vsel %vm232, %v2158, 0
    %v2189 = vsel %vm232, %v2159, 0
    %2191 = vmatprep.subr.mxu0 0.0
    %2192 = vmatpush1.msra.mxu0 0.0
    %2193 = vmatprep.subr.mxu0 0.0
    %2194 = vmatpush1.msra.mxu0 0.0
    %2195 = vmatprep.subr.mxu0 0.0
    %2196 = vmatpush1.msra.mxu0 0.0
    %2197 = vmatprep.subr.mxu0 0.0
    %2198 = vmatpush1.msra.mxu0 0.0
    %2199 = vmatprep.subr.mxu0 0.0
    %2200 = vmatpush1.msra.mxu0 0.0
    %2201 = vmatprep.subr.mxu0 0.0
    %2202 = vmatpush1.msra.mxu0 0.0
    %2203 = vmatprep.subr.mxu0 0.0
    %2204 = vmatpush1.msra.mxu0 0.0
    %2205 = vmatprep.subr.mxu0 0.0
    %2206 = vmatpush1.msra.mxu0 0.0
    %2207 = vmatprep.subr.mxu0 0.0
    %2208 = vmatpush1.msra.mxu0 0.0
    %2209 = vmatprep.subr.mxu0 0.0
    %2210 = vmatpush1.msra.mxu0 0.0
    %2211 = vmatprep.subr.mxu0 0.0
    %2212 = vmatpush1.msra.mxu0 0.0
    %2213 = vmatprep.subr.mxu0 0.0
    %2214 = vmatpush1.msra.mxu0 0.0
    %2215 = vmatprep.subr.mxu0 0.0
    %2216 = vmatpush1.msra.mxu0 %v2164
    %2217 = vmatprep.subr.mxu0 0.0
    %2218 = vmatpush1.msra.mxu0 %v2163
    %2219 = vmatprep.subr.mxu0 0.0
    %2220 = vmatpush1.msra.mxu0 %v2162
    %2221 = vmatprep.subr.mxu0 0.0
    %2222 = vmatpush1.msra.mxu0 %v2161
    %2223 = vmatprep.subr.mxu0 0.0
    %2224 = vmatpush2.msra.mxu0 0.0
    %2225 = vmatprep.subr.mxu0 0.0
    %2226 = vmatpush2.msra.mxu0 0.0
    %2227 = vmatprep.subr.mxu0 0.0
    %2228 = vmatpush2.msra.mxu0 0.0
    %2229 = vmatprep.subr.mxu0 0.0
    %2230 = vmatpush2.msra.mxu0 0.0
    %2231 = vmatprep.subr.mxu0 0.0
    %2232 = vmatpush2.msra.mxu0 0.0
    %2233 = vmatprep.subr.mxu0 0.0
    %2234 = vmatpush2.msra.mxu0 0.0
    %2235 = vmatprep.subr.mxu0 0.0
    %2236 = vmatpush2.msra.mxu0 0.0
    %2237 = vmatprep.subr.mxu0 0.0
    %2238 = vmatpush2.msra.mxu0 0.0
    %2239 = vmatprep.subr.mxu0 0.0
    %2240 = vmatpush2.msra.mxu0 0.0
    %2241 = vmatprep.subr.mxu0 0.0
    %2242 = vmatpush2.msra.mxu0 0.0
    %2243 = vmatprep.subr.mxu0 0.0
    %2244 = vmatpush2.msra.mxu0 0.0
    %2245 = vmatprep.subr.mxu0 0.0
    %2246 = vmatpush2.msra.mxu0 0.0
    %2247 = vmatprep.subr.mxu0 0.0
    %2248 = vmatpush2.msra.mxu0 0.0
    %2249 = vmatprep.subr.mxu0 0.0
    %2250 = vmatpush2.msra.mxu0 0.0
    %2251 = vmatprep.subr.mxu0 0.0
    %2252 = vmatpush2.msra.mxu0 0.0
    %2253 = vmatprep.subr.mxu0 0.0
    %2254 = vmatpush2.msra.mxu0 0.0
    %2255 = vmatprep.mubr.f32.mxu0 0.0
    %2256 = vmatmul.mubr.f32.gmra.mxu0 %v2174
    %v2257 = vpop.f32.mrf.mxu0
    %v2258 = vadd.f32 %v2171, %v2257
    %v2259 = vpop.f32.mrf.mxu0
    %2260 = vmatprep.mubr.f32.mxu0 0.0
    %2261 = vmatmul.mubr.f32.gmra.mxu0 %v2177
    %v2262 = vpop.f32.mrf.mxu0
    %v2263 = vadd.f32 %v2171, %v2262
    %v2264 = vpop.f32.mrf.mxu0
    %2265 = vmatprep.mubr.f32.mxu0 0.0
    %2266 = vmatmul.mubr.f32.gmra.mxu0 %v2180
    %v2267 = vpop.f32.mrf.mxu0
    %v2268 = vadd.f32 %v2171, %v2267
    %v2269 = vpop.f32.mrf.mxu0
    %2270 = vmatprep.mubr.f32.mxu0 0.0
    %2271 = vmatmul.mubr.f32.gmra.mxu0 %v2183
    %v2272 = vpop.f32.mrf.mxu0
    %v2273 = vadd.f32 %v2171, %v2272
    %v2274 = vpop.f32.mrf.mxu0
    %2275 = vmatprep.mubr.f32.mxu0 0.0
    %2276 = vmatmul.mubr.f32.gmra.mxu0 %v2186
    %v2277 = vpop.f32.mrf.mxu0
    %v2278 = vadd.f32 %v2171, %v2277
    %v2279 = vpop.f32.mrf.mxu0
    %2280 = vmatprep.mubr.f32.mxu0 0.0
    %2281 = vmatmul.mubr.f32.gmra.mxu0 %v2189
    %v2282 = vpop.f32.mrf.mxu0
    %v2283 = vadd.f32 %v2171, %v2282
    %v2284 = vpop.f32.mrf.mxu0
    %2285 = vdwg.mxu0
    %2286 = vmatprep.subr.mxu0 0.0
    %2287 = vmatpush1.msra.mxu0 0.0
    %2288 = vmatprep.subr.mxu0 0.0
    %2289 = vmatpush1.msra.mxu0 0.0
    %2290 = vmatprep.subr.mxu0 0.0
    %2291 = vmatpush1.msra.mxu0 0.0
    %2292 = vmatprep.subr.mxu0 0.0
    %2293 = vmatpush1.msra.mxu0 0.0
    %2294 = vmatprep.subr.mxu0 0.0
    %2295 = vmatpush1.msra.mxu0 0.0
    %2296 = vmatprep.subr.mxu0 0.0
    %2297 = vmatpush1.msra.mxu0 0.0
    %2298 = vmatprep.subr.mxu0 0.0
    %2299 = vmatpush1.msra.mxu0 0.0
    %2300 = vmatprep.subr.mxu0 0.0
    %2301 = vmatpush1.msra.mxu0 0.0
    %2302 = vmatprep.subr.mxu0 0.0
    %2303 = vmatpush1.msra.mxu0 0.0
    %2304 = vmatprep.subr.mxu0 0.0
    %2305 = vmatpush1.msra.mxu0 0.0
    %2306 = vmatprep.subr.mxu0 0.0
    %2307 = vmatpush1.msra.mxu0 %v2283
    %2308 = vmatprep.subr.mxu0 0.0
    %2309 = vmatpush1.msra.mxu0 %v2278
    %2310 = vmatprep.subr.mxu0 0.0
    %2311 = vmatpush1.msra.mxu0 %v2273
    %2312 = vmatprep.subr.mxu0 0.0
    %2313 = vmatpush1.msra.mxu0 %v2268
    %2314 = vmatprep.subr.mxu0 0.0
    %2315 = vmatpush1.msra.mxu0 %v2263
    %2316 = vmatprep.subr.mxu0 0.0
    %2317 = vmatpush1.msra.mxu0 %v2258
    %2318 = vmatprep.subr.mxu0 0.0
    %2319 = vmatpush2.msra.mxu0 0.0
    %2320 = vmatprep.subr.mxu0 0.0
    %2321 = vmatpush2.msra.mxu0 0.0
    %2322 = vmatprep.subr.mxu0 0.0
    %2323 = vmatpush2.msra.mxu0 0.0
    %2324 = vmatprep.subr.mxu0 0.0
    %2325 = vmatpush2.msra.mxu0 0.0
    %2326 = vmatprep.subr.mxu0 0.0
    %2327 = vmatpush2.msra.mxu0 0.0
    %2328 = vmatprep.subr.mxu0 0.0
    %2329 = vmatpush2.msra.mxu0 0.0
    %2330 = vmatprep.subr.mxu0 0.0
    %2331 = vmatpush2.msra.mxu0 0.0
    %2332 = vmatprep.subr.mxu0 0.0
    %2333 = vmatpush2.msra.mxu0 0.0
    %2334 = vmatprep.subr.mxu0 0.0
    %2335 = vmatpush2.msra.mxu0 0.0
    %2336 = vmatprep.subr.mxu0 0.0
    %2337 = vmatpush2.msra.mxu0 0.0
    %2338 = vmatprep.subr.mxu0 0.0
    %2339 = vmatpush2.msra.mxu0 0.0
    %2340 = vmatprep.subr.mxu0 0.0
    %2341 = vmatpush2.msra.mxu0 0.0
    %2342 = vmatprep.subr.mxu0 0.0
    %2343 = vmatpush2.msra.mxu0 0.0
    %2344 = vmatprep.subr.mxu0 0.0
    %2345 = vmatpush2.msra.mxu0 0.0
    %2346 = vmatprep.subr.mxu0 0.0
    %2347 = vmatpush2.msra.mxu0 0.0
    %2348 = vmatprep.subr.mxu0 0.0
    %2349 = vmatpush2.msra.mxu0 0.0
    %2350 = vmatprep.mubr.f32.mxu0 0.0
    %2351 = vmatmul.mubr.f32.gmra.mxu0 %v825
    %v2352 = vpop.f32.mrf.mxu0
    %v2353 = vadd.f32 0.0, %v2352
    %v2354 = vpop.f32.mrf.mxu0
    %2355 = vmatprep.mubr.f32.mxu0 0.0
    %2356 = vmatmul.mubr.f32.gmra.mxu0 %v827
    %v2357 = vpop.f32.mrf.mxu0
    %v2358 = vadd.f32 0.0, %v2357
    %v2359 = vpop.f32.mrf.mxu0
    %2360 = vdwg.mxu0
    %s2361 = scalar_lea.vmem %s11, 32
    %v2362 = vld [vmem:[%s2361] sm:$0xff]
    %v2363 = vld [vmem:[%s2361 + $0x8] sm:$0xff]
    %v2364 = vld [vmem:[%s2361 + $0x10] sm:$0xff]
    %v2365 = vld [vmem:[%s2361 + $0x18] sm:$0xff]
    %s2366 = scalar_lea.vmem [#allocation8], 32
    %v2367 = vld [vmem:[%s2366] sm:$0xff]
    %v2368 = vld [vmem:[%s2366 + $0x8] sm:$0xff]
    %v2369 = vld [vmem:[%s2366 + $0x10] sm:$0xff]
    %v2370 = vld [vmem:[%s2366 + $0x18] sm:$0xff]
    %v2372 = vsel %vm232, %v2353, 0
    %v2375 = vsel %vm232, %v2358, 0
    %2377 = vmatprep.subr.mxu0 0.0
    %2378 = vmatpush1.msra.mxu0 0.0
    %2379 = vmatprep.subr.mxu0 0.0
    %2380 = vmatpush1.msra.mxu0 0.0
    %2381 = vmatprep.subr.mxu0 0.0
    %2382 = vmatpush1.msra.mxu0 0.0
    %2383 = vmatprep.subr.mxu0 0.0
    %2384 = vmatpush1.msra.mxu0 0.0
    %2385 = vmatprep.subr.mxu0 0.0
    %2386 = vmatpush1.msra.mxu0 0.0
    %2387 = vmatprep.subr.mxu0 0.0
    %2388 = vmatpush1.msra.mxu0 0.0
    %2389 = vmatprep.subr.mxu0 0.0
    %2390 = vmatpush1.msra.mxu0 0.0
    %2391 = vmatprep.subr.mxu0 0.0
    %2392 = vmatpush1.msra.mxu0 0.0
    %2393 = vmatprep.subr.mxu0 0.0
    %2394 = vmatpush1.msra.mxu0 0.0
    %2395 = vmatprep.subr.mxu0 0.0
    %2396 = vmatpush1.msra.mxu0 0.0
    %2397 = vmatprep.subr.mxu0 0.0
    %2398 = vmatpush1.msra.mxu0 0.0
    %2399 = vmatprep.subr.mxu0 0.0
    %2400 = vmatpush1.msra.mxu0 0.0
    %2401 = vmatprep.subr.mxu0 0.0
    %2402 = vmatpush1.msra.mxu0 %v2370
    %2403 = vmatprep.subr.mxu0 0.0
    %2404 = vmatpush1.msra.mxu0 %v2369
    %2405 = vmatprep.subr.mxu0 0.0
    %2406 = vmatpush1.msra.mxu0 %v2368
    %2407 = vmatprep.subr.mxu0 0.0
    %2408 = vmatpush1.msra.mxu0 %v2367
    %2409 = vmatprep.subr.mxu0 0.0
    %2410 = vmatpush2.msra.mxu0 0.0
    %2411 = vmatprep.subr.mxu0 0.0
    %2412 = vmatpush2.msra.mxu0 0.0
    %2413 = vmatprep.subr.mxu0 0.0
    %2414 = vmatpush2.msra.mxu0 0.0
    %2415 = vmatprep.subr.mxu0 0.0
    %2416 = vmatpush2.msra.mxu0 0.0
    %2417 = vmatprep.subr.mxu0 0.0
    %2418 = vmatpush2.msra.mxu0 0.0
    %2419 = vmatprep.subr.mxu0 0.0
    %2420 = vmatpush2.msra.mxu0 0.0
    %2421 = vmatprep.subr.mxu0 0.0
    %2422 = vmatpush2.msra.mxu0 0.0
    %2423 = vmatprep.subr.mxu0 0.0
    %2424 = vmatpush2.msra.mxu0 0.0
    %2425 = vmatprep.subr.mxu0 0.0
    %2426 = vmatpush2.msra.mxu0 0.0
    %2427 = vmatprep.subr.mxu0 0.0
    %2428 = vmatpush2.msra.mxu0 0.0
    %2429 = vmatprep.subr.mxu0 0.0
    %2430 = vmatpush2.msra.mxu0 0.0
    %2431 = vmatprep.subr.mxu0 0.0
    %2432 = vmatpush2.msra.mxu0 0.0
    %2433 = vmatprep.subr.mxu0 0.0
    %2434 = vmatpush2.msra.mxu0 0.0
    %2435 = vmatprep.subr.mxu0 0.0
    %2436 = vmatpush2.msra.mxu0 0.0
    %2437 = vmatprep.subr.mxu0 0.0
    %2438 = vmatpush2.msra.mxu0 0.0
    %2439 = vmatprep.subr.mxu0 0.0
    %2440 = vmatpush2.msra.mxu0 0.0
    %2441 = vmatprep.mubr.f32.mxu0 0.0
    %2442 = vmatmul.mubr.f32.gmra.mxu0 %v2372
    %v2443 = vpop.f32.mrf.mxu0
    %v2444 = vadd.f32 0.0, %v2443
    %v2445 = vpop.f32.mrf.mxu0
    %2446 = vmatprep.mubr.f32.mxu0 0.0
    %2447 = vmatmul.mubr.f32.gmra.mxu0 %v2375
    %v2448 = vpop.f32.mrf.mxu0
    %v2449 = vadd.f32 0.0, %v2448
    %v2450 = vpop.f32.mrf.mxu0
    %2451 = vdwg.mxu0
    %2452 = vmatprep.subr.mxu0 0.0
    %2453 = vmatpush1.msra.mxu0 0.0
    %2454 = vmatprep.subr.mxu0 0.0
    %2455 = vmatpush1.msra.mxu0 0.0
    %2456 = vmatprep.subr.mxu0 0.0
    %2457 = vmatpush1.msra.mxu0 0.0
    %2458 = vmatprep.subr.mxu0 0.0
    %2459 = vmatpush1.msra.mxu0 0.0
    %2460 = vmatprep.subr.mxu0 0.0
    %2461 = vmatpush1.msra.mxu0 0.0
    %2462 = vmatprep.subr.mxu0 0.0
    %2463 = vmatpush1.msra.mxu0 0.0
    %2464 = vmatprep.subr.mxu0 0.0
    %2465 = vmatpush1.msra.mxu0 0.0
    %2466 = vmatprep.subr.mxu0 0.0
    %2467 = vmatpush1.msra.mxu0 0.0
    %2468 = vmatprep.subr.mxu0 0.0
    %2469 = vmatpush1.msra.mxu0 0.0
    %2470 = vmatprep.subr.mxu0 0.0
    %2471 = vmatpush1.msra.mxu0 0.0
    %2472 = vmatprep.subr.mxu0 0.0
    %2473 = vmatpush1.msra.mxu0 0.0
    %2474 = vmatprep.subr.mxu0 0.0
    %2475 = vmatpush1.msra.mxu0 0.0
    %2476 = vmatprep.subr.mxu0 0.0
    %2477 = vmatpush1.msra.mxu0 %v2365
    %2478 = vmatprep.subr.mxu0 0.0
    %2479 = vmatpush1.msra.mxu0 %v2364
    %2480 = vmatprep.subr.mxu0 0.0
    %2481 = vmatpush1.msra.mxu0 %v2363
    %2482 = vmatprep.subr.mxu0 0.0
    %2483 = vmatpush1.msra.mxu0 %v2362
    %2484 = vmatprep.subr.mxu0 0.0
    %2485 = vmatpush2.msra.mxu0 0.0
    %2486 = vmatprep.subr.mxu0 0.0
    %2487 = vmatpush2.msra.mxu0 0.0
    %2488 = vmatprep.subr.mxu0 0.0
    %2489 = vmatpush2.msra.mxu0 0.0
    %2490 = vmatprep.subr.mxu0 0.0
    %2491 = vmatpush2.msra.mxu0 0.0
    %2492 = vmatprep.subr.mxu0 0.0
    %2493 = vmatpush2.msra.mxu0 0.0
    %2494 = vmatprep.subr.mxu0 0.0
    %2495 = vmatpush2.msra.mxu0 0.0
    %2496 = vmatprep.subr.mxu0 0.0
    %2497 = vmatpush2.msra.mxu0 0.0
    %2498 = vmatprep.subr.mxu0 0.0
    %2499 = vmatpush2.msra.mxu0 0.0
    %2500 = vmatprep.subr.mxu0 0.0
    %2501 = vmatpush2.msra.mxu0 0.0
    %2502 = vmatprep.subr.mxu0 0.0
    %2503 = vmatpush2.msra.mxu0 0.0
    %2504 = vmatprep.subr.mxu0 0.0
    %2505 = vmatpush2.msra.mxu0 0.0
    %2506 = vmatprep.subr.mxu0 0.0
    %2507 = vmatpush2.msra.mxu0 0.0
    %2508 = vmatprep.subr.mxu0 0.0
    %2509 = vmatpush2.msra.mxu0 0.0
    %2510 = vmatprep.subr.mxu0 0.0
    %2511 = vmatpush2.msra.mxu0 0.0
    %2512 = vmatprep.subr.mxu0 0.0
    %2513 = vmatpush2.msra.mxu0 0.0
    %2514 = vmatprep.subr.mxu0 0.0
    %2515 = vmatpush2.msra.mxu0 0.0
    %2516 = vmatprep.mubr.f32.mxu0 0.0
    %2517 = vmatmul.mubr.f32.gmra.mxu0 %v1551
    %v2518 = vpop.f32.mrf.mxu0
    %v2519 = vadd.f32 %v2444, %v2518
    %v2520 = vpop.f32.mrf.mxu0
    %2521 = vmatprep.mubr.f32.mxu0 0.0
    %2522 = vmatmul.mubr.f32.gmra.mxu0 %v1554
    %v2523 = vpop.f32.mrf.mxu0
    %v2524 = vadd.f32 %v2449, %v2523
    %v2525 = vpop.f32.mrf.mxu0
    %2526 = vdwg.mxu0
    %s2527 = scalar_lea.vmem [#allocation10], 1
    %v2528 = vld [vmem:[%s2527] sm:$0x1]
    %v2530 = vlaneseq
    %v2531 = vshrl.u32 %v2530, 7
    %v2532 = vsub.s32 0, %v2531
    %v2533 = vrot.slane %v2528, %v2532
    %v2535 = vadd.f32 %v2519, %v2533
    %v2536 = vadd.f32 %v2524, %v2533
    %vm2537 = vcmp.ge.f32.partialorder %v2535, 0.0
    %vm2538 = vcmp.ge.f32.partialorder %v2536, 0.0
    %v2539 = vmul.f32 %v2535, 0.2
    %v2540 = vmul.f32 %v2536, 0.2
    %v2541 = vsel %vm2537, %v2535, %v2539
    %v2542 = vsel %vm2538, %v2536, %v2540
    %s2543 = scalar_lea.vmem %s14, 32
    %v2544 = vld [vmem:[%s2543] sm:$0xff]
    %v2545 = vld [vmem:[%s2543 + $0x8] sm:$0xff]
    %v2546 = vld [vmem:[%s2543 + $0x10] sm:$0xff]
    %v2547 = vld [vmem:[%s2543 + $0x18] sm:$0xff]
    %s2548 = scalar_lea.vmem %s15, 1
    %v2549 = vld [vmem:[%s2548] sm:$0x1]
    %v2551 = vlaneseq
    %v2552 = vshrl.u32 %v2551, 7
    %v2553 = vsub.s32 0, %v2552
    %v2554 = vrot.slane %v2549, %v2553
    %v2557 = vsel %vm232, %v2541, 0
    %v2560 = vsel %vm232, %v2542, 0
    %2562 = vmatprep.subr.mxu0 0.0
    %2563 = vmatpush1.msra.mxu0 0.0
    %2564 = vmatprep.subr.mxu0 0.0
    %2565 = vmatpush1.msra.mxu0 0.0
    %2566 = vmatprep.subr.mxu0 0.0
    %2567 = vmatpush1.msra.mxu0 0.0
    %2568 = vmatprep.subr.mxu0 0.0
    %2569 = vmatpush1.msra.mxu0 0.0
    %2570 = vmatprep.subr.mxu0 0.0
    %2571 = vmatpush1.msra.mxu0 0.0
    %2572 = vmatprep.subr.mxu0 0.0
    %2573 = vmatpush1.msra.mxu0 0.0
    %2574 = vmatprep.subr.mxu0 0.0
    %2575 = vmatpush1.msra.mxu0 0.0
    %2576 = vmatprep.subr.mxu0 0.0
    %2577 = vmatpush1.msra.mxu0 0.0
    %2578 = vmatprep.subr.mxu0 0.0
    %2579 = vmatpush1.msra.mxu0 0.0
    %2580 = vmatprep.subr.mxu0 0.0
    %2581 = vmatpush1.msra.mxu0 0.0
    %2582 = vmatprep.subr.mxu0 0.0
    %2583 = vmatpush1.msra.mxu0 0.0
    %2584 = vmatprep.subr.mxu0 0.0
    %2585 = vmatpush1.msra.mxu0 0.0
    %2586 = vmatprep.subr.mxu0 0.0
    %2587 = vmatpush1.msra.mxu0 %v2547
    %2588 = vmatprep.subr.mxu0 0.0
    %2589 = vmatpush1.msra.mxu0 %v2546
    %2590 = vmatprep.subr.mxu0 0.0
    %2591 = vmatpush1.msra.mxu0 %v2545
    %2592 = vmatprep.subr.mxu0 0.0
    %2593 = vmatpush1.msra.mxu0 %v2544
    %2594 = vmatprep.subr.mxu0 0.0
    %2595 = vmatpush2.msra.mxu0 0.0
    %2596 = vmatprep.subr.mxu0 0.0
    %2597 = vmatpush2.msra.mxu0 0.0
    %2598 = vmatprep.subr.mxu0 0.0
    %2599 = vmatpush2.msra.mxu0 0.0
    %2600 = vmatprep.subr.mxu0 0.0
    %2601 = vmatpush2.msra.mxu0 0.0
    %2602 = vmatprep.subr.mxu0 0.0
    %2603 = vmatpush2.msra.mxu0 0.0
    %2604 = vmatprep.subr.mxu0 0.0
    %2605 = vmatpush2.msra.mxu0 0.0
    %2606 = vmatprep.subr.mxu0 0.0
    %2607 = vmatpush2.msra.mxu0 0.0
    %2608 = vmatprep.subr.mxu0 0.0
    %2609 = vmatpush2.msra.mxu0 0.0
    %2610 = vmatprep.subr.mxu0 0.0
    %2611 = vmatpush2.msra.mxu0 0.0
    %2612 = vmatprep.subr.mxu0 0.0
    %2613 = vmatpush2.msra.mxu0 0.0
    %2614 = vmatprep.subr.mxu0 0.0
    %2615 = vmatpush2.msra.mxu0 0.0
    %2616 = vmatprep.subr.mxu0 0.0
    %2617 = vmatpush2.msra.mxu0 0.0
    %2618 = vmatprep.subr.mxu0 0.0
    %2619 = vmatpush2.msra.mxu0 0.0
    %2620 = vmatprep.subr.mxu0 0.0
    %2621 = vmatpush2.msra.mxu0 0.0
    %2622 = vmatprep.subr.mxu0 0.0
    %2623 = vmatpush2.msra.mxu0 0.0
    %2624 = vmatprep.subr.mxu0 0.0
    %2625 = vmatpush2.msra.mxu0 0.0
    %2626 = vmatprep.mubr.f32.mxu0 0.0
    %2627 = vmatmul.mubr.f32.gmra.mxu0 %v2557
    %v2628 = vpop.f32.mrf.mxu0
    %v2629 = vadd.f32 %v2554, %v2628
    %v2630 = vpop.f32.mrf.mxu0
    %2631 = vmatprep.mubr.f32.mxu0 0.0
    %2632 = vmatmul.mubr.f32.gmra.mxu0 %v2560
    %v2633 = vpop.f32.mrf.mxu0
    %v2634 = vadd.f32 %v2554, %v2633
    %v2635 = vpop.f32.mrf.mxu0
    %2636 = vdwg.mxu0
    %v2637 = vsub.f32 0.0, %v2629
    %v2638 = vsub.f32 0.0, %v2634
    %v2639 = vmul.f32 %v2637, 1.442695
    %v2640 = vpow.pop %v2639
    %v2641 = vmul.f32 %v2638, 1.442695
    %v2642 = vpow.pop %v2641
    %v2643 = vadd.f32 %v2640, 1.0
    %v2644 = vadd.f32 %v2642, 1.0
    %v2645 = vrcp.pop %v2643
    %v2646 = vrcp.pop %v2644
    %v2647 = vsub.f32 %v2353, %v1535
    %v2648 = vsub.f32 %v2358, %v1536
    %2650 = vset.pattern.permute.xlu0 0
    %2651 = vperm.xlu0 %2650, %v2645
    %v2652 = vpop.permute.xlu0 %2651
    %2655 = vset.pattern.permute.xlu0 0
    %2656 = vperm.xlu0 %2655, %v2646
    %v2657 = vpop.permute.xlu0 %2656
    %v2659 = vmul.f32 %v2652, %v2647
    %v2660 = vmul.f32 %v2657, %v2648
    %v2661 = vadd.f32 %v1535, %v2659
    %v2662 = vadd.f32 %v1536, %v2660
    %s2663 = scalar_lea.vmem %s4, 64
    %v2664 = vld [vmem:[%s2663] sm:$0xff]
    %v2665 = vld [vmem:[%s2663 + $0x8] sm:$0xff]
    %v2666 = vld [vmem:[%s2663 + $0x10] sm:$0xff]
    %v2667 = vld [vmem:[%s2663 + $0x18] sm:$0xff]
    %s2668 = scalar_lea.vmem %s5, 2
    %v2669 = vld [vmem:[%s2668] sm:$0x1]
    %v2671 = vlaneseq
    %v2672 = vshrl.u32 %v2671, 7
    %v2673 = vsub.s32 0, %v2672
    %v2674 = vrot.slane %v2669, %v2673
    %v2677 = vsel %vm232, %v2661, 0
    %v2680 = vsel %vm232, %v2662, 0
    %2682 = vmatprep.subr.mxu0 0.0
    %2683 = vmatpush1.msra.mxu0 0.0
    %2684 = vmatprep.subr.mxu0 0.0
    %2685 = vmatpush1.msra.mxu0 0.0
    %2686 = vmatprep.subr.mxu0 0.0
    %2687 = vmatpush1.msra.mxu0 0.0
    %2688 = vmatprep.subr.mxu0 0.0
    %2689 = vmatpush1.msra.mxu0 0.0
    %2690 = vmatprep.subr.mxu0 0.0
    %2691 = vmatpush1.msra.mxu0 0.0
    %2692 = vmatprep.subr.mxu0 0.0
    %2693 = vmatpush1.msra.mxu0 0.0
    %2694 = vmatprep.subr.mxu0 0.0
    %2695 = vmatpush1.msra.mxu0 0.0
    %2696 = vmatprep.subr.mxu0 0.0
    %2697 = vmatpush1.msra.mxu0 0.0
    %2698 = vmatprep.subr.mxu0 0.0
    %2699 = vmatpush1.msra.mxu0 0.0
    %2700 = vmatprep.subr.mxu0 0.0
    %2701 = vmatpush1.msra.mxu0 0.0
    %2702 = vmatprep.subr.mxu0 0.0
    %2703 = vmatpush1.msra.mxu0 0.0
    %2704 = vmatprep.subr.mxu0 0.0
    %2705 = vmatpush1.msra.mxu0 0.0
    %2706 = vmatprep.subr.mxu0 0.0
    %2707 = vmatpush1.msra.mxu0 %v2667
    %2708 = vmatprep.subr.mxu0 0.0
    %2709 = vmatpush1.msra.mxu0 %v2666
    %2710 = vmatprep.subr.mxu0 0.0
    %2711 = vmatpush1.msra.mxu0 %v2665
    %2712 = vmatprep.subr.mxu0 0.0
    %2713 = vmatpush1.msra.mxu0 %v2664
    %2714 = vmatprep.subr.mxu0 0.0
    %2715 = vmatpush2.msra.mxu0 0.0
    %2716 = vmatprep.subr.mxu0 0.0
    %2717 = vmatpush2.msra.mxu0 0.0
    %2718 = vmatprep.subr.mxu0 0.0
    %2719 = vmatpush2.msra.mxu0 0.0
    %2720 = vmatprep.subr.mxu0 0.0
    %2721 = vmatpush2.msra.mxu0 0.0
    %2722 = vmatprep.subr.mxu0 0.0
    %2723 = vmatpush2.msra.mxu0 0.0
    %2724 = vmatprep.subr.mxu0 0.0
    %2725 = vmatpush2.msra.mxu0 0.0
    %2726 = vmatprep.subr.mxu0 0.0
    %2727 = vmatpush2.msra.mxu0 0.0
    %2728 = vmatprep.subr.mxu0 0.0
    %2729 = vmatpush2.msra.mxu0 0.0
    %2730 = vmatprep.subr.mxu0 0.0
    %2731 = vmatpush2.msra.mxu0 0.0
    %2732 = vmatprep.subr.mxu0 0.0
    %2733 = vmatpush2.msra.mxu0 0.0
    %2734 = vmatprep.subr.mxu0 0.0
    %2735 = vmatpush2.msra.mxu0 0.0
    %2736 = vmatprep.subr.mxu0 0.0
    %2737 = vmatpush2.msra.mxu0 0.0
    %2738 = vmatprep.subr.mxu0 0.0
    %2739 = vmatpush2.msra.mxu0 0.0
    %2740 = vmatprep.subr.mxu0 0.0
    %2741 = vmatpush2.msra.mxu0 0.0
    %2742 = vmatprep.subr.mxu0 0.0
    %2743 = vmatpush2.msra.mxu0 0.0
    %2744 = vmatprep.subr.mxu0 0.0
    %2745 = vmatpush2.msra.mxu0 0.0
    %2746 = vmatprep.mubr.f32.mxu0 0.0
    %2747 = vmatmul.mubr.f32.gmra.mxu0 %v2677
    %v2748 = vpop.f32.mrf.mxu0
    %v2749 = vadd.f32 %v2674, %v2748
    %v2750 = vpop.f32.mrf.mxu0
    %2751 = vmatprep.mubr.f32.mxu0 0.0
    %2752 = vmatmul.mubr.f32.gmra.mxu0 %v2680
    %v2753 = vpop.f32.mrf.mxu0
    %v2754 = vadd.f32 %v2674, %v2753
    %v2755 = vpop.f32.mrf.mxu0
    %2756 = vdwg.mxu0
    %2757 = vmatprep.subr.mxu0 0.0
    %2758 = vmatpush1.msra.mxu0 0.0
    %2759 = vmatprep.subr.mxu0 0.0
    %2760 = vmatpush1.msra.mxu0 0.0
    %2761 = vmatprep.subr.mxu0 0.0
    %2762 = vmatpush1.msra.mxu0 0.0
    %2763 = vmatprep.subr.mxu0 0.0
    %2764 = vmatpush1.msra.mxu0 0.0
    %2765 = vmatprep.subr.mxu0 0.0
    %2766 = vmatpush1.msra.mxu0 0.0
    %2767 = vmatprep.subr.mxu0 0.0
    %2768 = vmatpush1.msra.mxu0 0.0
    %2769 = vmatprep.subr.mxu0 0.0
    %2770 = vmatpush1.msra.mxu0 0.0
    %2771 = vmatprep.subr.mxu0 0.0
    %2772 = vmatpush1.msra.mxu0 0.0
    %2773 = vmatprep.subr.mxu0 0.0
    %2774 = vmatpush1.msra.mxu0 0.0
    %2775 = vmatprep.subr.mxu0 0.0
    %2776 = vmatpush1.msra.mxu0 0.0
    %2777 = vmatprep.subr.mxu0 0.0
    %2778 = vmatpush1.msra.mxu0 0.0
    %2779 = vmatprep.subr.mxu0 0.0
    %2780 = vmatpush1.msra.mxu0 0.0
    %2781 = vmatprep.subr.mxu0 0.0
    %2782 = vmatpush1.msra.mxu0 0.0
    %2783 = vmatprep.subr.mxu0 0.0
    %2784 = vmatpush1.msra.mxu0 0.0
    %2785 = vmatprep.subr.mxu0 0.0
    %2786 = vmatpush1.msra.mxu0 %v2754
    %2787 = vmatprep.subr.mxu0 0.0
    %2788 = vmatpush1.msra.mxu0 %v2749
    %2789 = vmatprep.subr.mxu0 0.0
    %2790 = vmatpush2.msra.mxu0 0.0
    %2791 = vmatprep.subr.mxu0 0.0
    %2792 = vmatpush2.msra.mxu0 0.0
    %2793 = vmatprep.subr.mxu0 0.0
    %2794 = vmatpush2.msra.mxu0 0.0
    %2795 = vmatprep.subr.mxu0 0.0
    %2796 = vmatpush2.msra.mxu0 0.0
    %2797 = vmatprep.subr.mxu0 0.0
    %2798 = vmatpush2.msra.mxu0 0.0
    %2799 = vmatprep.subr.mxu0 0.0
    %2800 = vmatpush2.msra.mxu0 0.0
    %2801 = vmatprep.subr.mxu0 0.0
    %2802 = vmatpush2.msra.mxu0 0.0
    %2803 = vmatprep.subr.mxu0 0.0
    %2804 = vmatpush2.msra.mxu0 0.0
    %2805 = vmatprep.subr.mxu0 0.0
    %2806 = vmatpush2.msra.mxu0 0.0
    %2807 = vmatprep.subr.mxu0 0.0
    %2808 = vmatpush2.msra.mxu0 0.0
    %2809 = vmatprep.subr.mxu0 0.0
    %2810 = vmatpush2.msra.mxu0 0.0
    %2811 = vmatprep.subr.mxu0 0.0
    %2812 = vmatpush2.msra.mxu0 0.0
    %2813 = vmatprep.subr.mxu0 0.0
    %2814 = vmatpush2.msra.mxu0 0.0
    %2815 = vmatprep.subr.mxu0 0.0
    %2816 = vmatpush2.msra.mxu0 0.0
    %2817 = vmatprep.subr.mxu0 0.0
    %2818 = vmatpush2.msra.mxu0 0.0
    %2819 = vmatprep.subr.mxu0 0.0
    %2820 = vmatpush2.msra.mxu0 0.0
    %2821 = vmatprep.mubr.f32.mxu0 0.0
    %2822 = vmatmul.mubr.f32.gmra.mxu0 %v442
    %v2823 = vpop.f32.mrf.mxu0
    %v2824 = vadd.f32 0.0, %v2823
    %v2825 = vpop.f32.mrf.mxu0
    %2826 = vmatprep.mubr.f32.mxu0 0.0
    %2827 = vmatmul.mubr.f32.gmra.mxu0 %v445
    %v2828 = vpop.f32.mrf.mxu0
    %v2829 = vadd.f32 0.0, %v2828
    %v2830 = vpop.f32.mrf.mxu0
    %2831 = vmatprep.mubr.f32.mxu0 0.0
    %2832 = vmatmul.mubr.f32.gmra.mxu0 %v448
    %v2833 = vpop.f32.mrf.mxu0
    %v2834 = vadd.f32 0.0, %v2833
    %v2835 = vpop.f32.mrf.mxu0
    %2836 = vmatprep.mubr.f32.mxu0 0.0
    %2837 = vmatmul.mubr.f32.gmra.mxu0 %v451
    %v2838 = vpop.f32.mrf.mxu0
    %v2839 = vadd.f32 0.0, %v2838
    %v2840 = vpop.f32.mrf.mxu0
    %2841 = vmatprep.mubr.f32.mxu0 0.0
    %2842 = vmatmul.mubr.f32.gmra.mxu0 %v454
    %v2843 = vpop.f32.mrf.mxu0
    %v2844 = vadd.f32 0.0, %v2843
    %v2845 = vpop.f32.mrf.mxu0
    %2846 = vmatprep.mubr.f32.mxu0 0.0
    %2847 = vmatmul.mubr.f32.gmra.mxu0 %v457
    %v2848 = vpop.f32.mrf.mxu0
    %v2849 = vadd.f32 0.0, %v2848
    %v2850 = vpop.f32.mrf.mxu0
    %2851 = vmatprep.mubr.f32.mxu0 0.0
    %2852 = vmatmul.mubr.f32.gmra.mxu0 %v460
    %v2853 = vpop.f32.mrf.mxu0
    %v2854 = vadd.f32 0.0, %v2853
    %v2855 = vpop.f32.mrf.mxu0
    %2856 = vmatprep.mubr.f32.mxu0 0.0
    %2857 = vmatmul.mubr.f32.gmra.mxu0 %v463
    %v2858 = vpop.f32.mrf.mxu0
    %v2859 = vadd.f32 0.0, %v2858
    %v2860 = vpop.f32.mrf.mxu0
    %2861 = vmatprep.mubr.f32.mxu0 0.0
    %2862 = vmatmul.mubr.f32.gmra.mxu0 %v466
    %v2863 = vpop.f32.mrf.mxu0
    %v2864 = vadd.f32 0.0, %v2863
    %v2865 = vpop.f32.mrf.mxu0
    %2866 = vmatprep.mubr.f32.mxu0 0.0
    %2867 = vmatmul.mubr.f32.gmra.mxu0 %v469
    %v2868 = vpop.f32.mrf.mxu0
    %v2869 = vadd.f32 0.0, %v2868
    %v2870 = vpop.f32.mrf.mxu0
    %2871 = vmatprep.mubr.f32.mxu0 0.0
    %2872 = vmatmul.mubr.f32.gmra.mxu0 %v472
    %v2873 = vpop.f32.mrf.mxu0
    %v2874 = vadd.f32 0.0, %v2873
    %v2875 = vpop.f32.mrf.mxu0
    %2876 = vmatprep.mubr.f32.mxu0 0.0
    %2877 = vmatmul.mubr.f32.gmra.mxu0 %v475
    %v2878 = vpop.f32.mrf.mxu0
    %v2879 = vadd.f32 0.0, %v2878
    %v2880 = vpop.f32.mrf.mxu0
    %2881 = vdwg.mxu0
    %2882 = vrot.lane.b32.xlu0 %v318, 124
    %v2883 = vpop.permute.xlu0 %2882
    %2884 = vrot.lane.b32.xlu0 %v323, 124
    %v2885 = vpop.permute.xlu0 %2884
    %2886 = vrot.lane.b32.xlu0 %v328, 124
    %v2887 = vpop.permute.xlu0 %2886
    %2888 = vrot.lane.b32.xlu0 %v333, 124
    %v2889 = vpop.permute.xlu0 %2888
    %2890 = vrot.lane.b32.xlu0 %v338, 124
    %v2891 = vpop.permute.xlu0 %2890
    %2892 = vrot.lane.b32.xlu0 %v343, 124
    %v2893 = vpop.permute.xlu0 %2892
    %v2900 = vadd.f32 %v2824, %v2883
    %v2901 = vadd.f32 %v2829, %v2885
    %v2902 = vadd.f32 %v2834, %v2887
    %v2903 = vadd.f32 %v2839, %v2889
    %v2904 = vadd.f32 %v2844, %v2891
    %v2905 = vadd.f32 %v2849, %v2893
    %2912 = vrot.lane.b32.xlu0 %v2900, 124
    %v2913 = vpop.permute.xlu0 %2912
    %2914 = vrot.lane.b32.xlu0 %v2901, 124
    %v2915 = vpop.permute.xlu0 %2914
    %2916 = vrot.lane.b32.xlu0 %v2902, 124
    %v2917 = vpop.permute.xlu0 %2916
    %2918 = vrot.lane.b32.xlu0 %v2903, 124
    %v2919 = vpop.permute.xlu0 %2918
    %2920 = vrot.lane.b32.xlu0 %v2904, 124
    %v2921 = vpop.permute.xlu0 %2920
    %2922 = vrot.lane.b32.xlu0 %v2905, 124
    %v2923 = vpop.permute.xlu0 %2922
    %v2930 = vmul.f32 %v2854, %v2913
    %v2931 = vmul.f32 %v2859, %v2915
    %v2932 = vmul.f32 %v2864, %v2917
    %v2933 = vmul.f32 %v2869, %v2919
    %v2934 = vmul.f32 %v2874, %v2921
    %v2935 = vmul.f32 %v2879, %v2923
    %vm2936 = vcmp.ge.f32.partialorder %v2930, 0.0
    %vm2937 = vcmp.ge.f32.partialorder %v2931, 0.0
    %vm2938 = vcmp.ge.f32.partialorder %v2932, 0.0
    %vm2939 = vcmp.ge.f32.partialorder %v2933, 0.0
    %vm2940 = vcmp.ge.f32.partialorder %v2934, 0.0
    %vm2941 = vcmp.ge.f32.partialorder %v2935, 0.0
    %v2942 = vmul.f32 %v2930, 0.2
    %v2943 = vmul.f32 %v2931, 0.2
    %v2944 = vmul.f32 %v2932, 0.2
    %v2945 = vmul.f32 %v2933, 0.2
    %v2946 = vmul.f32 %v2934, 0.2
    %v2947 = vmul.f32 %v2935, 0.2
    %v2948 = vsel %vm2936, %v2930, %v2942
    %v2949 = vsel %vm2937, %v2931, %v2943
    %v2950 = vsel %vm2938, %v2932, %v2944
    %v2951 = vsel %vm2939, %v2933, %v2945
    %v2952 = vsel %vm2940, %v2934, %v2946
    %v2953 = vsel %vm2941, %v2935, %v2947
    %s2954 = scalar_lea.vmem [#allocation5], 8
    %v2955 = vld [vmem:[%s2954] sm:$0xf]
    %s2956 = scalar_lea.vmem %s8, 2
    %v2957 = vld [vmem:[%s2956] sm:$0x1]
    %v2959 = vlaneseq
    %v2960 = vshrl.u32 %v2959, 7
    %v2961 = vsub.s32 0, %v2960
    %v2962 = vrot.slane %v2957, %v2961
    %v2965 = vsel %vm688, %v2948, 0
    %v2968 = vsel %vm688, %v2949, 0
    %v2971 = vsel %vm688, %v2950, 0
    %v2974 = vsel %vm688, %v2951, 0
    %v2977 = vsel %vm688, %v2952, 0
    %v2980 = vsel %vm688, %v2953, 0
    %v2983 = vsel %vm707, %v2955, 0
    %2985 = vmatprep.subr.mxu0 0.0
    %2986 = vmatpush1.msra.mxu0 0.0
    %2987 = vmatprep.subr.mxu0 0.0
    %2988 = vmatpush1.msra.mxu0 0.0
    %2989 = vmatprep.subr.mxu0 0.0
    %2990 = vmatpush1.msra.mxu0 0.0
    %2991 = vmatprep.subr.mxu0 0.0
    %2992 = vmatpush1.msra.mxu0 0.0
    %2993 = vmatprep.subr.mxu0 0.0
    %2994 = vmatpush1.msra.mxu0 0.0
    %2995 = vmatprep.subr.mxu0 0.0
    %2996 = vmatpush1.msra.mxu0 0.0
    %2997 = vmatprep.subr.mxu0 0.0
    %2998 = vmatpush1.msra.mxu0 0.0
    %2999 = vmatprep.subr.mxu0 0.0
    %3000 = vmatpush1.msra.mxu0 0.0
    %3001 = vmatprep.subr.mxu0 0.0
    %3002 = vmatpush1.msra.mxu0 0.0
    %3003 = vmatprep.subr.mxu0 0.0
    %3004 = vmatpush1.msra.mxu0 0.0
    %3005 = vmatprep.subr.mxu0 0.0
    %3006 = vmatpush1.msra.mxu0 0.0
    %3007 = vmatprep.subr.mxu0 0.0
    %3008 = vmatpush1.msra.mxu0 0.0
    %3009 = vmatprep.subr.mxu0 0.0
    %3010 = vmatpush1.msra.mxu0 0.0
    %3011 = vmatprep.subr.mxu0 0.0
    %3012 = vmatpush1.msra.mxu0 0.0
    %3013 = vmatprep.subr.mxu0 0.0
    %3014 = vmatpush1.msra.mxu0 0.0
    %3015 = vmatprep.subr.mxu0 0.0
    %3016 = vmatpush1.msra.mxu0 %v2983
    %3017 = vmatprep.subr.mxu0 0.0
    %3018 = vmatpush2.msra.mxu0 0.0
    %3019 = vmatprep.subr.mxu0 0.0
    %3020 = vmatpush2.msra.mxu0 0.0
    %3021 = vmatprep.subr.mxu0 0.0
    %3022 = vmatpush2.msra.mxu0 0.0
    %3023 = vmatprep.subr.mxu0 0.0
    %3024 = vmatpush2.msra.mxu0 0.0
    %3025 = vmatprep.subr.mxu0 0.0
    %3026 = vmatpush2.msra.mxu0 0.0
    %3027 = vmatprep.subr.mxu0 0.0
    %3028 = vmatpush2.msra.mxu0 0.0
    %3029 = vmatprep.subr.mxu0 0.0
    %3030 = vmatpush2.msra.mxu0 0.0
    %3031 = vmatprep.subr.mxu0 0.0
    %3032 = vmatpush2.msra.mxu0 0.0
    %3033 = vmatprep.subr.mxu0 0.0
    %3034 = vmatpush2.msra.mxu0 0.0
    %3035 = vmatprep.subr.mxu0 0.0
    %3036 = vmatpush2.msra.mxu0 0.0
    %3037 = vmatprep.subr.mxu0 0.0
    %3038 = vmatpush2.msra.mxu0 0.0
    %3039 = vmatprep.subr.mxu0 0.0
    %3040 = vmatpush2.msra.mxu0 0.0
    %3041 = vmatprep.subr.mxu0 0.0
    %3042 = vmatpush2.msra.mxu0 0.0
    %3043 = vmatprep.subr.mxu0 0.0
    %3044 = vmatpush2.msra.mxu0 0.0
    %3045 = vmatprep.subr.mxu0 0.0
    %3046 = vmatpush2.msra.mxu0 0.0
    %3047 = vmatprep.subr.mxu0 0.0
    %3048 = vmatpush2.msra.mxu0 0.0
    %3049 = vmatprep.mubr.f32.mxu0 0.0
    %3050 = vmatmul.mubr.f32.gmra.mxu0 %v2965
    %v3051 = vpop.f32.mrf.mxu0
    %v3052 = vadd.f32 %v2962, %v3051
    %v3053 = vpop.f32.mrf.mxu0
    %3054 = vmatprep.mubr.f32.mxu0 0.0
    %3055 = vmatmul.mubr.f32.gmra.mxu0 %v2968
    %v3056 = vpop.f32.mrf.mxu0
    %v3057 = vadd.f32 %v2962, %v3056
    %v3058 = vpop.f32.mrf.mxu0
    %3059 = vmatprep.mubr.f32.mxu0 0.0
    %3060 = vmatmul.mubr.f32.gmra.mxu0 %v2971
    %v3061 = vpop.f32.mrf.mxu0
    %v3062 = vadd.f32 %v2962, %v3061
    %v3063 = vpop.f32.mrf.mxu0
    %3064 = vmatprep.mubr.f32.mxu0 0.0
    %3065 = vmatmul.mubr.f32.gmra.mxu0 %v2974
    %v3066 = vpop.f32.mrf.mxu0
    %v3067 = vadd.f32 %v2962, %v3066
    %v3068 = vpop.f32.mrf.mxu0
    %3069 = vmatprep.mubr.f32.mxu0 0.0
    %3070 = vmatmul.mubr.f32.gmra.mxu0 %v2977
    %v3071 = vpop.f32.mrf.mxu0
    %v3072 = vadd.f32 %v2962, %v3071
    %v3073 = vpop.f32.mrf.mxu0
    %3074 = vmatprep.mubr.f32.mxu0 0.0
    %3075 = vmatmul.mubr.f32.gmra.mxu0 %v2980
    %v3076 = vpop.f32.mrf.mxu0
    %v3077 = vadd.f32 %v2962, %v3076
    %v3078 = vpop.f32.mrf.mxu0
    %3079 = vdwg.mxu0
    %v3080 = vmul.f32 %v3052, 1.442695
    %v3081 = vpow.pop %v3080
    %v3082 = vmul.f32 %v3057, 1.442695
    %v3083 = vpow.pop %v3082
    %v3084 = vmul.f32 %v3062, 1.442695
    %v3085 = vpow.pop %v3084
    %v3086 = vmul.f32 %v3067, 1.442695
    %v3087 = vpow.pop %v3086
    %v3088 = vmul.f32 %v3072, 1.442695
    %v3089 = vpow.pop %v3088
    %v3090 = vmul.f32 %v3077, 1.442695
    %v3091 = vpow.pop %v3090
    %3092 = vmatprep.subr.mxu0 0.0
    %3093 = vmatpush1.msra.mxu0 0.0
    %3094 = vmatprep.subr.mxu0 0.0
    %3095 = vmatpush1.msra.mxu0 0.0
    %3096 = vmatprep.subr.mxu0 0.0
    %3097 = vmatpush1.msra.mxu0 0.0
    %3098 = vmatprep.subr.mxu0 0.0
    %3099 = vmatpush1.msra.mxu0 0.0
    %3100 = vmatprep.subr.mxu0 0.0
    %3101 = vmatpush1.msra.mxu0 0.0
    %3102 = vmatprep.subr.mxu0 0.0
    %3103 = vmatpush1.msra.mxu0 0.0
    %3104 = vmatprep.subr.mxu0 0.0
    %3105 = vmatpush1.msra.mxu0 0.0
    %3106 = vmatprep.subr.mxu0 0.0
    %3107 = vmatpush1.msra.mxu0 0.0
    %3108 = vmatprep.subr.mxu0 0.0
    %3109 = vmatpush1.msra.mxu0 0.0
    %3110 = vmatprep.subr.mxu0 0.0
    %3111 = vmatpush1.msra.mxu0 0.0
    %3112 = vmatprep.subr.mxu0 0.0
    %3113 = vmatpush1.msra.mxu0 %v3091
    %3114 = vmatprep.subr.mxu0 0.0
    %3115 = vmatpush1.msra.mxu0 %v3089
    %3116 = vmatprep.subr.mxu0 0.0
    %3117 = vmatpush1.msra.mxu0 %v3087
    %3118 = vmatprep.subr.mxu0 0.0
    %3119 = vmatpush1.msra.mxu0 %v3085
    %3120 = vmatprep.subr.mxu0 0.0
    %3121 = vmatpush1.msra.mxu0 %v3083
    %3122 = vmatprep.subr.mxu0 0.0
    %3123 = vmatpush1.msra.mxu0 %v3081
    %3124 = vmatprep.subr.mxu0 0.0
    %3125 = vmatpush2.msra.mxu0 0.0
    %3126 = vmatprep.subr.mxu0 0.0
    %3127 = vmatpush2.msra.mxu0 0.0
    %3128 = vmatprep.subr.mxu0 0.0
    %3129 = vmatpush2.msra.mxu0 0.0
    %3130 = vmatprep.subr.mxu0 0.0
    %3131 = vmatpush2.msra.mxu0 0.0
    %3132 = vmatprep.subr.mxu0 0.0
    %3133 = vmatpush2.msra.mxu0 0.0
    %3134 = vmatprep.subr.mxu0 0.0
    %3135 = vmatpush2.msra.mxu0 0.0
    %3136 = vmatprep.subr.mxu0 0.0
    %3137 = vmatpush2.msra.mxu0 0.0
    %3138 = vmatprep.subr.mxu0 0.0
    %3139 = vmatpush2.msra.mxu0 0.0
    %3140 = vmatprep.subr.mxu0 0.0
    %3141 = vmatpush2.msra.mxu0 0.0
    %3142 = vmatprep.subr.mxu0 0.0
    %3143 = vmatpush2.msra.mxu0 0.0
    %3144 = vmatprep.subr.mxu0 0.0
    %3145 = vmatpush2.msra.mxu0 0.0
    %3146 = vmatprep.subr.mxu0 0.0
    %3147 = vmatpush2.msra.mxu0 0.0
    %3148 = vmatprep.subr.mxu0 0.0
    %3149 = vmatpush2.msra.mxu0 0.0
    %3150 = vmatprep.subr.mxu0 0.0
    %3151 = vmatpush2.msra.mxu0 0.0
    %3152 = vmatprep.subr.mxu0 0.0
    %3153 = vmatpush2.msra.mxu0 0.0
    %3154 = vmatprep.subr.mxu0 0.0
    %3155 = vmatpush2.msra.mxu0 0.0
    %3156 = vmatprep.mubr.f32.mxu0 0.0
    %3157 = vmatmul.mubr.f32.gmra.mxu0 %v825
    %v3158 = vpop.f32.mrf.mxu0
    %v3159 = vadd.f32 0.0, %v3158
    %v3160 = vpop.f32.mrf.mxu0
    %3161 = vmatprep.mubr.f32.mxu0 0.0
    %3162 = vmatmul.mubr.f32.gmra.mxu0 %v827
    %v3163 = vpop.f32.mrf.mxu0
    %v3164 = vadd.f32 0.0, %v3163
    %v3165 = vpop.f32.mrf.mxu0
    %3166 = vdwg.mxu0
    %vm3167 = vcmp.eq.f32.partialorder %v3159, 0.0
    %vm3168 = vcmp.eq.f32.partialorder %v3164, 0.0
    %v3169 = vsel %vm3167, 1.0, %v3159
    %v3170 = vsel %vm3168, 1.0, %v3164
    %v3171 = vrcp.pop %v3169
    %v3172 = vrcp.pop %v3170
    %3173 = vmatprep.subr.mxu0 0.0
    %3174 = vmatpush1.msra.mxu0 0.0
    %3175 = vmatprep.subr.mxu0 0.0
    %3176 = vmatpush1.msra.mxu0 0.0
    %3177 = vmatprep.subr.mxu0 0.0
    %3178 = vmatpush1.msra.mxu0 0.0
    %3179 = vmatprep.subr.mxu0 0.0
    %3180 = vmatpush1.msra.mxu0 0.0
    %3181 = vmatprep.subr.mxu0 0.0
    %3182 = vmatpush1.msra.mxu0 0.0
    %3183 = vmatprep.subr.mxu0 0.0
    %3184 = vmatpush1.msra.mxu0 0.0
    %3185 = vmatprep.subr.mxu0 0.0
    %3186 = vmatpush1.msra.mxu0 0.0
    %3187 = vmatprep.subr.mxu0 0.0
    %3188 = vmatpush1.msra.mxu0 0.0
    %3189 = vmatprep.subr.mxu0 0.0
    %3190 = vmatpush1.msra.mxu0 0.0
    %3191 = vmatprep.subr.mxu0 0.0
    %3192 = vmatpush1.msra.mxu0 0.0
    %3193 = vmatprep.subr.mxu0 0.0
    %3194 = vmatpush1.msra.mxu0 0.0
    %3195 = vmatprep.subr.mxu0 0.0
    %3196 = vmatpush1.msra.mxu0 0.0
    %3197 = vmatprep.subr.mxu0 0.0
    %3198 = vmatpush1.msra.mxu0 0.0
    %3199 = vmatprep.subr.mxu0 0.0
    %3200 = vmatpush1.msra.mxu0 0.0
    %3201 = vmatprep.subr.mxu0 0.0
    %3202 = vmatpush1.msra.mxu0 %v3172
    %3203 = vmatprep.subr.mxu0 0.0
    %3204 = vmatpush1.msra.mxu0 %v3171
    %3205 = vmatprep.subr.mxu0 0.0
    %3206 = vmatpush2.msra.mxu0 0.0
    %3207 = vmatprep.subr.mxu0 0.0
    %3208 = vmatpush2.msra.mxu0 0.0
    %3209 = vmatprep.subr.mxu0 0.0
    %3210 = vmatpush2.msra.mxu0 0.0
    %3211 = vmatprep.subr.mxu0 0.0
    %3212 = vmatpush2.msra.mxu0 0.0
    %3213 = vmatprep.subr.mxu0 0.0
    %3214 = vmatpush2.msra.mxu0 0.0
    %3215 = vmatprep.subr.mxu0 0.0
    %3216 = vmatpush2.msra.mxu0 0.0
    %3217 = vmatprep.subr.mxu0 0.0
    %3218 = vmatpush2.msra.mxu0 0.0
    %3219 = vmatprep.subr.mxu0 0.0
    %3220 = vmatpush2.msra.mxu0 0.0
    %3221 = vmatprep.subr.mxu0 0.0
    %3222 = vmatpush2.msra.mxu0 0.0
    %3223 = vmatprep.subr.mxu0 0.0
    %3224 = vmatpush2.msra.mxu0 0.0
    %3225 = vmatprep.subr.mxu0 0.0
    %3226 = vmatpush2.msra.mxu0 0.0
    %3227 = vmatprep.subr.mxu0 0.0
    %3228 = vmatpush2.msra.mxu0 0.0
    %3229 = vmatprep.subr.mxu0 0.0
    %3230 = vmatpush2.msra.mxu0 0.0
    %3231 = vmatprep.subr.mxu0 0.0
    %3232 = vmatpush2.msra.mxu0 0.0
    %3233 = vmatprep.subr.mxu0 0.0
    %3234 = vmatpush2.msra.mxu0 0.0
    %3235 = vmatprep.subr.mxu0 0.0
    %3236 = vmatpush2.msra.mxu0 0.0
    %3237 = vmatprep.mubr.f32.mxu0 0.0
    %3238 = vmatmul.mubr.f32.gmra.mxu0 %v460
    %v3239 = vpop.f32.mrf.mxu0
    %v3240 = vadd.f32 0.0, %v3239
    %v3241 = vpop.f32.mrf.mxu0
    %3242 = vmatprep.mubr.f32.mxu0 0.0
    %3243 = vmatmul.mubr.f32.gmra.mxu0 %v463
    %v3244 = vpop.f32.mrf.mxu0
    %v3245 = vadd.f32 0.0, %v3244
    %v3246 = vpop.f32.mrf.mxu0
    %3247 = vmatprep.mubr.f32.mxu0 0.0
    %3248 = vmatmul.mubr.f32.gmra.mxu0 %v466
    %v3249 = vpop.f32.mrf.mxu0
    %v3250 = vadd.f32 0.0, %v3249
    %v3251 = vpop.f32.mrf.mxu0
    %3252 = vmatprep.mubr.f32.mxu0 0.0
    %3253 = vmatmul.mubr.f32.gmra.mxu0 %v469
    %v3254 = vpop.f32.mrf.mxu0
    %v3255 = vadd.f32 0.0, %v3254
    %v3256 = vpop.f32.mrf.mxu0
    %3257 = vmatprep.mubr.f32.mxu0 0.0
    %3258 = vmatmul.mubr.f32.gmra.mxu0 %v472
    %v3259 = vpop.f32.mrf.mxu0
    %v3260 = vadd.f32 0.0, %v3259
    %v3261 = vpop.f32.mrf.mxu0
    %3262 = vmatprep.mubr.f32.mxu0 0.0
    %3263 = vmatmul.mubr.f32.gmra.mxu0 %v475
    %v3264 = vpop.f32.mrf.mxu0
    %v3265 = vadd.f32 0.0, %v3264
    %v3266 = vpop.f32.mrf.mxu0
    %3267 = vdwg.mxu0
    %v3268 = vmul.f32 %v3081, %v3240
    %v3269 = vmul.f32 %v3083, %v3245
    %v3270 = vmul.f32 %v3085, %v3250
    %v3271 = vmul.f32 %v3087, %v3255
    %v3272 = vmul.f32 %v3089, %v3260
    %v3273 = vmul.f32 %v3091, %v3265
    %3280 = vrot.lane.b32.xlu0 %v2824, 120
    %v3281 = vpop.permute.xlu0 %3280
    %3282 = vrot.lane.b32.xlu0 %v2829, 120
    %v3283 = vpop.permute.xlu0 %3282
    %3284 = vrot.lane.b32.xlu0 %v2834, 120
    %v3285 = vpop.permute.xlu0 %3284
    %3286 = vrot.lane.b32.xlu0 %v2839, 120
    %v3287 = vpop.permute.xlu0 %3286
    %3288 = vrot.lane.b32.xlu0 %v2844, 120
    %v3289 = vpop.permute.xlu0 %3288
    %3290 = vrot.lane.b32.xlu0 %v2849, 120
    %v3291 = vpop.permute.xlu0 %3290
    %v3298 = vmul.f32 %v3268, %v3281
    %v3299 = vmul.f32 %v3269, %v3283
    %v3300 = vmul.f32 %v3270, %v3285
    %v3301 = vmul.f32 %v3271, %v3287
    %v3302 = vmul.f32 %v3272, %v3289
    %v3303 = vmul.f32 %v3273, %v3291
    %s3304 = scalar_lea.vmem %s9, 64
    %v3305 = vld [vmem:[%s3304] sm:$0xff]
    %v3306 = vld [vmem:[%s3304 + $0x8] sm:$0xff]
    %v3307 = vld [vmem:[%s3304 + $0x10] sm:$0xff]
    %v3308 = vld [vmem:[%s3304 + $0x18] sm:$0xff]
    %s3309 = scalar_lea.vmem [#allocation7], 2
    %v3310 = vld [vmem:[%s3309] sm:$0x1]
    %v3312 = vlaneseq
    %v3313 = vshrl.u32 %v3312, 7
    %v3314 = vsub.s32 0, %v3313
    %v3315 = vrot.slane %v3310, %v3314
    %v3318 = vsel %vm232, %v3298, 0
    %v3321 = vsel %vm232, %v3299, 0
    %v3324 = vsel %vm232, %v3300, 0
    %v3327 = vsel %vm232, %v3301, 0
    %v3330 = vsel %vm232, %v3302, 0
    %v3333 = vsel %vm232, %v3303, 0
    %3335 = vmatprep.subr.mxu0 0.0
    %3336 = vmatpush1.msra.mxu0 0.0
    %3337 = vmatprep.subr.mxu0 0.0
    %3338 = vmatpush1.msra.mxu0 0.0
    %3339 = vmatprep.subr.mxu0 0.0
    %3340 = vmatpush1.msra.mxu0 0.0
    %3341 = vmatprep.subr.mxu0 0.0
    %3342 = vmatpush1.msra.mxu0 0.0
    %3343 = vmatprep.subr.mxu0 0.0
    %3344 = vmatpush1.msra.mxu0 0.0
    %3345 = vmatprep.subr.mxu0 0.0
    %3346 = vmatpush1.msra.mxu0 0.0
    %3347 = vmatprep.subr.mxu0 0.0
    %3348 = vmatpush1.msra.mxu0 0.0
    %3349 = vmatprep.subr.mxu0 0.0
    %3350 = vmatpush1.msra.mxu0 0.0
    %3351 = vmatprep.subr.mxu0 0.0
    %3352 = vmatpush1.msra.mxu0 0.0
    %3353 = vmatprep.subr.mxu0 0.0
    %3354 = vmatpush1.msra.mxu0 0.0
    %3355 = vmatprep.subr.mxu0 0.0
    %3356 = vmatpush1.msra.mxu0 0.0
    %3357 = vmatprep.subr.mxu0 0.0
    %3358 = vmatpush1.msra.mxu0 0.0
    %3359 = vmatprep.subr.mxu0 0.0
    %3360 = vmatpush1.msra.mxu0 %v3308
    %3361 = vmatprep.subr.mxu0 0.0
    %3362 = vmatpush1.msra.mxu0 %v3307
    %3363 = vmatprep.subr.mxu0 0.0
    %3364 = vmatpush1.msra.mxu0 %v3306
    %3365 = vmatprep.subr.mxu0 0.0
    %3366 = vmatpush1.msra.mxu0 %v3305
    %3367 = vmatprep.subr.mxu0 0.0
    %3368 = vmatpush2.msra.mxu0 0.0
    %3369 = vmatprep.subr.mxu0 0.0
    %3370 = vmatpush2.msra.mxu0 0.0
    %3371 = vmatprep.subr.mxu0 0.0
    %3372 = vmatpush2.msra.mxu0 0.0
    %3373 = vmatprep.subr.mxu0 0.0
    %3374 = vmatpush2.msra.mxu0 0.0
    %3375 = vmatprep.subr.mxu0 0.0
    %3376 = vmatpush2.msra.mxu0 0.0
    %3377 = vmatprep.subr.mxu0 0.0
    %3378 = vmatpush2.msra.mxu0 0.0
    %3379 = vmatprep.subr.mxu0 0.0
    %3380 = vmatpush2.msra.mxu0 0.0
    %3381 = vmatprep.subr.mxu0 0.0
    %3382 = vmatpush2.msra.mxu0 0.0
    %3383 = vmatprep.subr.mxu0 0.0
    %3384 = vmatpush2.msra.mxu0 0.0
    %3385 = vmatprep.subr.mxu0 0.0
    %3386 = vmatpush2.msra.mxu0 0.0
    %3387 = vmatprep.subr.mxu0 0.0
    %3388 = vmatpush2.msra.mxu0 0.0
    %3389 = vmatprep.subr.mxu0 0.0
    %3390 = vmatpush2.msra.mxu0 0.0
    %3391 = vmatprep.subr.mxu0 0.0
    %3392 = vmatpush2.msra.mxu0 0.0
    %3393 = vmatprep.subr.mxu0 0.0
    %3394 = vmatpush2.msra.mxu0 0.0
    %3395 = vmatprep.subr.mxu0 0.0
    %3396 = vmatpush2.msra.mxu0 0.0
    %3397 = vmatprep.subr.mxu0 0.0
    %3398 = vmatpush2.msra.mxu0 0.0
    %3399 = vmatprep.mubr.f32.mxu0 0.0
    %3400 = vmatmul.mubr.f32.gmra.mxu0 %v3318
    %v3401 = vpop.f32.mrf.mxu0
    %v3402 = vadd.f32 %v3315, %v3401
    %v3403 = vpop.f32.mrf.mxu0
    %3404 = vmatprep.mubr.f32.mxu0 0.0
    %3405 = vmatmul.mubr.f32.gmra.mxu0 %v3321
    %v3406 = vpop.f32.mrf.mxu0
    %v3407 = vadd.f32 %v3315, %v3406
    %v3408 = vpop.f32.mrf.mxu0
    %3409 = vmatprep.mubr.f32.mxu0 0.0
    %3410 = vmatmul.mubr.f32.gmra.mxu0 %v3324
    %v3411 = vpop.f32.mrf.mxu0
    %v3412 = vadd.f32 %v3315, %v3411
    %v3413 = vpop.f32.mrf.mxu0
    %3414 = vmatprep.mubr.f32.mxu0 0.0
    %3415 = vmatmul.mubr.f32.gmra.mxu0 %v3327
    %v3416 = vpop.f32.mrf.mxu0
    %v3417 = vadd.f32 %v3315, %v3416
    %v3418 = vpop.f32.mrf.mxu0
    %3419 = vmatprep.mubr.f32.mxu0 0.0
    %3420 = vmatmul.mubr.f32.gmra.mxu0 %v3330
    %v3421 = vpop.f32.mrf.mxu0
    %v3422 = vadd.f32 %v3315, %v3421
    %v3423 = vpop.f32.mrf.mxu0
    %3424 = vmatprep.mubr.f32.mxu0 0.0
    %3425 = vmatmul.mubr.f32.gmra.mxu0 %v3333
    %v3426 = vpop.f32.mrf.mxu0
    %v3427 = vadd.f32 %v3315, %v3426
    %v3428 = vpop.f32.mrf.mxu0
    %3429 = vdwg.mxu0
    %3430 = vmatprep.subr.mxu0 0.0
    %3431 = vmatpush1.msra.mxu0 0.0
    %3432 = vmatprep.subr.mxu0 0.0
    %3433 = vmatpush1.msra.mxu0 0.0
    %3434 = vmatprep.subr.mxu0 0.0
    %3435 = vmatpush1.msra.mxu0 0.0
    %3436 = vmatprep.subr.mxu0 0.0
    %3437 = vmatpush1.msra.mxu0 0.0
    %3438 = vmatprep.subr.mxu0 0.0
    %3439 = vmatpush1.msra.mxu0 0.0
    %3440 = vmatprep.subr.mxu0 0.0
    %3441 = vmatpush1.msra.mxu0 0.0
    %3442 = vmatprep.subr.mxu0 0.0
    %3443 = vmatpush1.msra.mxu0 0.0
    %3444 = vmatprep.subr.mxu0 0.0
    %3445 = vmatpush1.msra.mxu0 0.0
    %3446 = vmatprep.subr.mxu0 0.0
    %3447 = vmatpush1.msra.mxu0 0.0
    %3448 = vmatprep.subr.mxu0 0.0
    %3449 = vmatpush1.msra.mxu0 0.0
    %3450 = vmatprep.subr.mxu0 0.0
    %3451 = vmatpush1.msra.mxu0 %v3427
    %3452 = vmatprep.subr.mxu0 0.0
    %3453 = vmatpush1.msra.mxu0 %v3422
    %3454 = vmatprep.subr.mxu0 0.0
    %3455 = vmatpush1.msra.mxu0 %v3417
    %3456 = vmatprep.subr.mxu0 0.0
    %3457 = vmatpush1.msra.mxu0 %v3412
    %3458 = vmatprep.subr.mxu0 0.0
    %3459 = vmatpush1.msra.mxu0 %v3407
    %3460 = vmatprep.subr.mxu0 0.0
    %3461 = vmatpush1.msra.mxu0 %v3402
    %3462 = vmatprep.subr.mxu0 0.0
    %3463 = vmatpush2.msra.mxu0 0.0
    %3464 = vmatprep.subr.mxu0 0.0
    %3465 = vmatpush2.msra.mxu0 0.0
    %3466 = vmatprep.subr.mxu0 0.0
    %3467 = vmatpush2.msra.mxu0 0.0
    %3468 = vmatprep.subr.mxu0 0.0
    %3469 = vmatpush2.msra.mxu0 0.0
    %3470 = vmatprep.subr.mxu0 0.0
    %3471 = vmatpush2.msra.mxu0 0.0
    %3472 = vmatprep.subr.mxu0 0.0
    %3473 = vmatpush2.msra.mxu0 0.0
    %3474 = vmatprep.subr.mxu0 0.0
    %3475 = vmatpush2.msra.mxu0 0.0
    %3476 = vmatprep.subr.mxu0 0.0
    %3477 = vmatpush2.msra.mxu0 0.0
    %3478 = vmatprep.subr.mxu0 0.0
    %3479 = vmatpush2.msra.mxu0 0.0
    %3480 = vmatprep.subr.mxu0 0.0
    %3481 = vmatpush2.msra.mxu0 0.0
    %3482 = vmatprep.subr.mxu0 0.0
    %3483 = vmatpush2.msra.mxu0 0.0
    %3484 = vmatprep.subr.mxu0 0.0
    %3485 = vmatpush2.msra.mxu0 0.0
    %3486 = vmatprep.subr.mxu0 0.0
    %3487 = vmatpush2.msra.mxu0 0.0
    %3488 = vmatprep.subr.mxu0 0.0
    %3489 = vmatpush2.msra.mxu0 0.0
    %3490 = vmatprep.subr.mxu0 0.0
    %3491 = vmatpush2.msra.mxu0 0.0
    %3492 = vmatprep.subr.mxu0 0.0
    %3493 = vmatpush2.msra.mxu0 0.0
    %3494 = vmatprep.mubr.f32.mxu0 0.0
    %3495 = vmatmul.mubr.f32.gmra.mxu0 %v825
    %v3496 = vpop.f32.mrf.mxu0
    %v3497 = vadd.f32 0.0, %v3496
    %v3498 = vpop.f32.mrf.mxu0
    %3499 = vmatprep.mubr.f32.mxu0 0.0
    %3500 = vmatmul.mubr.f32.gmra.mxu0 %v827
    %v3501 = vpop.f32.mrf.mxu0
    %v3502 = vadd.f32 0.0, %v3501
    %v3503 = vpop.f32.mrf.mxu0
    %3504 = vdwg.mxu0
    %s3505 = scalar_lea.vmem %s11, 64
    %v3506 = vld [vmem:[%s3505] sm:$0xff]
    %v3507 = vld [vmem:[%s3505 + $0x8] sm:$0xff]
    %v3508 = vld [vmem:[%s3505 + $0x10] sm:$0xff]
    %v3509 = vld [vmem:[%s3505 + $0x18] sm:$0xff]
    %s3510 = scalar_lea.vmem [#allocation8], 64
    %v3511 = vld [vmem:[%s3510] sm:$0xff]
    %v3512 = vld [vmem:[%s3510 + $0x8] sm:$0xff]
    %v3513 = vld [vmem:[%s3510 + $0x10] sm:$0xff]
    %v3514 = vld [vmem:[%s3510 + $0x18] sm:$0xff]
    %v3516 = vsel %vm232, %v3497, 0
    %v3519 = vsel %vm232, %v3502, 0
    %3521 = vmatprep.subr.mxu0 0.0
    %3522 = vmatpush1.msra.mxu0 0.0
    %3523 = vmatprep.subr.mxu0 0.0
    %3524 = vmatpush1.msra.mxu0 0.0
    %3525 = vmatprep.subr.mxu0 0.0
    %3526 = vmatpush1.msra.mxu0 0.0
    %3527 = vmatprep.subr.mxu0 0.0
    %3528 = vmatpush1.msra.mxu0 0.0
    %3529 = vmatprep.subr.mxu0 0.0
    %3530 = vmatpush1.msra.mxu0 0.0
    %3531 = vmatprep.subr.mxu0 0.0
    %3532 = vmatpush1.msra.mxu0 0.0
    %3533 = vmatprep.subr.mxu0 0.0
    %3534 = vmatpush1.msra.mxu0 0.0
    %3535 = vmatprep.subr.mxu0 0.0
    %3536 = vmatpush1.msra.mxu0 0.0
    %3537 = vmatprep.subr.mxu0 0.0
    %3538 = vmatpush1.msra.mxu0 0.0
    %3539 = vmatprep.subr.mxu0 0.0
    %3540 = vmatpush1.msra.mxu0 0.0
    %3541 = vmatprep.subr.mxu0 0.0
    %3542 = vmatpush1.msra.mxu0 0.0
    %3543 = vmatprep.subr.mxu0 0.0
    %3544 = vmatpush1.msra.mxu0 0.0
    %3545 = vmatprep.subr.mxu0 0.0
    %3546 = vmatpush1.msra.mxu0 %v3514
    %3547 = vmatprep.subr.mxu0 0.0
    %3548 = vmatpush1.msra.mxu0 %v3513
    %3549 = vmatprep.subr.mxu0 0.0
    %3550 = vmatpush1.msra.mxu0 %v3512
    %3551 = vmatprep.subr.mxu0 0.0
    %3552 = vmatpush1.msra.mxu0 %v3511
    %3553 = vmatprep.subr.mxu0 0.0
    %3554 = vmatpush2.msra.mxu0 0.0
    %3555 = vmatprep.subr.mxu0 0.0
    %3556 = vmatpush2.msra.mxu0 0.0
    %3557 = vmatprep.subr.mxu0 0.0
    %3558 = vmatpush2.msra.mxu0 0.0
    %3559 = vmatprep.subr.mxu0 0.0
    %3560 = vmatpush2.msra.mxu0 0.0
    %3561 = vmatprep.subr.mxu0 0.0
    %3562 = vmatpush2.msra.mxu0 0.0
    %3563 = vmatprep.subr.mxu0 0.0
    %3564 = vmatpush2.msra.mxu0 0.0
    %3565 = vmatprep.subr.mxu0 0.0
    %3566 = vmatpush2.msra.mxu0 0.0
    %3567 = vmatprep.subr.mxu0 0.0
    %3568 = vmatpush2.msra.mxu0 0.0
    %3569 = vmatprep.subr.mxu0 0.0
    %3570 = vmatpush2.msra.mxu0 0.0
    %3571 = vmatprep.subr.mxu0 0.0
    %3572 = vmatpush2.msra.mxu0 0.0
    %3573 = vmatprep.subr.mxu0 0.0
    %3574 = vmatpush2.msra.mxu0 0.0
    %3575 = vmatprep.subr.mxu0 0.0
    %3576 = vmatpush2.msra.mxu0 0.0
    %3577 = vmatprep.subr.mxu0 0.0
    %3578 = vmatpush2.msra.mxu0 0.0
    %3579 = vmatprep.subr.mxu0 0.0
    %3580 = vmatpush2.msra.mxu0 0.0
    %3581 = vmatprep.subr.mxu0 0.0
    %3582 = vmatpush2.msra.mxu0 0.0
    %3583 = vmatprep.subr.mxu0 0.0
    %3584 = vmatpush2.msra.mxu0 0.0
    %3585 = vmatprep.mubr.f32.mxu0 0.0
    %3586 = vmatmul.mubr.f32.gmra.mxu0 %v3516
    %v3587 = vpop.f32.mrf.mxu0
    %v3588 = vadd.f32 0.0, %v3587
    %v3589 = vpop.f32.mrf.mxu0
    %3590 = vmatprep.mubr.f32.mxu0 0.0
    %3591 = vmatmul.mubr.f32.gmra.mxu0 %v3519
    %v3592 = vpop.f32.mrf.mxu0
    %v3593 = vadd.f32 0.0, %v3592
    %v3594 = vpop.f32.mrf.mxu0
    %3595 = vdwg.mxu0
    %3596 = vmatprep.subr.mxu0 0.0
    %3597 = vmatpush1.msra.mxu0 0.0
    %3598 = vmatprep.subr.mxu0 0.0
    %3599 = vmatpush1.msra.mxu0 0.0
    %3600 = vmatprep.subr.mxu0 0.0
    %3601 = vmatpush1.msra.mxu0 0.0
    %3602 = vmatprep.subr.mxu0 0.0
    %3603 = vmatpush1.msra.mxu0 0.0
    %3604 = vmatprep.subr.mxu0 0.0
    %3605 = vmatpush1.msra.mxu0 0.0
    %3606 = vmatprep.subr.mxu0 0.0
    %3607 = vmatpush1.msra.mxu0 0.0
    %3608 = vmatprep.subr.mxu0 0.0
    %3609 = vmatpush1.msra.mxu0 0.0
    %3610 = vmatprep.subr.mxu0 0.0
    %3611 = vmatpush1.msra.mxu0 0.0
    %3612 = vmatprep.subr.mxu0 0.0
    %3613 = vmatpush1.msra.mxu0 0.0
    %3614 = vmatprep.subr.mxu0 0.0
    %3615 = vmatpush1.msra.mxu0 0.0
    %3616 = vmatprep.subr.mxu0 0.0
    %3617 = vmatpush1.msra.mxu0 0.0
    %3618 = vmatprep.subr.mxu0 0.0
    %3619 = vmatpush1.msra.mxu0 0.0
    %3620 = vmatprep.subr.mxu0 0.0
    %3621 = vmatpush1.msra.mxu0 %v3509
    %3622 = vmatprep.subr.mxu0 0.0
    %3623 = vmatpush1.msra.mxu0 %v3508
    %3624 = vmatprep.subr.mxu0 0.0
    %3625 = vmatpush1.msra.mxu0 %v3507
    %3626 = vmatprep.subr.mxu0 0.0
    %3627 = vmatpush1.msra.mxu0 %v3506
    %3628 = vmatprep.subr.mxu0 0.0
    %3629 = vmatpush2.msra.mxu0 0.0
    %3630 = vmatprep.subr.mxu0 0.0
    %3631 = vmatpush2.msra.mxu0 0.0
    %3632 = vmatprep.subr.mxu0 0.0
    %3633 = vmatpush2.msra.mxu0 0.0
    %3634 = vmatprep.subr.mxu0 0.0
    %3635 = vmatpush2.msra.mxu0 0.0
    %3636 = vmatprep.subr.mxu0 0.0
    %3637 = vmatpush2.msra.mxu0 0.0
    %3638 = vmatprep.subr.mxu0 0.0
    %3639 = vmatpush2.msra.mxu0 0.0
    %3640 = vmatprep.subr.mxu0 0.0
    %3641 = vmatpush2.msra.mxu0 0.0
    %3642 = vmatprep.subr.mxu0 0.0
    %3643 = vmatpush2.msra.mxu0 0.0
    %3644 = vmatprep.subr.mxu0 0.0
    %3645 = vmatpush2.msra.mxu0 0.0
    %3646 = vmatprep.subr.mxu0 0.0
    %3647 = vmatpush2.msra.mxu0 0.0
    %3648 = vmatprep.subr.mxu0 0.0
    %3649 = vmatpush2.msra.mxu0 0.0
    %3650 = vmatprep.subr.mxu0 0.0
    %3651 = vmatpush2.msra.mxu0 0.0
    %3652 = vmatprep.subr.mxu0 0.0
    %3653 = vmatpush2.msra.mxu0 0.0
    %3654 = vmatprep.subr.mxu0 0.0
    %3655 = vmatpush2.msra.mxu0 0.0
    %3656 = vmatprep.subr.mxu0 0.0
    %3657 = vmatpush2.msra.mxu0 0.0
    %3658 = vmatprep.subr.mxu0 0.0
    %3659 = vmatpush2.msra.mxu0 0.0
    %3660 = vmatprep.mubr.f32.mxu0 0.0
    %3661 = vmatmul.mubr.f32.gmra.mxu0 %v2677
    %v3662 = vpop.f32.mrf.mxu0
    %v3663 = vadd.f32 %v3588, %v3662
    %v3664 = vpop.f32.mrf.mxu0
    %3665 = vmatprep.mubr.f32.mxu0 0.0
    %3666 = vmatmul.mubr.f32.gmra.mxu0 %v2680
    %v3667 = vpop.f32.mrf.mxu0
    %v3668 = vadd.f32 %v3593, %v3667
    %v3669 = vpop.f32.mrf.mxu0
    %3670 = vdwg.mxu0
    %s3671 = scalar_lea.vmem [#allocation10], 2
    %v3672 = vld [vmem:[%s3671] sm:$0x1]
    %v3674 = vlaneseq
    %v3675 = vshrl.u32 %v3674, 7
    %v3676 = vsub.s32 0, %v3675
    %v3677 = vrot.slane %v3672, %v3676
    %v3679 = vadd.f32 %v3663, %v3677
    %v3680 = vadd.f32 %v3668, %v3677
    %vm3681 = vcmp.ge.f32.partialorder %v3679, 0.0
    %vm3682 = vcmp.ge.f32.partialorder %v3680, 0.0
    %v3683 = vmul.f32 %v3679, 0.2
    %v3684 = vmul.f32 %v3680, 0.2
    %v3685 = vsel %vm3681, %v3679, %v3683
    %v3686 = vsel %vm3682, %v3680, %v3684
    %s3687 = scalar_lea.vmem %s14, 64
    %v3688 = vld [vmem:[%s3687] sm:$0xff]
    %v3689 = vld [vmem:[%s3687 + $0x8] sm:$0xff]
    %v3690 = vld [vmem:[%s3687 + $0x10] sm:$0xff]
    %v3691 = vld [vmem:[%s3687 + $0x18] sm:$0xff]
    %s3692 = scalar_lea.vmem %s15, 2
    %v3693 = vld [vmem:[%s3692] sm:$0x1]
    %v3695 = vlaneseq
    %v3696 = vshrl.u32 %v3695, 7
    %v3697 = vsub.s32 0, %v3696
    %v3698 = vrot.slane %v3693, %v3697
    %v3701 = vsel %vm232, %v3685, 0
    %v3704 = vsel %vm232, %v3686, 0
    %3706 = vmatprep.subr.mxu0 0.0
    %3707 = vmatpush1.msra.mxu0 0.0
    %3708 = vmatprep.subr.mxu0 0.0
    %3709 = vmatpush1.msra.mxu0 0.0
    %3710 = vmatprep.subr.mxu0 0.0
    %3711 = vmatpush1.msra.mxu0 0.0
    %3712 = vmatprep.subr.mxu0 0.0
    %3713 = vmatpush1.msra.mxu0 0.0
    %3714 = vmatprep.subr.mxu0 0.0
    %3715 = vmatpush1.msra.mxu0 0.0
    %3716 = vmatprep.subr.mxu0 0.0
    %3717 = vmatpush1.msra.mxu0 0.0
    %3718 = vmatprep.subr.mxu0 0.0
    %3719 = vmatpush1.msra.mxu0 0.0
    %3720 = vmatprep.subr.mxu0 0.0
    %3721 = vmatpush1.msra.mxu0 0.0
    %3722 = vmatprep.subr.mxu0 0.0
    %3723 = vmatpush1.msra.mxu0 0.0
    %3724 = vmatprep.subr.mxu0 0.0
    %3725 = vmatpush1.msra.mxu0 0.0
    %3726 = vmatprep.subr.mxu0 0.0
    %3727 = vmatpush1.msra.mxu0 0.0
    %3728 = vmatprep.subr.mxu0 0.0
    %3729 = vmatpush1.msra.mxu0 0.0
    %3730 = vmatprep.subr.mxu0 0.0
    %3731 = vmatpush1.msra.mxu0 %v3691
    %3732 = vmatprep.subr.mxu0 0.0
    %3733 = vmatpush1.msra.mxu0 %v3690
    %3734 = vmatprep.subr.mxu0 0.0
    %3735 = vmatpush1.msra.mxu0 %v3689
    %3736 = vmatprep.subr.mxu0 0.0
    %3737 = vmatpush1.msra.mxu0 %v3688
    %3738 = vmatprep.subr.mxu0 0.0
    %3739 = vmatpush2.msra.mxu0 0.0
    %3740 = vmatprep.subr.mxu0 0.0
    %3741 = vmatpush2.msra.mxu0 0.0
    %3742 = vmatprep.subr.mxu0 0.0
    %3743 = vmatpush2.msra.mxu0 0.0
    %3744 = vmatprep.subr.mxu0 0.0
    %3745 = vmatpush2.msra.mxu0 0.0
    %3746 = vmatprep.subr.mxu0 0.0
    %3747 = vmatpush2.msra.mxu0 0.0
    %3748 = vmatprep.subr.mxu0 0.0
    %3749 = vmatpush2.msra.mxu0 0.0
    %3750 = vmatprep.subr.mxu0 0.0
    %3751 = vmatpush2.msra.mxu0 0.0
    %3752 = vmatprep.subr.mxu0 0.0
    %3753 = vmatpush2.msra.mxu0 0.0
    %3754 = vmatprep.subr.mxu0 0.0
    %3755 = vmatpush2.msra.mxu0 0.0
    %3756 = vmatprep.subr.mxu0 0.0
    %3757 = vmatpush2.msra.mxu0 0.0
    %3758 = vmatprep.subr.mxu0 0.0
    %3759 = vmatpush2.msra.mxu0 0.0
    %3760 = vmatprep.subr.mxu0 0.0
    %3761 = vmatpush2.msra.mxu0 0.0
    %3762 = vmatprep.subr.mxu0 0.0
    %3763 = vmatpush2.msra.mxu0 0.0
    %3764 = vmatprep.subr.mxu0 0.0
    %3765 = vmatpush2.msra.mxu0 0.0
    %3766 = vmatprep.subr.mxu0 0.0
    %3767 = vmatpush2.msra.mxu0 0.0
    %3768 = vmatprep.subr.mxu0 0.0
    %3769 = vmatpush2.msra.mxu0 0.0
    %3770 = vmatprep.mubr.f32.mxu0 0.0
    %3771 = vmatmul.mubr.f32.gmra.mxu0 %v3701
    %v3772 = vpop.f32.mrf.mxu0
    %v3773 = vadd.f32 %v3698, %v3772
    %v3774 = vpop.f32.mrf.mxu0
    %3775 = vmatprep.mubr.f32.mxu0 0.0
    %3776 = vmatmul.mubr.f32.gmra.mxu0 %v3704
    %v3777 = vpop.f32.mrf.mxu0
    %v3778 = vadd.f32 %v3698, %v3777
    %v3779 = vpop.f32.mrf.mxu0
    %3780 = vdwg.mxu0
    %v3781 = vsub.f32 0.0, %v3773
    %v3782 = vsub.f32 0.0, %v3778
    %v3783 = vmul.f32 %v3781, 1.442695
    %v3784 = vpow.pop %v3783
    %v3785 = vmul.f32 %v3782, 1.442695
    %v3786 = vpow.pop %v3785
    %v3787 = vadd.f32 %v3784, 1.0
    %v3788 = vadd.f32 %v3786, 1.0
    %v3789 = vrcp.pop %v3787
    %v3790 = vrcp.pop %v3788
    %v3791 = vsub.f32 %v3497, %v2661
    %v3792 = vsub.f32 %v3502, %v2662
    %3794 = vset.pattern.permute.xlu0 0
    %3795 = vperm.xlu0 %3794, %v3789
    %v3796 = vpop.permute.xlu0 %3795
    %3799 = vset.pattern.permute.xlu0 0
    %3800 = vperm.xlu0 %3799, %v3790
    %v3801 = vpop.permute.xlu0 %3800
    %v3803 = vmul.f32 %v3796, %v3791
    %v3804 = vmul.f32 %v3801, %v3792
    %v3805 = vadd.f32 %v2661, %v3803
    %v3806 = vadd.f32 %v2662, %v3804
    %3807 = vst.msk [vmem:[#allocation11] sm:$0xff] %vm232, %v3805
    %3808 = vst.msk [vmem:[#allocation11 + $0x8] sm:$0xff] %vm232, %v3806
    // Predicated region
    $region86: #{gnn_forward.1} parent=1 // pred_check
      _
    $region87: #{gnn_forward.1} parent=1 // pred_check_branch
      %3810 = sbr.rel (0) target = $region89
    $region88: #{gnn_forward.1} parent=1 // pred_region
      %s3812 = ssub.s32 256, 256
      %3813 = vsyncadd [#allocation4], %s3812
      %s3814 = sshll.u32 [#allocation11], 4
      %s3815 = int_to_ptr.vmem [resolvable:$true] %s3814
      %3820 = dma.vmem_to_hbm [thread:$0]  %s3815, 256, %s16, [#allocation4], 128, 128, 8
    $region89: #{gnn_forward.1} parent=1 // pred_fallthru
      _
    // Predicated region
    $region90: #{gnn_forward.1} parent=1 // pred_check
      _
    $region91: #{gnn_forward.1} parent=1 // pred_check_branch
      %3822 = sbr.rel (0) target = $region93
    $region92: #{gnn_forward.1} parent=1 // pred_region
      %3823 = dma.done [#allocation4], 256
    $region93: #{gnn_forward.1} parent=1 // pred_fallthru
      _
    %3824 = vsyncpa [#allocation3], 1
    %3825 = vsyncpa [#allocation6], 1
    %3826 = vsyncpa [#allocation9], 1
    %3827 = vsyncpa [#allocation4], 1

</llo_original>
